<compile_context>
chip_gen: v7x
topology: tpu7x:2x2x1
jax: 0.10.0
libtpu: 0.0.40
codegen_flags: <defaults>
</compile_context>

<pallas_src>
import jax
import jax.numpy as jnp
from jax import lax
from jax.experimental import pallas as pl
from jax.experimental.pallas import tpu as pltpu


_VMEM_LIMIT = 48 * 1024 * 1024  # above v6e's 32 MiB default, inside v7x's 64 MiB


# ----------------------------------------------------------------------------
# Kernel 1: one bidirectional LSTM layer.  Grid over direction (0=fwd, 1=bwd).
#   x_ref   : (C, S*B, Hin)  bf16   shared input chunks (C=1 first layer, C=2 after)
#   wih_ref : (C, Hin, 4H)   bf16   this direction's input weights (gate order ifgo)
#   whh_ref : (4, H, H)      bf16   this direction's recurrent weights, per gate
#   b_ref   : (1, 4H)        f32    b_ih + b_hh for this direction
#   out_ref : (S, B, H)      bf16   hidden states for this direction
# ----------------------------------------------------------------------------
def _bilstm_layer_kernel(x_ref, wih_ref, whh_ref, b_ref, out_ref,
                         xg_i, xg_f, xg_g, xg_o, h_scr, c_scr):
    C = x_ref.shape[0]
    S, B, H = out_ref.shape
    d = pl.program_id(0)  # 0 = forward, 1 = backward

    # ---- Pass 1: hoisted time-invariant input projection (one big MXU matmul
    # per input chunk), bias folded in once.  None of this sits on the serial
    # recurrence path.
    acc = jnp.dot(x_ref[0], wih_ref[0], preferred_element_type=jnp.float32)
    for c in range(1, C):
        acc = acc + jnp.dot(x_ref[c], wih_ref[c],
                            preferred_element_type=jnp.float32)
    acc = acc + b_ref[...]                      # (S*B, 4H) + (1, 4H), once
    # Split fused gates into per-gate scratches ONCE (outside the time loop)
    # so the recurrence never slices the lane axis per step.
    for g, scr in enumerate((xg_i, xg_f, xg_g, xg_o)):
        scr[...] = acc[:, g * H:(g + 1) * H].reshape(S, B, H)

    # ---- Pass 2: recurrence.  Only h @ W_hh + gate math on the serial path.
    h_scr[...] = jnp.zeros_like(h_scr)
    c_scr[...] = jnp.zeros_like(c_scr)
    w_i = whh_ref[0]
    w_f = whh_ref[1]
    w_g = whh_ref[2]
    w_o = whh_ref[3]
    # Hoisted direction handling: forward walks t, backward walks S-1-t.
    idx_base = jnp.where(d == 0, 0, S - 1)
    idx_sign = jnp.where(d == 0, 1, -1)

    def step(t, carry):
        idx = idx_base + idx_sign * t
        h_b = h_scr[...].astype(jnp.bfloat16)
        i_g = jax.nn.sigmoid(
            xg_i[idx] + jnp.dot(h_b, w_i, preferred_element_type=jnp.float32))
        f_g = jax.nn.sigmoid(
            xg_f[idx] + jnp.dot(h_b, w_f, preferred_element_type=jnp.float32))
        g_g = jnp.tanh(
            xg_g[idx] + jnp.dot(h_b, w_g, preferred_element_type=jnp.float32))
        o_g = jax.nn.sigmoid(
            xg_o[idx] + jnp.dot(h_b, w_o, preferred_element_type=jnp.float32))
        c_new = f_g * c_scr[...] + i_g * g_g
        h_new = o_g * jnp.tanh(c_new)
        c_scr[...] = c_new
        h_scr[...] = h_new
        out_ref[idx] = h_new.astype(out_ref.dtype)
        return carry

    # Fully unrolled: per-step work is tiny and strictly serial; unrolling lets
    # the LLO scheduler overlap step t+1's MXU pushes with step t's gate math.
    lax.fori_loop(0, S, step, 0, unroll=True)


def bilstm_layer(x_chunks, wih, whh, bias, S, B):
    """One bidirectional layer.  Returns (2, S, B, H) bf16 (direction-major)."""
    C, SB, Hin = x_chunks.shape
    H = whh.shape[-1]
    # TODO(synk): for large S/B add a batch-tile grid axis (BlockSpec pipelined)
    # so the whole sequence is not required to be VMEM-resident (v7x: 64 MiB).
    return pl.pallas_call(
        _bilstm_layer_kernel,
        grid=(2,),
        out_shape=jax.ShapeDtypeStruct((2, S, B, H), jnp.bfloat16),
        in_specs=[
            pl.BlockSpec((C, SB, Hin), lambda d: (0, 0, 0)),
            pl.BlockSpec((None, C, Hin, 4 * H), lambda d: (d, 0, 0, 0)),
            pl.BlockSpec((None, 4, H, H), lambda d: (d, 0, 0, 0)),
            pl.BlockSpec((None, 1, 4 * H), lambda d: (d, 0, 0)),
        ],
        out_specs=pl.BlockSpec((None, S, B, H), lambda d: (d, 0, 0, 0)),
        scratch_shapes=[pltpu.VMEM((S, B, H), jnp.float32)] * 4   # per-gate x-proj
                     + [pltpu.VMEM((B, H), jnp.float32)] * 2,     # h, c state
        compiler_params=pltpu.CompilerParams(
            dimension_semantics=("parallel",),      # fwd/bwd on v7x's two cores
            vmem_limit_bytes=_VMEM_LIMIT),
    )(x_chunks, wih, whh, bias)


def bilstm(x_bsd, lstm_layers):
    """Multi-layer bidirectional LSTM.  (B, S, Din) -> (B, S, 2H) bf16."""
    B, S, Din = x_bsd.shape
    # One time-major transpose up front; the layers themselves never reverse,
    # transpose or concatenate activations.
    x_chunks = (jnp.transpose(x_bsd, (1, 0, 2))
                .reshape(1, S * B, Din).astype(jnp.bfloat16))
    out = None
    for layer in lstm_layers:
        out = bilstm_layer(x_chunks, layer["wih"], layer["whh"], layer["b"], S, B)
        # The two direction planes become the next layer's input chunks
        # directly (contiguous reshape; no concat / reverse / transpose).
        x_chunks = out.reshape(2, S * B, out.shape[-1])
        # TODO(synk): nn.LSTM inter-layer dropout skipped (eval-mode identity).
    H = out.shape[-1]
    # (dir, S, B, H) -> (B, S, 2H), forward features first (PyTorch layout).
    return jnp.transpose(out, (2, 1, 0, 3)).reshape(B, S, 2 * H)


# ----------------------------------------------------------------------------
# Kernel 2: multi-head self-attention + residual + LayerNorm + max-pool.
# Grid = (batch_tiles, n_head); per-head partial output projections are summed
# into a VMEM accumulator (== projecting the concatenated heads).
# ----------------------------------------------------------------------------
def _make_attn_pool_kernel(n_head, tb, seq, scale):
    def kernel(x_ref, wq_ref, bq_ref, wk_ref, bk_ref, wv_ref, bv_ref,
               wo_ref, bo_ref, g_ref, beta_ref, out_ref, acc_ref):
        h = pl.program_id(1)

        @pl.when(h == 0)
        def _init():
            acc_ref[...] = jnp.zeros_like(acc_ref)

        x = x_ref[...]                                          # (TB*S, D) bf16
        q = jnp.dot(x, wq_ref[...], preferred_element_type=jnp.float32) + bq_ref[...]
        k = jnp.dot(x, wk_ref[...], preferred_element_type=jnp.float32) + bk_ref[...]
        v = jnp.dot(x, wv_ref[...], preferred_element_type=jnp.float32) + bv_ref[...]
        dk = q.shape[-1]
        q3 = (q * scale).reshape(tb, seq, dk)
        k3 = k.reshape(tb, seq, dk)
        v3 = v.reshape(tb, seq, dk)

        # Batched (over sequences in the tile) scaled dot-product attention.
        s = jnp.einsum('bqd,bkd->bqk',
                       q3.astype(jnp.bfloat16), k3.astype(jnp.bfloat16),
                       preferred_element_type=jnp.float32)      # (TB, S, S)
        s = s - jnp.max(s, axis=-1, keepdims=True)
        e = jnp.exp(s)
        p = e * pl.reciprocal(jnp.sum(e, axis=-1, keepdims=True), approx=True)
        attn = jnp.einsum('bqk,bkd->bqd',
                          p.astype(jnp.bfloat16), v3.astype(jnp.bfloat16),
                          preferred_element_type=jnp.float32)   # (TB, S, dk)

        # Per-head slice of the output projection; summing over heads equals
        # projecting the concatenated head outputs.
        acc_ref[...] += jnp.dot(attn.reshape(tb * seq, dk).astype(jnp.bfloat16),
                                wo_ref[...],
                                preferred_element_type=jnp.float32)  # (TB*S, D)

        @pl.when(h == n_head - 1)
        def _finalize():
            o = acc_ref[...] + bo_ref[...] + x.astype(jnp.float32)   # residual
            mean = jnp.mean(o, axis=-1, keepdims=True)
            var = jnp.mean(jnp.square(o - mean), axis=-1, keepdims=True)
            ln = (o - mean) * lax.rsqrt(var + 1e-6) * g_ref[...] + beta_ref[...]
            # max_pool1d over the sequence axis -> (TB, D)
            out_ref[...] = jnp.max(ln.reshape(tb, seq, -1), axis=1).astype(out_ref.dtype)

    return kernel


def mha_maxpool(x_bsd, atten):
    B, S, D = x_bsd.shape
    n_head, d_k = atten["n_head"], atten["d_k"]
    tb = min(B, 8)
    assert B % tb == 0
    num_tiles = B // tb
    x2 = x_bsd.reshape(B * S, D)                 # sequence-contiguous rows
    kernel = _make_attn_pool_kernel(n_head, tb, S, 1.0 / float(d_k) ** 0.5)

    def head_spec(arr):                          # (n_head, a, b) -> per-head block
        return pl.BlockSpec((None,) + arr.shape[1:], lambda b, h: (h, 0, 0))

    def shared_spec(arr):                        # (1, D), resident across grid
        return pl.BlockSpec(arr.shape, lambda b, h: (0, 0))

    in_specs = [pl.BlockSpec((tb * S, D), lambda b, h: (b, 0)),
                head_spec(atten["wq"]), head_spec(atten["bq"]),
                head_spec(atten["wk"]), head_spec(atten["bk"]),
                head_spec(atten["wv"]), head_spec(atten["bv"]),
                head_spec(atten["wo"]),
                shared_spec(atten["bo"]), shared_spec(atten["gamma"]),
                shared_spec(atten["beta"])]

    return pl.pallas_call(
        kernel,
        grid=(num_tiles, n_head),                # head = reduction axis, last
        out_shape=jax.ShapeDtypeStruct((B, D), jnp.float32),
        in_specs=in_specs,
        out_specs=pl.BlockSpec((tb, D), lambda b, h: (b, 0)),
        scratch_shapes=[pltpu.VMEM((tb * S, D), jnp.float32)],
        compiler_params=pltpu.CompilerParams(
            dimension_semantics=("parallel", "arbitrary"),
            vmem_limit_bytes=_VMEM_LIMIT),
    )(x2, atten["wq"], atten["bq"], atten["wk"], atten["bk"],
      atten["wv"], atten["bv"], atten["wo"], atten["bo"],
      atten["gamma"], atten["beta"])


# ----------------------------------------------------------------------------
# Parameter init (deterministic, synthetic) + full forward.
# ----------------------------------------------------------------------------
def init_params(key, input_size, hidden_size, num_layers, n_head):
    H = hidden_size // 2                       # per-direction hidden size
    keys = iter(jax.random.split(key, 128))

    def u(shape, dtype=jnp.float32, scale=0.1):
        vals = jax.random.uniform(next(keys), shape, jnp.float32, -1.0, 1.0) * scale
        return vals.astype(dtype)

    lstm_layers = []
    for layer_idx in range(num_layers):
        C, Hin = (1, input_size) if layer_idx == 0 else (2, H)
        lstm_layers.append(dict(
            wih=u((2, C, Hin, 4 * H), jnp.bfloat16),  # per-direction, per-chunk W_ih^T
            whh=u((2, 4, H, H), jnp.bfloat16),        # per-direction, per-gate W_hh^T
            b=u((2, 1, 4 * H)),                       # b_ih + b_hh (f32)
        ))

    D = hidden_size
    d_k = hidden_size  # per-head dim, per MultiHeadAttention(atten_head, H, H, H)
    atten = dict(
        n_head=n_head, d_k=d_k,
        wq=u((n_head, D, d_k), jnp.bfloat16), bq=u((n_head, 1, d_k)),
        wk=u((n_head, D, d_k), jnp.bfloat16), bk=u((n_head, 1, d_k)),
        wv=u((n_head, D, d_k), jnp.bfloat16), bv=u((n_head, 1, d_k)),
        wo=u((n_head, d_k, D), jnp.bfloat16),
        bo=u((1, D)),
        gamma=jnp.ones((1, D), jnp.float32),
        beta=jnp.zeros((1, D), jnp.float32),
    )
    return lstm_layers, atten


def bilstm_encoder_forward(x, lstm_layers, atten):
    lstm_out = bilstm(x, lstm_layers)          # (B, S, hidden_size) bf16
    pooled = mha_maxpool(lstm_out, atten)      # (B, hidden_size) f32
    return pooled


if __name__ == "__main__":
    B, S = 8, 8
    input_size, hidden_size, num_layers, atten_head = 16, 32, 2, 4

    key = jax.random.PRNGKey(0)
    k_x, k_p = jax.random.split(key)
    x = jax.random.normal(k_x, (B, S, input_size), jnp.float32)
    lstm_layers, atten = init_params(k_p, input_size, hidden_size,
                                     num_layers, atten_head)

    out = bilstm_encoder_forward(x, lstm_layers, atten)
    out = jax.block_until_ready(out)

    assert out.shape == (B, hidden_size), out.shape
    assert bool(jnp.all(jnp.isfinite(out)))
    print("KERNEL_OK")
</pallas_src>

<mosaic_0001>
module attributes {stable_mosaic.version = 11 : i64} {
  func.func @_bilstm_layer_kernel(%arg0: i32, %arg1: memref<1x64x16xbf16, #tpu.memory_space<vmem>>, %arg2: memref<1x1x16x64xbf16, #tpu.memory_space<vmem>>, %arg3: memref<1x4x16x16xbf16, #tpu.memory_space<vmem>>, %arg4: memref<1x1x64xf32, #tpu.memory_space<vmem>>, %arg5: memref<1x8x8x16xbf16, #tpu.memory_space<vmem>>, %arg6: memref<8x8x16xf32, #tpu.memory_space<vmem>>, %arg7: memref<8x8x16xf32, #tpu.memory_space<vmem>>, %arg8: memref<8x8x16xf32, #tpu.memory_space<vmem>>, %arg9: memref<8x8x16xf32, #tpu.memory_space<vmem>>, %arg10: memref<8x16xf32, #tpu.memory_space<vmem>>, %arg11: memref<8x16xf32, #tpu.memory_space<vmem>>) attributes {dimension_semantics = [#tpu.dimension_semantics<parallel>], iteration_bounds = array<i64: 2>, scalar_prefetch = 0 : i64, scratch_operands = 6 : i64, tpu.core_type = #tpu.core_type<tc>, window_params = [{pipeline_mode = #tpu.pipeline_mode<synchronous>, transform_indices = @transform_0, window_bounds = array<i64: 1, 64, 16>}, {transform_indices = @transform_1, window_bounds = array<i64: 1, 1, 16, 64>}, {transform_indices = @transform_2, window_bounds = array<i64: 1, 4, 16, 16>}, {transform_indices = @transform_3, window_bounds = array<i64: 1, 1, 64>}, {transform_indices = @transform_4, window_bounds = array<i64: 1, 8, 8, 16>}]} {
    %c0 = arith.constant 0 : index
    %c0_0 = arith.constant 0 : index
    %c0_1 = arith.constant 0 : index
    %0 = vector.load %arg1[%c0, %c0_0, %c0_1] : memref<1x64x16xbf16, #tpu.memory_space<vmem>>, vector<1x64x16xbf16>
    %1 = vector.shape_cast %0 : vector<1x64x16xbf16> to vector<64x16xbf16>
    %c0_2 = arith.constant 0 : index
    %c0_3 = arith.constant 0 : index
    %c0_4 = arith.constant 0 : index
    %c0_5 = arith.constant 0 : index
    %2 = vector.load %arg2[%c0_2, %c0_3, %c0_4, %c0_5] : memref<1x1x16x64xbf16, #tpu.memory_space<vmem>>, vector<1x1x16x64xbf16>
    %3 = vector.shape_cast %2 : vector<1x1x16x64xbf16> to vector<16x64xbf16>
    %cst = arith.constant dense<0.000000e+00> : vector<64x64xf32>
    %4 = tpu.matmul %1, %3, %cst {dimension_numbers = #tpu.dot_dimension_numbers<[1], [0], [0], [1], [0, 0, 1, 1], [], []>} : vector<64x16xbf16>, vector<16x64xbf16>, vector<64x64xf32> -> vector<64x64xf32>
    %c0_6 = arith.constant 0 : index
    %c0_7 = arith.constant 0 : index
    %c0_8 = arith.constant 0 : index
    %5 = vector.load %arg4[%c0_6, %c0_7, %c0_8] : memref<1x1x64xf32, #tpu.memory_space<vmem>>, vector<1x1x64xf32>
    %6 = vector.shape_cast %5 : vector<1x1x64xf32> to vector<1x64xf32>
    %7 = vector.broadcast %6 : vector<1x64xf32> to vector<64x64xf32>
    %8 = arith.addf %4, %7 : vector<64x64xf32>
    %9 = vector.extract_strided_slice %8 {offsets = [0, 0], sizes = [64, 16], strides = [1, 1]} : vector<64x64xf32> to vector<64x16xf32>
    %10 = vector.shape_cast %9 : vector<64x16xf32> to vector<8x8x16xf32>
    %c0_9 = arith.constant 0 : index
    %c0_10 = arith.constant 0 : index
    %c0_11 = arith.constant 0 : index
    %11 = vector.load %arg6[%c0_9, %c0_10, %c0_11] : memref<8x8x16xf32, #tpu.memory_space<vmem>>, vector<8x8x16xf32>
    tpu.vector_store %arg6[%c0_9, %c0_10, %c0_11], %10 {strides = array<i32>} : memref<8x8x16xf32, #tpu.memory_space<vmem>>, vector<8x8x16xf32>,
    %12 = vector.extract_strided_slice %8 {offsets = [0, 16], sizes = [64, 16], strides = [1, 1]} : vector<64x64xf32> to vector<64x16xf32>
    %13 = vector.shape_cast %12 : vector<64x16xf32> to vector<8x8x16xf32>
    %c0_12 = arith.constant 0 : index
    %c0_13 = arith.constant 0 : index
    %c0_14 = arith.constant 0 : index
    %14 = vector.load %arg7[%c0_12, %c0_13, %c0_14] : memref<8x8x16xf32, #tpu.memory_space<vmem>>, vector<8x8x16xf32>
    tpu.vector_store %arg7[%c0_12, %c0_13, %c0_14], %13 {strides = array<i32>} : memref<8x8x16xf32, #tpu.memory_space<vmem>>, vector<8x8x16xf32>,
    %15 = vector.extract_strided_slice %8 {offsets = [0, 32], sizes = [64, 16], strides = [1, 1]} : vector<64x64xf32> to vector<64x16xf32>
    %16 = vector.shape_cast %15 : vector<64x16xf32> to vector<8x8x16xf32>
    %c0_15 = arith.constant 0 : index
    %c0_16 = arith.constant 0 : index
    %c0_17 = arith.constant 0 : index
    %17 = vector.load %arg8[%c0_15, %c0_16, %c0_17] : memref<8x8x16xf32, #tpu.memory_space<vmem>>, vector<8x8x16xf32>
    tpu.vector_store %arg8[%c0_15, %c0_16, %c0_17], %16 {strides = array<i32>} : memref<8x8x16xf32, #tpu.memory_space<vmem>>, vector<8x8x16xf32>,
    %18 = vector.extract_strided_slice %8 {offsets = [0, 48], sizes = [64, 16], strides = [1, 1]} : vector<64x64xf32> to vector<64x16xf32>
    %19 = vector.shape_cast %18 : vector<64x16xf32> to vector<8x8x16xf32>
    %c0_18 = arith.constant 0 : index
    %c0_19 = arith.constant 0 : index
    %c0_20 = arith.constant 0 : index
    %20 = vector.load %arg9[%c0_18, %c0_19, %c0_20] : memref<8x8x16xf32, #tpu.memory_space<vmem>>, vector<8x8x16xf32>
    tpu.vector_store %arg9[%c0_18, %c0_19, %c0_20], %19 {strides = array<i32>} : memref<8x8x16xf32, #tpu.memory_space<vmem>>, vector<8x8x16xf32>,
    %cst_21 = arith.constant 0.000000e+00 : f32
    %21 = vector.broadcast %cst_21 : f32 to vector<8x16xf32>
    %c0_22 = arith.constant 0 : index
    %c0_23 = arith.constant 0 : index
    %22 = vector.load %arg10[%c0_22, %c0_23] : memref<8x16xf32, #tpu.memory_space<vmem>>, vector<8x16xf32>
    tpu.vector_store %arg10[%c0_22, %c0_23], %21 {strides = array<i32>} : memref<8x16xf32, #tpu.memory_space<vmem>>, vector<8x16xf32>,
    %cst_24 = arith.constant 0.000000e+00 : f32
    %23 = vector.broadcast %cst_24 : f32 to vector<8x16xf32>
    %c0_25 = arith.constant 0 : index
    %c0_26 = arith.constant 0 : index
    %24 = vector.load %arg11[%c0_25, %c0_26] : memref<8x16xf32, #tpu.memory_space<vmem>>, vector<8x16xf32>
    tpu.vector_store %arg11[%c0_25, %c0_26], %23 {strides = array<i32>} : memref<8x16xf32, #tpu.memory_space<vmem>>, vector<8x16xf32>,
    %c0_27 = arith.constant 0 : index
    %c0_28 = arith.constant 0 : index
    %c0_29 = arith.constant 0 : index
    %c0_30 = arith.constant 0 : index
    %25 = vector.load %arg3[%c0_27, %c0_28, %c0_29, %c0_30] : memref<1x4x16x16xbf16, #tpu.memory_space<vmem>>, vector<1x1x16x16xbf16>
    %26 = vector.shape_cast %25 : vector<1x1x16x16xbf16> to vector<16x16xbf16>
    %c0_31 = arith.constant 0 : index
    %c1 = arith.constant 1 : index
    %c0_32 = arith.constant 0 : index
    %c0_33 = arith.constant 0 : index
    %27 = vector.load %arg3[%c0_31, %c1, %c0_32, %c0_33] : memref<1x4x16x16xbf16, #tpu.memory_space<vmem>>, vector<1x1x16x16xbf16>
    %28 = vector.shape_cast %27 : vector<1x1x16x16xbf16> to vector<16x16xbf16>
    %c0_34 = arith.constant 0 : index
    %c2 = arith.constant 2 : index
    %c0_35 = arith.constant 0 : index
    %c0_36 = arith.constant 0 : index
    %29 = vector.load %arg3[%c0_34, %c2, %c0_35, %c0_36] : memref<1x4x16x16xbf16, #tpu.memory_space<vmem>>, vector<1x1x16x16xbf16>
    %30 = vector.shape_cast %29 : vector<1x1x16x16xbf16> to vector<16x16xbf16>
    %c0_37 = arith.constant 0 : index
    %c3 = arith.constant 3 : index
    %c0_38 = arith.constant 0 : index
    %c0_39 = arith.constant 0 : index
    %31 = vector.load %arg3[%c0_37, %c3, %c0_38, %c0_39] : memref<1x4x16x16xbf16, #tpu.memory_space<vmem>>, vector<1x1x16x16xbf16>
    %32 = vector.shape_cast %31 : vector<1x1x16x16xbf16> to vector<16x16xbf16>
    %c0_i32 = arith.constant 0 : i32
    %33 = arith.cmpi eq, %arg0, %c0_i32 : i32
    %c0_i32_40 = arith.constant 0 : i32
    %c7_i32 = arith.constant 7 : i32
    %34 = arith.select %33, %c0_i32_40, %c7_i32 : i32
    %c0_i32_41 = arith.constant 0 : i32
    %35 = arith.cmpi eq, %arg0, %c0_i32_41 : i32
    %c1_i32 = arith.constant 1 : i32
    %c-1_i32 = arith.constant -1 : i32
    %36 = arith.select %35, %c1_i32, %c-1_i32 : i32
    %c0_i32_42 = arith.constant 0 : i32
    %37 = arith.muli %36, %c0_i32_42 : i32
    %38 = arith.addi %34, %37 : i32
    %c0_43 = arith.constant 0 : index
    %c0_44 = arith.constant 0 : index
    %39 = vector.load %arg10[%c0_43, %c0_44] : memref<8x16xf32, #tpu.memory_space<vmem>>, vector<8x16xf32>
    %40 = arith.truncf %39 : vector<8x16xf32> to vector<8x16xbf16>
    %41 = arith.index_cast %38 : i32 to index
    %c0_45 = arith.constant 0 : index
    %c0_46 = arith.constant 0 : index
    %42 = vector.load %arg6[%41, %c0_45, %c0_46] : memref<8x8x16xf32, #tpu.memory_space<vmem>>, vector<1x8x16xf32>
    %43 = vector.shape_cast %42 : vector<1x8x16xf32> to vector<8x16xf32>
    %cst_47 = arith.constant dense<0.000000e+00> : vector<8x16xf32>
    %44 = tpu.matmul %40, %26, %cst_47 {dimension_numbers = #tpu.dot_dimension_numbers<[1], [0], [0], [1], [0, 0, 1, 1], [], []>} : vector<8x16xbf16>, vector<16x16xbf16>, vector<8x16xf32> -> vector<8x16xf32>
    %45 = arith.addf %43, %44 : vector<8x16xf32>
    %46 = arith.negf %45 : vector<8x16xf32>
    %47 = math.exp %46 : vector<8x16xf32>
    %cst_48 = arith.constant 1.000000e+00 : f32
    %48 = vector.broadcast %cst_48 : f32 to vector<8x16xf32>
    %49 = arith.addf %48, %47 : vector<8x16xf32>
    %50 = arith.divf %48, %49 : vector<8x16xf32>
    %51 = arith.index_cast %38 : i32 to index
    %c0_49 = arith.constant 0 : index
    %c0_50 = arith.constant 0 : index
    %52 = vector.load %arg7[%51, %c0_49, %c0_50] : memref<8x8x16xf32, #tpu.memory_space<vmem>>, vector<1x8x16xf32>
    %53 = vector.shape_cast %52 : vector<1x8x16xf32> to vector<8x16xf32>
    %cst_51 = arith.constant dense<0.000000e+00> : vector<8x16xf32>
    %54 = tpu.matmul %40, %28, %cst_51 {dimension_numbers = #tpu.dot_dimension_numbers<[1], [0], [0], [1], [0, 0, 1, 1], [], []>} : vector<8x16xbf16>, vector<16x16xbf16>, vector<8x16xf32> -> vector<8x16xf32>
    %55 = arith.addf %53, %54 : vector<8x16xf32>
    %56 = arith.negf %55 : vector<8x16xf32>
    %57 = math.exp %56 : vector<8x16xf32>
    %cst_52 = arith.constant 1.000000e+00 : f32
    %58 = vector.broadcast %cst_52 : f32 to vector<8x16xf32>
    %59 = arith.addf %58, %57 : vector<8x16xf32>
    %60 = arith.divf %58, %59 : vector<8x16xf32>
    %61 = arith.index_cast %38 : i32 to index
    %c0_53 = arith.constant 0 : index
    %c0_54 = arith.constant 0 : index
    %62 = vector.load %arg8[%61, %c0_53, %c0_54] : memref<8x8x16xf32, #tpu.memory_space<vmem>>, vector<1x8x16xf32>
    %63 = vector.shape_cast %62 : vector<1x8x16xf32> to vector<8x16xf32>
    %cst_55 = arith.constant dense<0.000000e+00> : vector<8x16xf32>
    %64 = tpu.matmul %40, %30, %cst_55 {dimension_numbers = #tpu.dot_dimension_numbers<[1], [0], [0], [1], [0, 0, 1, 1], [], []>} : vector<8x16xbf16>, vector<16x16xbf16>, vector<8x16xf32> -> vector<8x16xf32>
    %65 = arith.addf %63, %64 : vector<8x16xf32>
    %66 = math.tanh %65 : vector<8x16xf32>
    %67 = arith.index_cast %38 : i32 to index
    %c0_56 = arith.constant 0 : index
    %c0_57 = arith.constant 0 : index
    %68 = vector.load %arg9[%67, %c0_56, %c0_57] : memref<8x8x16xf32, #tpu.memory_space<vmem>>, vector<1x8x16xf32>
    %69 = vector.shape_cast %68 : vector<1x8x16xf32> to vector<8x16xf32>
    %cst_58 = arith.constant dense<0.000000e+00> : vector<8x16xf32>
    %70 = tpu.matmul %40, %32, %cst_58 {dimension_numbers = #tpu.dot_dimension_numbers<[1], [0], [0], [1], [0, 0, 1, 1], [], []>} : vector<8x16xbf16>, vector<16x16xbf16>, vector<8x16xf32> -> vector<8x16xf32>
    %71 = arith.addf %69, %70 : vector<8x16xf32>
    %72 = arith.negf %71 : vector<8x16xf32>
    %73 = math.exp %72 : vector<8x16xf32>
    %cst_59 = arith.constant 1.000000e+00 : f32
    %74 = vector.broadcast %cst_59 : f32 to vector<8x16xf32>
    %75 = arith.addf %74, %73 : vector<8x16xf32>
    %76 = arith.divf %74, %75 : vector<8x16xf32>
    %c0_60 = arith.constant 0 : index
    %c0_61 = arith.constant 0 : index
    %77 = vector.load %arg11[%c0_60, %c0_61] : memref<8x16xf32, #tpu.memory_space<vmem>>, vector<8x16xf32>
    %78 = arith.mulf %60, %77 : vector<8x16xf32>
    %79 = arith.mulf %50, %66 : vector<8x16xf32>
    %80 = arith.addf %78, %79 : vector<8x16xf32>
    %81 = math.tanh %80 : vector<8x16xf32>
    %82 = arith.mulf %76, %81 : vector<8x16xf32>
    %c0_62 = arith.constant 0 : index
    %c0_63 = arith.constant 0 : index
    %83 = vector.load %arg11[%c0_62, %c0_63] : memref<8x16xf32, #tpu.memory_space<vmem>>, vector<8x16xf32>
    tpu.vector_store %arg11[%c0_62, %c0_63], %80 {strides = array<i32>} : memref<8x16xf32, #tpu.memory_space<vmem>>, vector<8x16xf32>,
    %c0_64 = arith.constant 0 : index
    %c0_65 = arith.constant 0 : index
    %84 = vector.load %arg10[%c0_64, %c0_65] : memref<8x16xf32, #tpu.memory_space<vmem>>, vector<8x16xf32>
    tpu.vector_store %arg10[%c0_64, %c0_65], %82 {strides = array<i32>} : memref<8x16xf32, #tpu.memory_space<vmem>>, vector<8x16xf32>,
    %85 = arith.truncf %82 : vector<8x16xf32> to vector<8x16xbf16>
    %c0_66 = arith.constant 0 : index
    %86 = arith.index_cast %38 : i32 to index
    %c0_67 = arith.constant 0 : index
    %c0_68 = arith.constant 0 : index
    %87 = vector.load %arg5[%c0_66, %86, %c0_67, %c0_68] : memref<1x8x8x16xbf16, #tpu.memory_space<vmem>>, vector<1x1x8x16xbf16>
    %88 = vector.shape_cast %87 : vector<1x1x8x16xbf16> to vector<8x16xbf16>
    %89 = vector.shape_cast %85 : vector<8x16xbf16> to vector<1x1x8x16xbf16>
    tpu.vector_store %arg5[%c0_66, %86, %c0_67, %c0_68], %89 {strides = array<i32>} : memref<1x8x8x16xbf16, #tpu.memory_space<vmem>>, vector<1x1x8x16xbf16>,
    %c1_i32_69 = arith.constant 1 : i32
    %90 = arith.muli %36, %c1_i32_69 : i32
    %91 = arith.addi %34, %90 : i32
    %c0_70 = arith.constant 0 : index
    %c0_71 = arith.constant 0 : index
    %92 = vector.load %arg10[%c0_70, %c0_71] : memref<8x16xf32, #tpu.memory_space<vmem>>, vector<8x16xf32>
    %93 = arith.truncf %92 : vector<8x16xf32> to vector<8x16xbf16>
    %94 = arith.index_cast %91 : i32 to index
    %c0_72 = arith.constant 0 : index
    %c0_73 = arith.constant 0 : index
    %95 = vector.load %arg6[%94, %c0_72, %c0_73] : memref<8x8x16xf32, #tpu.memory_space<vmem>>, vector<1x8x16xf32>
    %96 = vector.shape_cast %95 : vector<1x8x16xf32> to vector<8x16xf32>
    %cst_74 = arith.constant dense<0.000000e+00> : vector<8x16xf32>
    %97 = tpu.matmul %93, %26, %cst_74 {dimension_numbers = #tpu.dot_dimension_numbers<[1], [0], [0], [1], [0, 0, 1, 1], [], []>} : vector<8x16xbf16>, vector<16x16xbf16>, vector<8x16xf32> -> vector<8x16xf32>
    %98 = arith.addf %96, %97 : vector<8x16xf32>
    %99 = arith.negf %98 : vector<8x16xf32>
    %100 = math.exp %99 : vector<8x16xf32>
    %cst_75 = arith.constant 1.000000e+00 : f32
    %101 = vector.broadcast %cst_75 : f32 to vector<8x16xf32>
    %102 = arith.addf %101, %100 : vector<8x16xf32>
    %103 = arith.divf %101, %102 : vector<8x16xf32>
    %104 = arith.index_cast %91 : i32 to index
    %c0_76 = arith.constant 0 : index
    %c0_77 = arith.constant 0 : index
    %105 = vector.load %arg7[%104, %c0_76, %c0_77] : memref<8x8x16xf32, #tpu.memory_space<vmem>>, vector<1x8x16xf32>
    %106 = vector.shape_cast %105 : vector<1x8x16xf32> to vector<8x16xf32>
    %cst_78 = arith.constant dense<0.000000e+00> : vector<8x16xf32>
    %107 = tpu.matmul %93, %28, %cst_78 {dimension_numbers = #tpu.dot_dimension_numbers<[1], [0], [0], [1], [0, 0, 1, 1], [], []>} : vector<8x16xbf16>, vector<16x16xbf16>, vector<8x16xf32> -> vector<8x16xf32>
    %108 = arith.addf %106, %107 : vector<8x16xf32>
    %109 = arith.negf %108 : vector<8x16xf32>
    %110 = math.exp %109 : vector<8x16xf32>
    %cst_79 = arith.constant 1.000000e+00 : f32
    %111 = vector.broadcast %cst_79 : f32 to vector<8x16xf32>
    %112 = arith.addf %111, %110 : vector<8x16xf32>
    %113 = arith.divf %111, %112 : vector<8x16xf32>
    %114 = arith.index_cast %91 : i32 to index
    %c0_80 = arith.constant 0 : index
    %c0_81 = arith.constant 0 : index
    %115 = vector.load %arg8[%114, %c0_80, %c0_81] : memref<8x8x16xf32, #tpu.memory_space<vmem>>, vector<1x8x16xf32>
    %116 = vector.shape_cast %115 : vector<1x8x16xf32> to vector<8x16xf32>
    %cst_82 = arith.constant dense<0.000000e+00> : vector<8x16xf32>
    %117 = tpu.matmul %93, %30, %cst_82 {dimension_numbers = #tpu.dot_dimension_numbers<[1], [0], [0], [1], [0, 0, 1, 1], [], []>} : vector<8x16xbf16>, vector<16x16xbf16>, vector<8x16xf32> -> vector<8x16xf32>
    %118 = arith.addf %116, %117 : vector<8x16xf32>
    %119 = math.tanh %118 : vector<8x16xf32>
    %120 = arith.index_cast %91 : i32 to index
    %c0_83 = arith.constant 0 : index
    %c0_84 = arith.constant 0 : index
    %121 = vector.load %arg9[%120, %c0_83, %c0_84] : memref<8x8x16xf32, #tpu.memory_space<vmem>>, vector<1x8x16xf32>
    %122 = vector.shape_cast %121 : vector<1x8x16xf32> to vector<8x16xf32>
    %cst_85 = arith.constant dense<0.000000e+00> : vector<8x16xf32>
    %123 = tpu.matmul %93, %32, %cst_85 {dimension_numbers = #tpu.dot_dimension_numbers<[1], [0], [0], [1], [0, 0, 1, 1], [], []>} : vector<8x16xbf16>, vector<16x16xbf16>, vector<8x16xf32> -> vector<8x16xf32>
    %124 = arith.addf %122, %123 : vector<8x16xf32>
    %125 = arith.negf %124 : vector<8x16xf32>
    %126 = math.exp %125 : vector<8x16xf32>
    %cst_86 = arith.constant 1.000000e+00 : f32
    %127 = vector.broadcast %cst_86 : f32 to vector<8x16xf32>
    %128 = arith.addf %127, %126 : vector<8x16xf32>
    %129 = arith.divf %127, %128 : vector<8x16xf32>
    %c0_87 = arith.constant 0 : index
    %c0_88 = arith.constant 0 : index
    %130 = vector.load %arg11[%c0_87, %c0_88] : memref<8x16xf32, #tpu.memory_space<vmem>>, vector<8x16xf32>
    %131 = arith.mulf %113, %130 : vector<8x16xf32>
    %132 = arith.mulf %103, %119 : vector<8x16xf32>
    %133 = arith.addf %131, %132 : vector<8x16xf32>
    %134 = math.tanh %133 : vector<8x16xf32>
    %135 = arith.mulf %129, %134 : vector<8x16xf32>
    %c0_89 = arith.constant 0 : index
    %c0_90 = arith.constant 0 : index
    %136 = vector.load %arg11[%c0_89, %c0_90] : memref<8x16xf32, #tpu.memory_space<vmem>>, vector<8x16xf32>
    tpu.vector_store %arg11[%c0_89, %c0_90], %133 {strides = array<i32>} : memref<8x16xf32, #tpu.memory_space<vmem>>, vector<8x16xf32>,
    %c0_91 = arith.constant 0 : index
    %c0_92 = arith.constant 0 : index
    %137 = vector.load %arg10[%c0_91, %c0_92] : memref<8x16xf32, #tpu.memory_space<vmem>>, vector<8x16xf32>
    tpu.vector_store %arg10[%c0_91, %c0_92], %135 {strides = array<i32>} : memref<8x16xf32, #tpu.memory_space<vmem>>, vector<8x16xf32>,
    %138 = arith.truncf %135 : vector<8x16xf32> to vector<8x16xbf16>
    %c0_93 = arith.constant 0 : index
    %139 = arith.index_cast %91 : i32 to index
    %c0_94 = arith.constant 0 : index
    %c0_95 = arith.constant 0 : index
    %140 = vector.load %arg5[%c0_93, %139, %c0_94, %c0_95] : memref<1x8x8x16xbf16, #tpu.memory_space<vmem>>, vector<1x1x8x16xbf16>
    %141 = vector.shape_cast %140 : vector<1x1x8x16xbf16> to vector<8x16xbf16>
    %142 = vector.shape_cast %138 : vector<8x16xbf16> to vector<1x1x8x16xbf16>
    tpu.vector_store %arg5[%c0_93, %139, %c0_94, %c0_95], %142 {strides = array<i32>} : memref<1x8x8x16xbf16, #tpu.memory_space<vmem>>, vector<1x1x8x16xbf16>,
    %c2_i32 = arith.constant 2 : i32
    %143 = arith.muli %36, %c2_i32 : i32
    %144 = arith.addi %34, %143 : i32
    %c0_96 = arith.constant 0 : index
    %c0_97 = arith.constant 0 : index
    %145 = vector.load %arg10[%c0_96, %c0_97] : memref<8x16xf32, #tpu.memory_space<vmem>>, vector<8x16xf32>
    %146 = arith.truncf %145 : vector<8x16xf32> to vector<8x16xbf16>
    %147 = arith.index_cast %144 : i32 to index
    %c0_98 = arith.constant 0 : index
    %c0_99 = arith.constant 0 : index
    %148 = vector.load %arg6[%147, %c0_98, %c0_99] : memref<8x8x16xf32, #tpu.memory_space<vmem>>, vector<1x8x16xf32>
    %149 = vector.shape_cast %148 : vector<1x8x16xf32> to vector<8x16xf32>
    %cst_100 = arith.constant dense<0.000000e+00> : vector<8x16xf32>
    %150 = tpu.matmul %146, %26, %cst_100 {dimension_numbers = #tpu.dot_dimension_numbers<[1], [0], [0], [1], [0, 0, 1, 1], [], []>} : vector<8x16xbf16>, vector<16x16xbf16>, vector<8x16xf32> -> vector<8x16xf32>
    %151 = arith.addf %149, %150 : vector<8x16xf32>
    %152 = arith.negf %151 : vector<8x16xf32>
    %153 = math.exp %152 : vector<8x16xf32>
    %cst_101 = arith.constant 1.000000e+00 : f32
    %154 = vector.broadcast %cst_101 : f32 to vector<8x16xf32>
    %155 = arith.addf %154, %153 : vector<8x16xf32>
    %156 = arith.divf %154, %155 : vector<8x16xf32>
    %157 = arith.index_cast %144 : i32 to index
    %c0_102 = arith.constant 0 : index
    %c0_103 = arith.constant 0 : index
    %158 = vector.load %arg7[%157, %c0_102, %c0_103] : memref<8x8x16xf32, #tpu.memory_space<vmem>>, vector<1x8x16xf32>
    %159 = vector.shape_cast %158 : vector<1x8x16xf32> to vector<8x16xf32>
    %cst_104 = arith.constant dense<0.000000e+00> : vector<8x16xf32>
    %160 = tpu.matmul %146, %28, %cst_104 {dimension_numbers = #tpu.dot_dimension_numbers<[1], [0], [0], [1], [0, 0, 1, 1], [], []>} : vector<8x16xbf16>, vector<16x16xbf16>, vector<8x16xf32> -> vector<8x16xf32>
    %161 = arith.addf %159, %160 : vector<8x16xf32>
    %162 = arith.negf %161 : vector<8x16xf32>
    %163 = math.exp %162 : vector<8x16xf32>
    %cst_105 = arith.constant 1.000000e+00 : f32
    %164 = vector.broadcast %cst_105 : f32 to vector<8x16xf32>
    %165 = arith.addf %164, %163 : vector<8x16xf32>
    %166 = arith.divf %164, %165 : vector<8x16xf32>
    %167 = arith.index_cast %144 : i32 to index
    %c0_106 = arith.constant 0 : index
    %c0_107 = arith.constant 0 : index
    %168 = vector.load %arg8[%167, %c0_106, %c0_107] : memref<8x8x16xf32, #tpu.memory_space<vmem>>, vector<1x8x16xf32>
    %169 = vector.shape_cast %168 : vector<1x8x16xf32> to vector<8x16xf32>
    %cst_108 = arith.constant dense<0.000000e+00> : vector<8x16xf32>
    %170 = tpu.matmul %146, %30, %cst_108 {dimension_numbers = #tpu.dot_dimension_numbers<[1], [0], [0], [1], [0, 0, 1, 1], [], []>} : vector<8x16xbf16>, vector<16x16xbf16>, vector<8x16xf32> -> vector<8x16xf32>
    %171 = arith.addf %169, %170 : vector<8x16xf32>
    %172 = math.tanh %171 : vector<8x16xf32>
    %173 = arith.index_cast %144 : i32 to index
    %c0_109 = arith.constant 0 : index
    %c0_110 = arith.constant 0 : index
    %174 = vector.load %arg9[%173, %c0_109, %c0_110] : memref<8x8x16xf32, #tpu.memory_space<vmem>>, vector<1x8x16xf32>
    %175 = vector.shape_cast %174 : vector<1x8x16xf32> to vector<8x16xf32>
    %cst_111 = arith.constant dense<0.000000e+00> : vector<8x16xf32>
    %176 = tpu.matmul %146, %32, %cst_111 {dimension_numbers = #tpu.dot_dimension_numbers<[1], [0], [0], [1], [0, 0, 1, 1], [], []>} : vector<8x16xbf16>, vector<16x16xbf16>, vector<8x16xf32> -> vector<8x16xf32>
    %177 = arith.addf %175, %176 : vector<8x16xf32>
    %178 = arith.negf %177 : vector<8x16xf32>
    %179 = math.exp %178 : vector<8x16xf32>
    %cst_112 = arith.constant 1.000000e+00 : f32
    %180 = vector.broadcast %cst_112 : f32 to vector<8x16xf32>
    %181 = arith.addf %180, %179 : vector<8x16xf32>
    %182 = arith.divf %180, %181 : vector<8x16xf32>
    %c0_113 = arith.constant 0 : index
    %c0_114 = arith.constant 0 : index
    %183 = vector.load %arg11[%c0_113, %c0_114] : memref<8x16xf32, #tpu.memory_space<vmem>>, vector<8x16xf32>
    %184 = arith.mulf %166, %183 : vector<8x16xf32>
    %185 = arith.mulf %156, %172 : vector<8x16xf32>
    %186 = arith.addf %184, %185 : vector<8x16xf32>
    %187 = math.tanh %186 : vector<8x16xf32>
    %188 = arith.mulf %182, %187 : vector<8x16xf32>
    %c0_115 = arith.constant 0 : index
    %c0_116 = arith.constant 0 : index
    %189 = vector.load %arg11[%c0_115, %c0_116] : memref<8x16xf32, #tpu.memory_space<vmem>>, vector<8x16xf32>
    tpu.vector_store %arg11[%c0_115, %c0_116], %186 {strides = array<i32>} : memref<8x16xf32, #tpu.memory_space<vmem>>, vector<8x16xf32>,
    %c0_117 = arith.constant 0 : index
    %c0_118 = arith.constant 0 : index
    %190 = vector.load %arg10[%c0_117, %c0_118] : memref<8x16xf32, #tpu.memory_space<vmem>>, vector<8x16xf32>
    tpu.vector_store %arg10[%c0_117, %c0_118], %188 {strides = array<i32>} : memref<8x16xf32, #tpu.memory_space<vmem>>, vector<8x16xf32>,
    %191 = arith.truncf %188 : vector<8x16xf32> to vector<8x16xbf16>
    %c0_119 = arith.constant 0 : index
    %192 = arith.index_cast %144 : i32 to index
    %c0_120 = arith.constant 0 : index
    %c0_121 = arith.constant 0 : index
    %193 = vector.load %arg5[%c0_119, %192, %c0_120, %c0_121] : memref<1x8x8x16xbf16, #tpu.memory_space<vmem>>, vector<1x1x8x16xbf16>
    %194 = vector.shape_cast %193 : vector<1x1x8x16xbf16> to vector<8x16xbf16>
    %195 = vector.shape_cast %191 : vector<8x16xbf16> to vector<1x1x8x16xbf16>
    tpu.vector_store %arg5[%c0_119, %192, %c0_120, %c0_121], %195 {strides = array<i32>} : memref<1x8x8x16xbf16, #tpu.memory_space<vmem>>, vector<1x1x8x16xbf16>,
    %c3_i32 = arith.constant 3 : i32
    %196 = arith.muli %36, %c3_i32 : i32
    %197 = arith.addi %34, %196 : i32
    %c0_122 = arith.constant 0 : index
    %c0_123 = arith.constant 0 : index
    %198 = vector.load %arg10[%c0_122, %c0_123] : memref<8x16xf32, #tpu.memory_space<vmem>>, vector<8x16xf32>
    %199 = arith.truncf %198 : vector<8x16xf32> to vector<8x16xbf16>
    %200 = arith.index_cast %197 : i32 to index
    %c0_124 = arith.constant 0 : index
    %c0_125 = arith.constant 0 : index
    %201 = vector.load %arg6[%200, %c0_124, %c0_125] : memref<8x8x16xf32, #tpu.memory_space<vmem>>, vector<1x8x16xf32>
    %202 = vector.shape_cast %201 : vector<1x8x16xf32> to vector<8x16xf32>
    %cst_126 = arith.constant dense<0.000000e+00> : vector<8x16xf32>
    %203 = tpu.matmul %199, %26, %cst_126 {dimension_numbers = #tpu.dot_dimension_numbers<[1], [0], [0], [1], [0, 0, 1, 1], [], []>} : vector<8x16xbf16>, vector<16x16xbf16>, vector<8x16xf32> -> vector<8x16xf32>
    %204 = arith.addf %202, %203 : vector<8x16xf32>
    %205 = arith.negf %204 : vector<8x16xf32>
    %206 = math.exp %205 : vector<8x16xf32>
    %cst_127 = arith.constant 1.000000e+00 : f32
    %207 = vector.broadcast %cst_127 : f32 to vector<8x16xf32>
    %208 = arith.addf %207, %206 : vector<8x16xf32>
    %209 = arith.divf %207, %208 : vector<8x16xf32>
    %210 = arith.index_cast %197 : i32 to index
    %c0_128 = arith.constant 0 : index
    %c0_129 = arith.constant 0 : index
    %211 = vector.load %arg7[%210, %c0_128, %c0_129] : memref<8x8x16xf32, #tpu.memory_space<vmem>>, vector<1x8x16xf32>
    %212 = vector.shape_cast %211 : vector<1x8x16xf32> to vector<8x16xf32>
    %cst_130 = arith.constant dense<0.000000e+00> : vector<8x16xf32>
    %213 = tpu.matmul %199, %28, %cst_130 {dimension_numbers = #tpu.dot_dimension_numbers<[1], [0], [0], [1], [0, 0, 1, 1], [], []>} : vector<8x16xbf16>, vector<16x16xbf16>, vector<8x16xf32> -> vector<8x16xf32>
    %214 = arith.addf %212, %213 : vector<8x16xf32>
    %215 = arith.negf %214 : vector<8x16xf32>
    %216 = math.exp %215 : vector<8x16xf32>
    %cst_131 = arith.constant 1.000000e+00 : f32
    %217 = vector.broadcast %cst_131 : f32 to vector<8x16xf32>
    %218 = arith.addf %217, %216 : vector<8x16xf32>
    %219 = arith.divf %217, %218 : vector<8x16xf32>
    %220 = arith.index_cast %197 : i32 to index
    %c0_132 = arith.constant 0 : index
    %c0_133 = arith.constant 0 : index
    %221 = vector.load %arg8[%220, %c0_132, %c0_133] : memref<8x8x16xf32, #tpu.memory_space<vmem>>, vector<1x8x16xf32>
    %222 = vector.shape_cast %221 : vector<1x8x16xf32> to vector<8x16xf32>
    %cst_134 = arith.constant dense<0.000000e+00> : vector<8x16xf32>
    %223 = tpu.matmul %199, %30, %cst_134 {dimension_numbers = #tpu.dot_dimension_numbers<[1], [0], [0], [1], [0, 0, 1, 1], [], []>} : vector<8x16xbf16>, vector<16x16xbf16>, vector<8x16xf32> -> vector<8x16xf32>
    %224 = arith.addf %222, %223 : vector<8x16xf32>
    %225 = math.tanh %224 : vector<8x16xf32>
    %226 = arith.index_cast %197 : i32 to index
    %c0_135 = arith.constant 0 : index
    %c0_136 = arith.constant 0 : index
    %227 = vector.load %arg9[%226, %c0_135, %c0_136] : memref<8x8x16xf32, #tpu.memory_space<vmem>>, vector<1x8x16xf32>
    %228 = vector.shape_cast %227 : vector<1x8x16xf32> to vector<8x16xf32>
    %cst_137 = arith.constant dense<0.000000e+00> : vector<8x16xf32>
    %229 = tpu.matmul %199, %32, %cst_137 {dimension_numbers = #tpu.dot_dimension_numbers<[1], [0], [0], [1], [0, 0, 1, 1], [], []>} : vector<8x16xbf16>, vector<16x16xbf16>, vector<8x16xf32> -> vector<8x16xf32>
    %230 = arith.addf %228, %229 : vector<8x16xf32>
    %231 = arith.negf %230 : vector<8x16xf32>
    %232 = math.exp %231 : vector<8x16xf32>
    %cst_138 = arith.constant 1.000000e+00 : f32
    %233 = vector.broadcast %cst_138 : f32 to vector<8x16xf32>
    %234 = arith.addf %233, %232 : vector<8x16xf32>
    %235 = arith.divf %233, %234 : vector<8x16xf32>
    %c0_139 = arith.constant 0 : index
    %c0_140 = arith.constant 0 : index
    %236 = vector.load %arg11[%c0_139, %c0_140] : memref<8x16xf32, #tpu.memory_space<vmem>>, vector<8x16xf32>
    %237 = arith.mulf %219, %236 : vector<8x16xf32>
    %238 = arith.mulf %209, %225 : vector<8x16xf32>
    %239 = arith.addf %237, %238 : vector<8x16xf32>
    %240 = math.tanh %239 : vector<8x16xf32>
    %241 = arith.mulf %235, %240 : vector<8x16xf32>
    %c0_141 = arith.constant 0 : index
    %c0_142 = arith.constant 0 : index
    %242 = vector.load %arg11[%c0_141, %c0_142] : memref<8x16xf32, #tpu.memory_space<vmem>>, vector<8x16xf32>
    tpu.vector_store %arg11[%c0_141, %c0_142], %239 {strides = array<i32>} : memref<8x16xf32, #tpu.memory_space<vmem>>, vector<8x16xf32>,
    %c0_143 = arith.constant 0 : index
    %c0_144 = arith.constant 0 : index
    %243 = vector.load %arg10[%c0_143, %c0_144] : memref<8x16xf32, #tpu.memory_space<vmem>>, vector<8x16xf32>
    tpu.vector_store %arg10[%c0_143, %c0_144], %241 {strides = array<i32>} : memref<8x16xf32, #tpu.memory_space<vmem>>, vector<8x16xf32>,
    %244 = arith.truncf %241 : vector<8x16xf32> to vector<8x16xbf16>
    %c0_145 = arith.constant 0 : index
    %245 = arith.index_cast %197 : i32 to index
    %c0_146 = arith.constant 0 : index
    %c0_147 = arith.constant 0 : index
    %246 = vector.load %arg5[%c0_145, %245, %c0_146, %c0_147] : memref<1x8x8x16xbf16, #tpu.memory_space<vmem>>, vector<1x1x8x16xbf16>
    %247 = vector.shape_cast %246 : vector<1x1x8x16xbf16> to vector<8x16xbf16>
    %248 = vector.shape_cast %244 : vector<8x16xbf16> to vector<1x1x8x16xbf16>
    tpu.vector_store %arg5[%c0_145, %245, %c0_146, %c0_147], %248 {strides = array<i32>} : memref<1x8x8x16xbf16, #tpu.memory_space<vmem>>, vector<1x1x8x16xbf16>,
    %c4_i32 = arith.constant 4 : i32
    %249 = arith.muli %36, %c4_i32 : i32
    %250 = arith.addi %34, %249 : i32
    %c0_148 = arith.constant 0 : index
    %c0_149 = arith.constant 0 : index
    %251 = vector.load %arg10[%c0_148, %c0_149] : memref<8x16xf32, #tpu.memory_space<vmem>>, vector<8x16xf32>
    %252 = arith.truncf %251 : vector<8x16xf32> to vector<8x16xbf16>
    %253 = arith.index_cast %250 : i32 to index
    %c0_150 = arith.constant 0 : index
    %c0_151 = arith.constant 0 : index
    %254 = vector.load %arg6[%253, %c0_150, %c0_151] : memref<8x8x16xf32, #tpu.memory_space<vmem>>, vector<1x8x16xf32>
    %255 = vector.shape_cast %254 : vector<1x8x16xf32> to vector<8x16xf32>
    %cst_152 = arith.constant dense<0.000000e+00> : vector<8x16xf32>
    %256 = tpu.matmul %252, %26, %cst_152 {dimension_numbers = #tpu.dot_dimension_numbers<[1], [0], [0], [1], [0, 0, 1, 1], [], []>} : vector<8x16xbf16>, vector<16x16xbf16>, vector<8x16xf32> -> vector<8x16xf32>
    %257 = arith.addf %255, %256 : vector<8x16xf32>
    %258 = arith.negf %257 : vector<8x16xf32>
    %259 = math.exp %258 : vector<8x16xf32>
    %cst_153 = arith.constant 1.000000e+00 : f32
    %260 = vector.broadcast %cst_153 : f32 to vector<8x16xf32>
    %261 = arith.addf %260, %259 : vector<8x16xf32>
    %262 = arith.divf %260, %261 : vector<8x16xf32>
    %263 = arith.index_cast %250 : i32 to index
    %c0_154 = arith.constant 0 : index
    %c0_155 = arith.constant 0 : index
    %264 = vector.load %arg7[%263, %c0_154, %c0_155] : memref<8x8x16xf32, #tpu.memory_space<vmem>>, vector<1x8x16xf32>
    %265 = vector.shape_cast %264 : vector<1x8x16xf32> to vector<8x16xf32>
    %cst_156 = arith.constant dense<0.000000e+00> : vector<8x16xf32>
    %266 = tpu.matmul %252, %28, %cst_156 {dimension_numbers = #tpu.dot_dimension_numbers<[1], [0], [0], [1], [0, 0, 1, 1], [], []>} : vector<8x16xbf16>, vector<16x16xbf16>, vector<8x16xf32> -> vector<8x16xf32>
    %267 = arith.addf %265, %266 : vector<8x16xf32>
    %268 = arith.negf %267 : vector<8x16xf32>
    %269 = math.exp %268 : vector<8x16xf32>
    %cst_157 = arith.constant 1.000000e+00 : f32
    %270 = vector.broadcast %cst_157 : f32 to vector<8x16xf32>
    %271 = arith.addf %270, %269 : vector<8x16xf32>
    %272 = arith.divf %270, %271 : vector<8x16xf32>
    %273 = arith.index_cast %250 : i32 to index
    %c0_158 = arith.constant 0 : index
    %c0_159 = arith.constant 0 : index
    %274 = vector.load %arg8[%273, %c0_158, %c0_159] : memref<8x8x16xf32, #tpu.memory_space<vmem>>, vector<1x8x16xf32>
    %275 = vector.shape_cast %274 : vector<1x8x16xf32> to vector<8x16xf32>
    %cst_160 = arith.constant dense<0.000000e+00> : vector<8x16xf32>
    %276 = tpu.matmul %252, %30, %cst_160 {dimension_numbers = #tpu.dot_dimension_numbers<[1], [0], [0], [1], [0, 0, 1, 1], [], []>} : vector<8x16xbf16>, vector<16x16xbf16>, vector<8x16xf32> -> vector<8x16xf32>
    %277 = arith.addf %275, %276 : vector<8x16xf32>
    %278 = math.tanh %277 : vector<8x16xf32>
    %279 = arith.index_cast %250 : i32 to index
    %c0_161 = arith.constant 0 : index
    %c0_162 = arith.constant 0 : index
    %280 = vector.load %arg9[%279, %c0_161, %c0_162] : memref<8x8x16xf32, #tpu.memory_space<vmem>>, vector<1x8x16xf32>
    %281 = vector.shape_cast %280 : vector<1x8x16xf32> to vector<8x16xf32>
    %cst_163 = arith.constant dense<0.000000e+00> : vector<8x16xf32>
    %282 = tpu.matmul %252, %32, %cst_163 {dimension_numbers = #tpu.dot_dimension_numbers<[1], [0], [0], [1], [0, 0, 1, 1], [], []>} : vector<8x16xbf16>, vector<16x16xbf16>, vector<8x16xf32> -> vector<8x16xf32>
    %283 = arith.addf %281, %282 : vector<8x16xf32>
    %284 = arith.negf %283 : vector<8x16xf32>
    %285 = math.exp %284 : vector<8x16xf32>
    %cst_164 = arith.constant 1.000000e+00 : f32
    %286 = vector.broadcast %cst_164 : f32 to vector<8x16xf32>
    %287 = arith.addf %286, %285 : vector<8x16xf32>
    %288 = arith.divf %286, %287 : vector<8x16xf32>
    %c0_165 = arith.constant 0 : index
    %c0_166 = arith.constant 0 : index
    %289 = vector.load %arg11[%c0_165, %c0_166] : memref<8x16xf32, #tpu.memory_space<vmem>>, vector<8x16xf32>
    %290 = arith.mulf %272, %289 : vector<8x16xf32>
    %291 = arith.mulf %262, %278 : vector<8x16xf32>
    %292 = arith.addf %290, %291 : vector<8x16xf32>
    %293 = math.tanh %292 : vector<8x16xf32>
    %294 = arith.mulf %288, %293 : vector<8x16xf32>
    %c0_167 = arith.constant 0 : index
    %c0_168 = arith.constant 0 : index
    %295 = vector.load %arg11[%c0_167, %c0_168] : memref<8x16xf32, #tpu.memory_space<vmem>>, vector<8x16xf32>
    tpu.vector_store %arg11[%c0_167, %c0_168], %292 {strides = array<i32>} : memref<8x16xf32, #tpu.memory_space<vmem>>, vector<8x16xf32>,
    %c0_169 = arith.constant 0 : index
    %c0_170 = arith.constant 0 : index
    %296 = vector.load %arg10[%c0_169, %c0_170] : memref<8x16xf32, #tpu.memory_space<vmem>>, vector<8x16xf32>
    tpu.vector_store %arg10[%c0_169, %c0_170], %294 {strides = array<i32>} : memref<8x16xf32, #tpu.memory_space<vmem>>, vector<8x16xf32>,
    %297 = arith.truncf %294 : vector<8x16xf32> to vector<8x16xbf16>
    %c0_171 = arith.constant 0 : index
    %298 = arith.index_cast %250 : i32 to index
    %c0_172 = arith.constant 0 : index
    %c0_173 = arith.constant 0 : index
    %299 = vector.load %arg5[%c0_171, %298, %c0_172, %c0_173] : memref<1x8x8x16xbf16, #tpu.memory_space<vmem>>, vector<1x1x8x16xbf16>
    %300 = vector.shape_cast %299 : vector<1x1x8x16xbf16> to vector<8x16xbf16>
    %301 = vector.shape_cast %297 : vector<8x16xbf16> to vector<1x1x8x16xbf16>
    tpu.vector_store %arg5[%c0_171, %298, %c0_172, %c0_173], %301 {strides = array<i32>} : memref<1x8x8x16xbf16, #tpu.memory_space<vmem>>, vector<1x1x8x16xbf16>,
    %c5_i32 = arith.constant 5 : i32
    %302 = arith.muli %36, %c5_i32 : i32
    %303 = arith.addi %34, %302 : i32
    %c0_174 = arith.constant 0 : index
    %c0_175 = arith.constant 0 : index
    %304 = vector.load %arg10[%c0_174, %c0_175] : memref<8x16xf32, #tpu.memory_space<vmem>>, vector<8x16xf32>
    %305 = arith.truncf %304 : vector<8x16xf32> to vector<8x16xbf16>
    %306 = arith.index_cast %303 : i32 to index
    %c0_176 = arith.constant 0 : index
    %c0_177 = arith.constant 0 : index
    %307 = vector.load %arg6[%306, %c0_176, %c0_177] : memref<8x8x16xf32, #tpu.memory_space<vmem>>, vector<1x8x16xf32>
    %308 = vector.shape_cast %307 : vector<1x8x16xf32> to vector<8x16xf32>
    %cst_178 = arith.constant dense<0.000000e+00> : vector<8x16xf32>
    %309 = tpu.matmul %305, %26, %cst_178 {dimension_numbers = #tpu.dot_dimension_numbers<[1], [0], [0], [1], [0, 0, 1, 1], [], []>} : vector<8x16xbf16>, vector<16x16xbf16>, vector<8x16xf32> -> vector<8x16xf32>
    %310 = arith.addf %308, %309 : vector<8x16xf32>
    %311 = arith.negf %310 : vector<8x16xf32>
    %312 = math.exp %311 : vector<8x16xf32>
    %cst_179 = arith.constant 1.000000e+00 : f32
    %313 = vector.broadcast %cst_179 : f32 to vector<8x16xf32>
    %314 = arith.addf %313, %312 : vector<8x16xf32>
    %315 = arith.divf %313, %314 : vector<8x16xf32>
    %316 = arith.index_cast %303 : i32 to index
    %c0_180 = arith.constant 0 : index
    %c0_181 = arith.constant 0 : index
    %317 = vector.load %arg7[%316, %c0_180, %c0_181] : memref<8x8x16xf32, #tpu.memory_space<vmem>>, vector<1x8x16xf32>
    %318 = vector.shape_cast %317 : vector<1x8x16xf32> to vector<8x16xf32>
    %cst_182 = arith.constant dense<0.000000e+00> : vector<8x16xf32>
    %319 = tpu.matmul %305, %28, %cst_182 {dimension_numbers = #tpu.dot_dimension_numbers<[1], [0], [0], [1], [0, 0, 1, 1], [], []>} : vector<8x16xbf16>, vector<16x16xbf16>, vector<8x16xf32> -> vector<8x16xf32>
    %320 = arith.addf %318, %319 : vector<8x16xf32>
    %321 = arith.negf %320 : vector<8x16xf32>
    %322 = math.exp %321 : vector<8x16xf32>
    %cst_183 = arith.constant 1.000000e+00 : f32
    %323 = vector.broadcast %cst_183 : f32 to vector<8x16xf32>
    %324 = arith.addf %323, %322 : vector<8x16xf32>
    %325 = arith.divf %323, %324 : vector<8x16xf32>
    %326 = arith.index_cast %303 : i32 to index
    %c0_184 = arith.constant 0 : index
    %c0_185 = arith.constant 0 : index
    %327 = vector.load %arg8[%326, %c0_184, %c0_185] : memref<8x8x16xf32, #tpu.memory_space<vmem>>, vector<1x8x16xf32>
    %328 = vector.shape_cast %327 : vector<1x8x16xf32> to vector<8x16xf32>
    %cst_186 = arith.constant dense<0.000000e+00> : vector<8x16xf32>
    %329 = tpu.matmul %305, %30, %cst_186 {dimension_numbers = #tpu.dot_dimension_numbers<[1], [0], [0], [1], [0, 0, 1, 1], [], []>} : vector<8x16xbf16>, vector<16x16xbf16>, vector<8x16xf32> -> vector<8x16xf32>
    %330 = arith.addf %328, %329 : vector<8x16xf32>
    %331 = math.tanh %330 : vector<8x16xf32>
    %332 = arith.index_cast %303 : i32 to index
    %c0_187 = arith.constant 0 : index
    %c0_188 = arith.constant 0 : index
    %333 = vector.load %arg9[%332, %c0_187, %c0_188] : memref<8x8x16xf32, #tpu.memory_space<vmem>>, vector<1x8x16xf32>
    %334 = vector.shape_cast %333 : vector<1x8x16xf32> to vector<8x16xf32>
    %cst_189 = arith.constant dense<0.000000e+00> : vector<8x16xf32>
    %335 = tpu.matmul %305, %32, %cst_189 {dimension_numbers = #tpu.dot_dimension_numbers<[1], [0], [0], [1], [0, 0, 1, 1], [], []>} : vector<8x16xbf16>, vector<16x16xbf16>, vector<8x16xf32> -> vector<8x16xf32>
    %336 = arith.addf %334, %335 : vector<8x16xf32>
    %337 = arith.negf %336 : vector<8x16xf32>
    %338 = math.exp %337 : vector<8x16xf32>
    %cst_190 = arith.constant 1.000000e+00 : f32
    %339 = vector.broadcast %cst_190 : f32 to vector<8x16xf32>
    %340 = arith.addf %339, %338 : vector<8x16xf32>
    %341 = arith.divf %339, %340 : vector<8x16xf32>
    %c0_191 = arith.constant 0 : index
    %c0_192 = arith.constant 0 : index
    %342 = vector.load %arg11[%c0_191, %c0_192] : memref<8x16xf32, #tpu.memory_space<vmem>>, vector<8x16xf32>
    %343 = arith.mulf %325, %342 : vector<8x16xf32>
    %344 = arith.mulf %315, %331 : vector<8x16xf32>
    %345 = arith.addf %343, %344 : vector<8x16xf32>
    %346 = math.tanh %345 : vector<8x16xf32>
    %347 = arith.mulf %341, %346 : vector<8x16xf32>
    %c0_193 = arith.constant 0 : index
    %c0_194 = arith.constant 0 : index
    %348 = vector.load %arg11[%c0_193, %c0_194] : memref<8x16xf32, #tpu.memory_space<vmem>>, vector<8x16xf32>
    tpu.vector_store %arg11[%c0_193, %c0_194], %345 {strides = array<i32>} : memref<8x16xf32, #tpu.memory_space<vmem>>, vector<8x16xf32>,
    %c0_195 = arith.constant 0 : index
    %c0_196 = arith.constant 0 : index
    %349 = vector.load %arg10[%c0_195, %c0_196] : memref<8x16xf32, #tpu.memory_space<vmem>>, vector<8x16xf32>
    tpu.vector_store %arg10[%c0_195, %c0_196], %347 {strides = array<i32>} : memref<8x16xf32, #tpu.memory_space<vmem>>, vector<8x16xf32>,
    %350 = arith.truncf %347 : vector<8x16xf32> to vector<8x16xbf16>
    %c0_197 = arith.constant 0 : index
    %351 = arith.index_cast %303 : i32 to index
    %c0_198 = arith.constant 0 : index
    %c0_199 = arith.constant 0 : index
    %352 = vector.load %arg5[%c0_197, %351, %c0_198, %c0_199] : memref<1x8x8x16xbf16, #tpu.memory_space<vmem>>, vector<1x1x8x16xbf16>
    %353 = vector.shape_cast %352 : vector<1x1x8x16xbf16> to vector<8x16xbf16>
    %354 = vector.shape_cast %350 : vector<8x16xbf16> to vector<1x1x8x16xbf16>
    tpu.vector_store %arg5[%c0_197, %351, %c0_198, %c0_199], %354 {strides = array<i32>} : memref<1x8x8x16xbf16, #tpu.memory_space<vmem>>, vector<1x1x8x16xbf16>,
    %c6_i32 = arith.constant 6 : i32
    %355 = arith.muli %36, %c6_i32 : i32
    %356 = arith.addi %34, %355 : i32
    %c0_200 = arith.constant 0 : index
    %c0_201 = arith.constant 0 : index
    %357 = vector.load %arg10[%c0_200, %c0_201] : memref<8x16xf32, #tpu.memory_space<vmem>>, vector<8x16xf32>
    %358 = arith.truncf %357 : vector<8x16xf32> to vector<8x16xbf16>
    %359 = arith.index_cast %356 : i32 to index
    %c0_202 = arith.constant 0 : index
    %c0_203 = arith.constant 0 : index
    %360 = vector.load %arg6[%359, %c0_202, %c0_203] : memref<8x8x16xf32, #tpu.memory_space<vmem>>, vector<1x8x16xf32>
    %361 = vector.shape_cast %360 : vector<1x8x16xf32> to vector<8x16xf32>
    %cst_204 = arith.constant dense<0.000000e+00> : vector<8x16xf32>
    %362 = tpu.matmul %358, %26, %cst_204 {dimension_numbers = #tpu.dot_dimension_numbers<[1], [0], [0], [1], [0, 0, 1, 1], [], []>} : vector<8x16xbf16>, vector<16x16xbf16>, vector<8x16xf32> -> vector<8x16xf32>
    %363 = arith.addf %361, %362 : vector<8x16xf32>
    %364 = arith.negf %363 : vector<8x16xf32>
    %365 = math.exp %364 : vector<8x16xf32>
    %cst_205 = arith.constant 1.000000e+00 : f32
    %366 = vector.broadcast %cst_205 : f32 to vector<8x16xf32>
    %367 = arith.addf %366, %365 : vector<8x16xf32>
    %368 = arith.divf %366, %367 : vector<8x16xf32>
    %369 = arith.index_cast %356 : i32 to index
    %c0_206 = arith.constant 0 : index
    %c0_207 = arith.constant 0 : index
    %370 = vector.load %arg7[%369, %c0_206, %c0_207] : memref<8x8x16xf32, #tpu.memory_space<vmem>>, vector<1x8x16xf32>
    %371 = vector.shape_cast %370 : vector<1x8x16xf32> to vector<8x16xf32>
    %cst_208 = arith.constant dense<0.000000e+00> : vector<8x16xf32>
    %372 = tpu.matmul %358, %28, %cst_208 {dimension_numbers = #tpu.dot_dimension_numbers<[1], [0], [0], [1], [0, 0, 1, 1], [], []>} : vector<8x16xbf16>, vector<16x16xbf16>, vector<8x16xf32> -> vector<8x16xf32>
    %373 = arith.addf %371, %372 : vector<8x16xf32>
    %374 = arith.negf %373 : vector<8x16xf32>
    %375 = math.exp %374 : vector<8x16xf32>
    %cst_209 = arith.constant 1.000000e+00 : f32
    %376 = vector.broadcast %cst_209 : f32 to vector<8x16xf32>
    %377 = arith.addf %376, %375 : vector<8x16xf32>
    %378 = arith.divf %376, %377 : vector<8x16xf32>
    %379 = arith.index_cast %356 : i32 to index
    %c0_210 = arith.constant 0 : index
    %c0_211 = arith.constant 0 : index
    %380 = vector.load %arg8[%379, %c0_210, %c0_211] : memref<8x8x16xf32, #tpu.memory_space<vmem>>, vector<1x8x16xf32>
    %381 = vector.shape_cast %380 : vector<1x8x16xf32> to vector<8x16xf32>
    %cst_212 = arith.constant dense<0.000000e+00> : vector<8x16xf32>
    %382 = tpu.matmul %358, %30, %cst_212 {dimension_numbers = #tpu.dot_dimension_numbers<[1], [0], [0], [1], [0, 0, 1, 1], [], []>} : vector<8x16xbf16>, vector<16x16xbf16>, vector<8x16xf32> -> vector<8x16xf32>
    %383 = arith.addf %381, %382 : vector<8x16xf32>
    %384 = math.tanh %383 : vector<8x16xf32>
    %385 = arith.index_cast %356 : i32 to index
    %c0_213 = arith.constant 0 : index
    %c0_214 = arith.constant 0 : index
    %386 = vector.load %arg9[%385, %c0_213, %c0_214] : memref<8x8x16xf32, #tpu.memory_space<vmem>>, vector<1x8x16xf32>
    %387 = vector.shape_cast %386 : vector<1x8x16xf32> to vector<8x16xf32>
    %cst_215 = arith.constant dense<0.000000e+00> : vector<8x16xf32>
    %388 = tpu.matmul %358, %32, %cst_215 {dimension_numbers = #tpu.dot_dimension_numbers<[1], [0], [0], [1], [0, 0, 1, 1], [], []>} : vector<8x16xbf16>, vector<16x16xbf16>, vector<8x16xf32> -> vector<8x16xf32>
    %389 = arith.addf %387, %388 : vector<8x16xf32>
    %390 = arith.negf %389 : vector<8x16xf32>
    %391 = math.exp %390 : vector<8x16xf32>
    %cst_216 = arith.constant 1.000000e+00 : f32
    %392 = vector.broadcast %cst_216 : f32 to vector<8x16xf32>
    %393 = arith.addf %392, %391 : vector<8x16xf32>
    %394 = arith.divf %392, %393 : vector<8x16xf32>
    %c0_217 = arith.constant 0 : index
    %c0_218 = arith.constant 0 : index
    %395 = vector.load %arg11[%c0_217, %c0_218] : memref<8x16xf32, #tpu.memory_space<vmem>>, vector<8x16xf32>
    %396 = arith.mulf %378, %395 : vector<8x16xf32>
    %397 = arith.mulf %368, %384 : vector<8x16xf32>
    %398 = arith.addf %396, %397 : vector<8x16xf32>
    %399 = math.tanh %398 : vector<8x16xf32>
    %400 = arith.mulf %394, %399 : vector<8x16xf32>
    %c0_219 = arith.constant 0 : index
    %c0_220 = arith.constant 0 : index
    %401 = vector.load %arg11[%c0_219, %c0_220] : memref<8x16xf32, #tpu.memory_space<vmem>>, vector<8x16xf32>
    tpu.vector_store %arg11[%c0_219, %c0_220], %398 {strides = array<i32>} : memref<8x16xf32, #tpu.memory_space<vmem>>, vector<8x16xf32>,
    %c0_221 = arith.constant 0 : index
    %c0_222 = arith.constant 0 : index
    %402 = vector.load %arg10[%c0_221, %c0_222] : memref<8x16xf32, #tpu.memory_space<vmem>>, vector<8x16xf32>
    tpu.vector_store %arg10[%c0_221, %c0_222], %400 {strides = array<i32>} : memref<8x16xf32, #tpu.memory_space<vmem>>, vector<8x16xf32>,
    %403 = arith.truncf %400 : vector<8x16xf32> to vector<8x16xbf16>
    %c0_223 = arith.constant 0 : index
    %404 = arith.index_cast %356 : i32 to index
    %c0_224 = arith.constant 0 : index
    %c0_225 = arith.constant 0 : index
    %405 = vector.load %arg5[%c0_223, %404, %c0_224, %c0_225] : memref<1x8x8x16xbf16, #tpu.memory_space<vmem>>, vector<1x1x8x16xbf16>
    %406 = vector.shape_cast %405 : vector<1x1x8x16xbf16> to vector<8x16xbf16>
    %407 = vector.shape_cast %403 : vector<8x16xbf16> to vector<1x1x8x16xbf16>
    tpu.vector_store %arg5[%c0_223, %404, %c0_224, %c0_225], %407 {strides = array<i32>} : memref<1x8x8x16xbf16, #tpu.memory_space<vmem>>, vector<1x1x8x16xbf16>,
    %c7_i32_226 = arith.constant 7 : i32
    %408 = arith.muli %36, %c7_i32_226 : i32
    %409 = arith.addi %34, %408 : i32
    %c0_227 = arith.constant 0 : index
    %c0_228 = arith.constant 0 : index
    %410 = vector.load %arg10[%c0_227, %c0_228] : memref<8x16xf32, #tpu.memory_space<vmem>>, vector<8x16xf32>
    %411 = arith.truncf %410 : vector<8x16xf32> to vector<8x16xbf16>
    %412 = arith.index_cast %409 : i32 to index
    %c0_229 = arith.constant 0 : index
    %c0_230 = arith.constant 0 : index
    %413 = vector.load %arg6[%412, %c0_229, %c0_230] : memref<8x8x16xf32, #tpu.memory_space<vmem>>, vector<1x8x16xf32>
    %414 = vector.shape_cast %413 : vector<1x8x16xf32> to vector<8x16xf32>
    %cst_231 = arith.constant dense<0.000000e+00> : vector<8x16xf32>
    %415 = tpu.matmul %411, %26, %cst_231 {dimension_numbers = #tpu.dot_dimension_numbers<[1], [0], [0], [1], [0, 0, 1, 1], [], []>} : vector<8x16xbf16>, vector<16x16xbf16>, vector<8x16xf32> -> vector<8x16xf32>
    %416 = arith.addf %414, %415 : vector<8x16xf32>
    %417 = arith.negf %416 : vector<8x16xf32>
    %418 = math.exp %417 : vector<8x16xf32>
    %cst_232 = arith.constant 1.000000e+00 : f32
    %419 = vector.broadcast %cst_232 : f32 to vector<8x16xf32>
    %420 = arith.addf %419, %418 : vector<8x16xf32>
    %421 = arith.divf %419, %420 : vector<8x16xf32>
    %422 = arith.index_cast %409 : i32 to index
    %c0_233 = arith.constant 0 : index
    %c0_234 = arith.constant 0 : index
    %423 = vector.load %arg7[%422, %c0_233, %c0_234] : memref<8x8x16xf32, #tpu.memory_space<vmem>>, vector<1x8x16xf32>
    %424 = vector.shape_cast %423 : vector<1x8x16xf32> to vector<8x16xf32>
    %cst_235 = arith.constant dense<0.000000e+00> : vector<8x16xf32>
    %425 = tpu.matmul %411, %28, %cst_235 {dimension_numbers = #tpu.dot_dimension_numbers<[1], [0], [0], [1], [0, 0, 1, 1], [], []>} : vector<8x16xbf16>, vector<16x16xbf16>, vector<8x16xf32> -> vector<8x16xf32>
    %426 = arith.addf %424, %425 : vector<8x16xf32>
    %427 = arith.negf %426 : vector<8x16xf32>
    %428 = math.exp %427 : vector<8x16xf32>
    %cst_236 = arith.constant 1.000000e+00 : f32
    %429 = vector.broadcast %cst_236 : f32 to vector<8x16xf32>
    %430 = arith.addf %429, %428 : vector<8x16xf32>
    %431 = arith.divf %429, %430 : vector<8x16xf32>
    %432 = arith.index_cast %409 : i32 to index
    %c0_237 = arith.constant 0 : index
    %c0_238 = arith.constant 0 : index
    %433 = vector.load %arg8[%432, %c0_237, %c0_238] : memref<8x8x16xf32, #tpu.memory_space<vmem>>, vector<1x8x16xf32>
    %434 = vector.shape_cast %433 : vector<1x8x16xf32> to vector<8x16xf32>
    %cst_239 = arith.constant dense<0.000000e+00> : vector<8x16xf32>
    %435 = tpu.matmul %411, %30, %cst_239 {dimension_numbers = #tpu.dot_dimension_numbers<[1], [0], [0], [1], [0, 0, 1, 1], [], []>} : vector<8x16xbf16>, vector<16x16xbf16>, vector<8x16xf32> -> vector<8x16xf32>
    %436 = arith.addf %434, %435 : vector<8x16xf32>
    %437 = math.tanh %436 : vector<8x16xf32>
    %438 = arith.index_cast %409 : i32 to index
    %c0_240 = arith.constant 0 : index
    %c0_241 = arith.constant 0 : index
    %439 = vector.load %arg9[%438, %c0_240, %c0_241] : memref<8x8x16xf32, #tpu.memory_space<vmem>>, vector<1x8x16xf32>
    %440 = vector.shape_cast %439 : vector<1x8x16xf32> to vector<8x16xf32>
    %cst_242 = arith.constant dense<0.000000e+00> : vector<8x16xf32>
    %441 = tpu.matmul %411, %32, %cst_242 {dimension_numbers = #tpu.dot_dimension_numbers<[1], [0], [0], [1], [0, 0, 1, 1], [], []>} : vector<8x16xbf16>, vector<16x16xbf16>, vector<8x16xf32> -> vector<8x16xf32>
    %442 = arith.addf %440, %441 : vector<8x16xf32>
    %443 = arith.negf %442 : vector<8x16xf32>
    %444 = math.exp %443 : vector<8x16xf32>
    %cst_243 = arith.constant 1.000000e+00 : f32
    %445 = vector.broadcast %cst_243 : f32 to vector<8x16xf32>
    %446 = arith.addf %445, %444 : vector<8x16xf32>
    %447 = arith.divf %445, %446 : vector<8x16xf32>
    %c0_244 = arith.constant 0 : index
    %c0_245 = arith.constant 0 : index
    %448 = vector.load %arg11[%c0_244, %c0_245] : memref<8x16xf32, #tpu.memory_space<vmem>>, vector<8x16xf32>
    %449 = arith.mulf %431, %448 : vector<8x16xf32>
    %450 = arith.mulf %421, %437 : vector<8x16xf32>
    %451 = arith.addf %449, %450 : vector<8x16xf32>
    %452 = math.tanh %451 : vector<8x16xf32>
    %453 = arith.mulf %447, %452 : vector<8x16xf32>
    %c0_246 = arith.constant 0 : index
    %c0_247 = arith.constant 0 : index
    %454 = vector.load %arg11[%c0_246, %c0_247] : memref<8x16xf32, #tpu.memory_space<vmem>>, vector<8x16xf32>
    tpu.vector_store %arg11[%c0_246, %c0_247], %451 {strides = array<i32>} : memref<8x16xf32, #tpu.memory_space<vmem>>, vector<8x16xf32>,
    %c0_248 = arith.constant 0 : index
    %c0_249 = arith.constant 0 : index
    %455 = vector.load %arg10[%c0_248, %c0_249] : memref<8x16xf32, #tpu.memory_space<vmem>>, vector<8x16xf32>
    tpu.vector_store %arg10[%c0_248, %c0_249], %453 {strides = array<i32>} : memref<8x16xf32, #tpu.memory_space<vmem>>, vector<8x16xf32>,
    %456 = arith.truncf %453 : vector<8x16xf32> to vector<8x16xbf16>
    %c0_250 = arith.constant 0 : index
    %457 = arith.index_cast %409 : i32 to index
    %c0_251 = arith.constant 0 : index
    %c0_252 = arith.constant 0 : index
    %458 = vector.load %arg5[%c0_250, %457, %c0_251, %c0_252] : memref<1x8x8x16xbf16, #tpu.memory_space<vmem>>, vector<1x1x8x16xbf16>
    %459 = vector.shape_cast %458 : vector<1x1x8x16xbf16> to vector<8x16xbf16>
    %460 = vector.shape_cast %456 : vector<8x16xbf16> to vector<1x1x8x16xbf16>
    tpu.vector_store %arg5[%c0_250, %457, %c0_251, %c0_252], %460 {strides = array<i32>} : memref<1x8x8x16xbf16, #tpu.memory_space<vmem>>, vector<1x1x8x16xbf16>,
    %c8_i32 = arith.constant 8 : i32
    return
  }
  func.func @transform_0(%arg0: i32) -> (i32, i32, i32) {
    %c0_i32 = arith.constant 0 : i32
    %c0_i32_0 = arith.constant 0 : i32
    %c0_i32_1 = arith.constant 0 : i32
    %c0_i32_2 = arith.constant 0 : i32
    return %c0_i32, %c0_i32_0, %c0_i32_1 : i32, i32, i32
  }
  func.func @transform_1(%arg0: i32) -> (i32, i32, i32, i32) {
    %c0_i32 = arith.constant 0 : i32
    %c0_i32_0 = arith.constant 0 : i32
    %c0_i32_1 = arith.constant 0 : i32
    %c0_i32_2 = arith.constant 0 : i32
    return %arg0, %c0_i32, %c0_i32_0, %c0_i32_1 : i32, i32, i32, i32
  }
  func.func @transform_2(%arg0: i32) -> (i32, i32, i32, i32) {
    %c0_i32 = arith.constant 0 : i32
    %c0_i32_0 = arith.constant 0 : i32
    %c0_i32_1 = arith.constant 0 : i32
    %c0_i32_2 = arith.constant 0 : i32
    return %arg0, %c0_i32, %c0_i32_0, %c0_i32_1 : i32, i32, i32, i32
  }
  func.func @transform_3(%arg0: i32) -> (i32, i32, i32) {
    %c0_i32 = arith.constant 0 : i32
    %c0_i32_0 = arith.constant 0 : i32
    %c0_i32_1 = arith.constant 0 : i32
    return %arg0, %c0_i32, %c0_i32_0 : i32, i32, i32
  }
  func.func @transform_4(%arg0: i32) -> (i32, i32, i32, i32) {
    %c0_i32 = arith.constant 0 : i32
    %c0_i32_0 = arith.constant 0 : i32
    %c0_i32_1 = arith.constant 0 : i32
    %c0_i32_2 = arith.constant 0 : i32
    return %arg0, %c0_i32, %c0_i32_0, %c0_i32_1 : i32, i32, i32, i32
  }
}

</mosaic_0001>

<llo_original>
// kernel: tpu_custom_call.1
$region0: #{tpu_custom_call.1}
  #allocation0 [shape = 'u32[]', space=smem, size = 0x4, offset = 0x4, fixed_abs, tag = 'smem constant byte address 0x4 - core index']
  #allocation1 [shape = 'u32[144,128]{1,0:T(1,128)}', space=vmem, size = 0x12000, scoped, tag = 'internal scratch']
  #allocation2 [shape = 'f32[8,8,16]{2,1,0:T(8,128)}', space=vmem, size = 0x8000, scoped, tag = 'scratch operand']
  #allocation3 [shape = 'f32[8,8,16]{2,1,0:T(8,128)}', space=vmem, size = 0x8000, scoped, tag = 'scratch operand']
  #allocation4 [shape = 'f32[8,8,16]{2,1,0:T(8,128)}', space=vmem, size = 0x8000, scoped, tag = 'scratch operand']
  #allocation5 [shape = 'f32[8,8,16]{2,1,0:T(8,128)}', space=vmem, size = 0x8000, scoped, tag = 'scratch operand']
  #allocation6 [shape = 'f32[8,16]{1,0:T(8,128)}', space=vmem, size = 0x1000, scoped, tag = 'scratch operand']
  #allocation7 [shape = 'f32[8,16]{1,0:T(8,128)}', space=vmem, size = 0x1000, scoped, tag = 'scratch operand']
  %s0 = inlined_call_operand.vmem [shape: bf16[1,64,16], index: 0, kind: input, shape index: {}]
  %s1 = inlined_call_operand.vmem [shape: bf16[2,1,16,64], index: 1, kind: input, shape index: {}]
  %s2 = inlined_call_operand.hbm [shape: bf16[2,4,16,16], index: 2, kind: input, shape index: {}]
  %s3 = inlined_call_operand.vmem [shape: f32[2,1,64], index: 3, kind: input, shape index: {}]
  %s4 = inlined_call_operand.hbm [shape: bf16[2,8,8,16], index: 4, kind: output, shape index: {}]
  %s5 = sld [smem:[#allocation0]]
  $region53: #{tpu_custom_call.1} parent=0
    _
  %s7 = ssub.s32 1, %s5
  %s8 = scalar_select 0, %s7, %s5
  $region1: #{tpu_custom_call.1} parent=0
    #allocation8 [shape = 'u8[32768]{0}', space=vmem, size = 0x8000, scoped, tag = 'input window, operand 2']
    #allocation9 [shape = 's32[2]{0}', space=sflag, size = 0x8, scoped, tag = 'scoped memory for tpu_custom_call.1']
    #allocation10 [shape = 's32[2]{0}', space=sflag, size = 0x8, scoped, tag = 'scoped memory for tpu_custom_call.1']
    #allocation11 [shape = 'u8[32768]{0}', space=vmem, size = 0x8000, scoped, tag = 'output window, operand 0']
    %9 = vsyncpa [#allocation9], 0
    %s10 = scalar_lea.sflag [#allocation9], 1
    %11 = vsyncpa %s10, 0
    %12 = vsyncpa [#allocation10], 0
    %s13 = scalar_lea.sflag [#allocation10], 1
    %14 = vsyncpa %s13, 0
    loop: start=0, step=1, limit=4
    $region2: #{tpu_custom_call.1} parent=1 // loop_pre_header
      _
    $region3: #{tpu_custom_call.1} parent=1 // loop_header
      %s16 = sphi 0, %s20
      %p17 = scmp.ge.s32.totalorder %s16, 4
      %s24 = sphi 0, %s24
      %s26 = sphi 0, %s24
      %s27 = sphi 0, %s26
      %s41 = sphi 0, %s27
      %s47 = sphi 0, %s49
      %s50 = sphi 0, %s47
      %s51 = sphi 0, %s50
      %s67 = sphi 0, %s51
      %s73 = sphi 0, %s75
      %s76 = sphi 0, %s73
      %s77 = sphi 0, %s76
      %s93 = sphi 0, %s77
      %s99 = sphi 0, %s101
      %s102 = sphi 0, %s99
      %s103 = sphi 0, %s102
      %s119 = sphi 0, %s103
      %s125 = sphi 0, %s127
      %s128 = sphi 0, %s125
      %s129 = sphi 0, %s128
      %s145 = sphi 0, %s129
    $region4: #{tpu_custom_call.1} parent=1 // loop_header_branch
      %19 = sbr.rel (%p17) target = $region8
    $region5: #{tpu_custom_call.1} parent=1 // loop_body
      %s21 = ssub.s32 %s16, 1
      %s22 = ssub.s32 %s16, 2
      %s23 = sadd.s32 %s16, 1
      %s25 = sadd.s32 %s24, 1
      %p28 = scmp.eq.s32.totalorder %s16, 1
      %p29 = scmp.ne.s32.totalorder %s24, %s26
      %p30 = scmp.eq.s32.totalorder %s16, 0
      %p31 = por %p29, %p30
      %p32 = scmp.ne.s32.totalorder %s24, %s26
      %p33 = scmp.eq.s32.totalorder %s21, 1
      %p34 = por %p32, %p33
      %p35 = scmp.ne.s32.totalorder %s26, %s27
      %p36 = scmp.eq.s32.totalorder %s21, 0
      %p37 = por %p35, %p36
      %p38 = scmp.ne.s32.totalorder %s26, %s27
      %p39 = scmp.eq.s32.totalorder %s22, 1
      %p40 = por %p38, %p39
      %p42 = scmp.ne.s32.totalorder %s27, %s41
      %p43 = scmp.eq.s32.totalorder %s22, 0
      %p44 = por %p42, %p43
      %s45 = ssub.s32 %s16, %s23
      %p46 = scmp.eq.s32.totalorder %s45, 0
      %s48 = sadd.s32 %s47, 1
      %s49 = scalar_select %p46, %s47, %s48
      %p52 = pneg %p46
      %p53 = scmp.eq.s32.totalorder %s16, 1
      %p54 = por %p52, %p53
      %p55 = scmp.ne.s32.totalorder %s47, %s50
      %p56 = scmp.eq.s32.totalorder %s16, 0
      %p57 = por %p55, %p56
      %p58 = scmp.ne.s32.totalorder %s47, %s50
      %p59 = scmp.eq.s32.totalorder %s21, 1
      %p60 = por %p58, %p59
      %p61 = scmp.ne.s32.totalorder %s50, %s51
      %p62 = scmp.eq.s32.totalorder %s21, 0
      %p63 = por %p61, %p62
      %p64 = scmp.ne.s32.totalorder %s50, %s51
      %p65 = scmp.eq.s32.totalorder %s22, 1
      %p66 = por %p64, %p65
      %p68 = scmp.ne.s32.totalorder %s51, %s67
      %p69 = scmp.eq.s32.totalorder %s22, 0
      %p70 = por %p68, %p69
      %s71 = ssub.s32 %s16, %s23
      %p72 = scmp.eq.s32.totalorder %s71, 0
      %s74 = sadd.s32 %s73, 1
      %s75 = scalar_select %p72, %s73, %s74
      %p78 = pneg %p72
      %p79 = scmp.eq.s32.totalorder %s16, 1
      %p80 = por %p78, %p79
      %p81 = scmp.ne.s32.totalorder %s73, %s76
      %p82 = scmp.eq.s32.totalorder %s16, 0
      %p83 = por %p81, %p82
      %p84 = scmp.ne.s32.totalorder %s73, %s76
      %p85 = scmp.eq.s32.totalorder %s21, 1
      %p86 = por %p84, %p85
      %p87 = scmp.ne.s32.totalorder %s76, %s77
      %p88 = scmp.eq.s32.totalorder %s21, 0
      %p89 = por %p87, %p88
      %p90 = scmp.ne.s32.totalorder %s76, %s77
      %p91 = scmp.eq.s32.totalorder %s22, 1
      %p92 = por %p90, %p91
      %p94 = scmp.ne.s32.totalorder %s77, %s93
      %p95 = scmp.eq.s32.totalorder %s22, 0
      %p96 = por %p94, %p95
      %s97 = ssub.s32 %s16, %s23
      %p98 = scmp.eq.s32.totalorder %s97, 0
      %s100 = sadd.s32 %s99, 1
      %s101 = scalar_select %p98, %s99, %s100
      %p104 = pneg %p98
      %p105 = scmp.eq.s32.totalorder %s16, 1
      %p106 = por %p104, %p105
      %p107 = scmp.ne.s32.totalorder %s99, %s102
      %p108 = scmp.eq.s32.totalorder %s16, 0
      %p109 = por %p107, %p108
      %p110 = scmp.ne.s32.totalorder %s99, %s102
      %p111 = scmp.eq.s32.totalorder %s21, 1
      %p112 = por %p110, %p111
      %p113 = scmp.ne.s32.totalorder %s102, %s103
      %p114 = scmp.eq.s32.totalorder %s21, 0
      %p115 = por %p113, %p114
      %p116 = scmp.ne.s32.totalorder %s102, %s103
      %p117 = scmp.eq.s32.totalorder %s22, 1
      %p118 = por %p116, %p117
      %p120 = scmp.ne.s32.totalorder %s103, %s119
      %p121 = scmp.eq.s32.totalorder %s22, 0
      %p122 = por %p120, %p121
      %s123 = ssub.s32 %s16, %s23
      %p124 = scmp.eq.s32.totalorder %s123, 0
      %s126 = sadd.s32 %s125, 1
      %s127 = scalar_select %p124, %s125, %s126
      %p130 = pneg %p124
      %p131 = scmp.eq.s32.totalorder %s16, 1
      %p132 = por %p130, %p131
      %p133 = scmp.ne.s32.totalorder %s125, %s128
      %p134 = scmp.eq.s32.totalorder %s16, 0
      %p135 = por %p133, %p134
      %p136 = scmp.ne.s32.totalorder %s125, %s128
      %p137 = scmp.eq.s32.totalorder %s21, 1
      %p138 = por %p136, %p137
      %p139 = scmp.ne.s32.totalorder %s128, %s129
      %p140 = scmp.eq.s32.totalorder %s21, 0
      %p141 = por %p139, %p140
      %p142 = scmp.ne.s32.totalorder %s128, %s129
      %p143 = scmp.eq.s32.totalorder %s22, 1
      %p144 = por %p142, %p143
      %p146 = scmp.ne.s32.totalorder %s129, %s145
      %p147 = scmp.eq.s32.totalorder %s22, 0
      %p148 = por %p146, %p147
      %p149 = scmp.le.s32.totalorder 1, %s16
      %p150 = scmp.lt.s32.totalorder %s16, 3
      %p151 = pnand %p149, %p150
      %p152 = pneg %p151
      // Predicated region
      $region9: #{tpu_custom_call.1} parent=5 // pred_check
        _
      $region10: #{tpu_custom_call.1} parent=5 // pred_check_branch
        %154 = sbr.rel (%p151) target = $region12
      $region11: #{tpu_custom_call.1} parent=5 // pred_region
        %s155 = ssub.s32 %s16, 1
        // Predicated region
        $region13: #{tpu_custom_call.1} parent=11 // pred_check
          %p156 = pneg %p37
        $region14: #{tpu_custom_call.1} parent=11 // pred_check_branch
          %158 = sbr.rel (%p156) target = $region16
        $region15: #{tpu_custom_call.1} parent=11 // pred_region
          _
        $region16: #{tpu_custom_call.1} parent=11 // pred_fallthru
          _
      $region12: #{tpu_custom_call.1} parent=5 // pred_fallthru
        _
      %p159 = scmp.lt.s32.totalorder %s16, 2
      // Predicated region
      $region17: #{tpu_custom_call.1} parent=5 // pred_check
        %p160 = pneg %p159
      $region18: #{tpu_custom_call.1} parent=5 // pred_check_branch
        %162 = sbr.rel (%p160) target = $region20
      $region19: #{tpu_custom_call.1} parent=5 // pred_region
        // Predicated region
        $region21: #{tpu_custom_call.1} parent=19 // pred_check
          %p163 = pneg %p57
        $region22: #{tpu_custom_call.1} parent=19 // pred_check_branch
          %165 = sbr.rel (%p163) target = $region24
        $region23: #{tpu_custom_call.1} parent=19 // pred_region
          %p166 = scmp.lt.s32.totalorder %s16, 1
          %s167 = scalar_select %p166, %s16, 1
          %s168 = smul.addr %s167, 2
          %s169 = smul.addr %s168, 4
          %s170 = scalar_lea.vmem %s1, %s169
        $region24: #{tpu_custom_call.1} parent=19 // pred_fallthru
          _
        // Predicated region
        $region25: #{tpu_custom_call.1} parent=19 // pred_check
          %p171 = pneg %p83
        $region26: #{tpu_custom_call.1} parent=19 // pred_check_branch
          %173 = sbr.rel (%p171) target = $region28
        $region27: #{tpu_custom_call.1} parent=19 // pred_region
          %s174 = sand.u32 %s73, 1
          %s175 = scalar_lea.sflag [#allocation9], %s174
          %s176 = sand.u32 %s73, 1
          %s177 = smul.addr %s176, 32
          %s178 = scalar_lea.vmem [#allocation8], %s177
          %s180 = ssub.s32 512, 512
          %181 = vsyncadd %s175, %s180
          %s182 = smul.addr %s16, 8
          %s183 = smul.addr %s182, 64
          %s184 = scalar_lea.hbm %s2, %s183
          %s185 = sshll.u32 %s178, 4
          %s186 = int_to_ptr.vmem [resolvable:$true] %s185
          %191 = dma.hbm_to_vmem [thread:$0]  %s184, 512, %s186, %s175, 64, 64, 4
        $region28: #{tpu_custom_call.1} parent=19 // pred_fallthru
          _
        // Predicated region
        $region29: #{tpu_custom_call.1} parent=19 // pred_check
          %p192 = pneg %p109
        $region30: #{tpu_custom_call.1} parent=19 // pred_check_branch
          %194 = sbr.rel (%p192) target = $region32
        $region31: #{tpu_custom_call.1} parent=19 // pred_region
          %p195 = scmp.lt.s32.totalorder %s16, 1
          %s196 = scalar_select %p195, %s16, 1
          %s197 = scalar_lea.vmem %s3, %s196
        $region32: #{tpu_custom_call.1} parent=19 // pred_fallthru
          _
      $region20: #{tpu_custom_call.1} parent=5 // pred_fallthru
        _
      %p198 = scmp.le.s32.totalorder 1, %s16
      %p199 = scmp.lt.s32.totalorder %s16, 3
      %p200 = pnand %p198, %p199
      %p201 = pneg %p200
      // Predicated region
      $region33: #{tpu_custom_call.1} parent=5 // pred_check
        _
      $region34: #{tpu_custom_call.1} parent=5 // pred_check_branch
        %203 = sbr.rel (%p200) target = $region36
      $region35: #{tpu_custom_call.1} parent=5 // pred_region
        %s204 = ssub.s32 %s16, 1
        %s205 = sand.u32 %s76, 1
        %s206 = scalar_lea.sflag [#allocation9], %s205
        %s207 = sand.u32 %s76, 1
        %s208 = smul.addr %s207, 32
        %s209 = scalar_lea.vmem [#allocation8], %s208
        // Predicated region
        $region37: #{tpu_custom_call.1} parent=35 // pred_check
          %p210 = pneg %p89
        $region38: #{tpu_custom_call.1} parent=35 // pred_check_branch
          %212 = sbr.rel (%p210) target = $region40
        $region39: #{tpu_custom_call.1} parent=35 // pred_region
          %213 = dma.done %s206, 512
        $region40: #{tpu_custom_call.1} parent=35 // pred_fallthru
          _
        %p214 = pneg %p37
        %p215 = pneg %p34
        %p216 = scmp.lt.s32.totalorder %s21, 1
        %s217 = scalar_select %p216, %s21, 1
        %s218 = smul.addr %s217, 2
        %s219 = smul.addr %s218, 4
        %s220 = scalar_lea.vmem %s1, %s219
        %p221 = pneg %p63
        %p222 = pneg %p60
        %s223 = sand.u32 %s76, 1
        %s224 = scalar_lea.sflag [#allocation9], %s223
        %s225 = sand.u32 %s76, 1
        %s226 = smul.addr %s225, 32
        %s227 = scalar_lea.vmem [#allocation8], %s226
        %p228 = pneg %p89
        %p229 = pneg %p86
        %p230 = scmp.lt.s32.totalorder %s21, 1
        %s231 = scalar_select %p230, %s21, 1
        %s232 = scalar_lea.vmem %s3, %s231
        %p233 = pneg %p115
        %p234 = pneg %p112
        %p235 = pneg %p141
        %p236 = pneg %p138
        %s237 = sand.u32 %s128, 1
        %s238 = scalar_lea.sflag [#allocation10], %s237
        %s239 = sand.u32 %s128, 1
        %s240 = smul.addr %s239, 32
        %s241 = scalar_lea.vmem [#allocation11], %s240
        %p242 = scmp.lt.s32.totalorder %s21, 1
        %s243 = scalar_select %p242, %s21, 1
        %s244 = smul.addr %s243, 2
        %s245 = smul.addr %s244, 4
        %s246 = scalar_lea.vmem %s1, %s245
        %p247 = scmp.lt.s32.totalorder %s21, 1
        %s248 = scalar_select %p247, %s21, 1
        %s249 = scalar_lea.vmem %s3, %s248
        %v251 = vld [vmem:[%s0] sm:$0xf]
        %v252 = vld [vmem:[%s0 + $0x4] sm:$0xf]
        %v253 = vld [vmem:[%s0 + $0x8] sm:$0xf]
        %v254 = vld [vmem:[%s0 + $0xc] sm:$0xf]
        %v255 = vld [vmem:[%s0 + $0x10] sm:$0xf]
        %v256 = vld [vmem:[%s0 + $0x14] sm:$0xf]
        %v257 = vld [vmem:[%s0 + $0x18] sm:$0xf]
        %v258 = vld [vmem:[%s0 + $0x1c] sm:$0xf]
        %v259 = vld [vmem:[%s246] sm:$0xf]
        %v260 = vld [vmem:[%s246 + $0x4] sm:$0xf]
        %v261 = vld [vmem:[%s249] sm:$0x1]
        %v263 = vlaneseq
        %v264 = vshrl.u32 %v263, 7
        %v265 = vsub.s32 0, %v264
        %v266 = vrot.slane %v261, %v265
        %v276 = vunpack.c.l.b16 %v251
        %v277 = vunpack.c.l.b16 %v252
        %v278 = vunpack.c.l.b16 %v253
        %v279 = vunpack.c.l.b16 %v254
        %v280 = vunpack.c.l.b16 %v255
        %v281 = vunpack.c.l.b16 %v256
        %v282 = vunpack.c.l.b16 %v257
        %v283 = vunpack.c.l.b16 %v258
        %v284 = vpack.c.b16 %v277, %v276
        %v285 = vpack.c.b16 %v279, %v278
        %v286 = vpack.c.b16 %v281, %v280
        %v287 = vpack.c.b16 %v283, %v282
        %v290 = vunpack.c.l.b16 %v259
        %v291 = vunpack.c.l.b16 %v260
        %v292 = vpack.c.b16 %v291, %v290
        %vm294 = vcmask 130048
        %v296 = vsel %vm294, %v284, 0
        %v299 = vsel %vm294, %v285, 0
        %v302 = vsel %vm294, %v286, 0
        %v305 = vsel %vm294, %v287, 0
        %307 = vmatprep.subr.bf16.mxu0 0
        %308 = vmatpush1.bf16.msra.mxu0 %v292
        %309 = vmatprep.subr.bf16.mxu0 0
        %310 = vmatpush1.bf16.msra.mxu0 0
        %311 = vmatprep.subr.bf16.mxu0 0
        %312 = vmatpush1.bf16.msra.mxu0 0
        %313 = vmatprep.subr.bf16.mxu0 0
        %314 = vmatpush1.bf16.msra.mxu0 0
        %315 = vmatprep.subr.bf16.mxu0 0
        %316 = vmatpush1.bf16.msra.mxu0 0
        %317 = vmatprep.subr.bf16.mxu0 0
        %318 = vmatpush1.bf16.msra.mxu0 0
        %319 = vmatprep.subr.bf16.mxu0 0
        %320 = vmatpush1.bf16.msra.mxu0 0
        %321 = vmatprep.subr.bf16.mxu0 0
        %322 = vmatpush1.bf16.msra.mxu0 0
        %323 = vmatprep.subr.bf16.mxu0 0
        %324 = vmatpush1.bf16.msra.mxu0 0
        %325 = vmatprep.subr.bf16.mxu0 0
        %326 = vmatpush1.bf16.msra.mxu0 0
        %327 = vmatprep.subr.bf16.mxu0 0
        %328 = vmatpush1.bf16.msra.mxu0 0
        %329 = vmatprep.subr.bf16.mxu0 0
        %330 = vmatpush1.bf16.msra.mxu0 0
        %331 = vmatprep.subr.bf16.mxu0 0
        %332 = vmatpush1.bf16.msra.mxu0 0
        %333 = vmatprep.subr.bf16.mxu0 0
        %334 = vmatpush1.bf16.msra.mxu0 0
        %335 = vmatprep.subr.bf16.mxu0 0
        %336 = vmatpush1.bf16.msra.mxu0 0
        %337 = vmatprep.subr.bf16.mxu0 0
        %338 = vmatpush1.bf16.msra.mxu0 0
        %339 = vmatprep.mubr.bf16.mxu0 0
        %340 = vmatmul.mubr.bf16.gmra.mrb[0].mxu0 %v296
        %v341 = vpop.f32.mrb[0].mxu0
        %v342 = vadd.f32 %v266, %v341
        %v343 = vpop.f32.mrb[0].mxu0
        %v344 = vpop.f32.mrb[0].mxu0
        %v345 = vadd.f32 %v266, %v344
        %v346 = vpop.f32.mrb[0].mxu0
        %347 = vmatprep.mubr.bf16.mxu0 0
        %348 = vmatmul.mubr.bf16.gmra.mrb[0].mxu0 %v299
        %v349 = vpop.f32.mrb[0].mxu0
        %v350 = vadd.f32 %v266, %v349
        %v351 = vpop.f32.mrb[0].mxu0
        %v352 = vpop.f32.mrb[0].mxu0
        %v353 = vadd.f32 %v266, %v352
        %v354 = vpop.f32.mrb[0].mxu0
        %355 = vmatprep.mubr.bf16.mxu0 0
        %356 = vmatmul.mubr.bf16.gmra.mrb[0].mxu0 %v302
        %v357 = vpop.f32.mrb[0].mxu0
        %v358 = vadd.f32 %v266, %v357
        %v359 = vpop.f32.mrb[0].mxu0
        %v360 = vpop.f32.mrb[0].mxu0
        %v361 = vadd.f32 %v266, %v360
        %v362 = vpop.f32.mrb[0].mxu0
        %363 = vmatprep.mubr.bf16.mxu0 0
        %364 = vmatmul.mubr.bf16.gmra.mrb[0].mxu0 %v305
        %v365 = vpop.f32.mrb[0].mxu0
        %v366 = vadd.f32 %v266, %v365
        %v367 = vpop.f32.mrb[0].mxu0
        %v368 = vpop.f32.mrb[0].mxu0
        %v369 = vadd.f32 %v266, %v368
        %v370 = vpop.f32.mrb[0].mxu0
        %371 = vdwg.mxu0
        %372 = vst.msk [vmem:[#allocation2] sm:$0xff] %vm294, %v342
        %373 = vst.msk [vmem:[#allocation2 + $0x8] sm:$0xff] %vm294, %v345
        %374 = vst.msk [vmem:[#allocation2 + $0x10] sm:$0xff] %vm294, %v350
        %375 = vst.msk [vmem:[#allocation2 + $0x18] sm:$0xff] %vm294, %v353
        %376 = vst.msk [vmem:[#allocation2 + $0x20] sm:$0xff] %vm294, %v358
        %377 = vst.msk [vmem:[#allocation2 + $0x28] sm:$0xff] %vm294, %v361
        %378 = vst.msk [vmem:[#allocation2 + $0x30] sm:$0xff] %vm294, %v366
        %379 = vst.msk [vmem:[#allocation2 + $0x38] sm:$0xff] %vm294, %v369
        %388 = vrot.lane.b32.xlu0 %v342, 112
        %v389 = vpop.permute.xlu0 %388
        %390 = vrot.lane.b32.xlu0 %v345, 112
        %v391 = vpop.permute.xlu0 %390
        %392 = vrot.lane.b32.xlu0 %v350, 112
        %v393 = vpop.permute.xlu0 %392
        %394 = vrot.lane.b32.xlu0 %v353, 112
        %v395 = vpop.permute.xlu0 %394
        %396 = vrot.lane.b32.xlu0 %v358, 112
        %v397 = vpop.permute.xlu0 %396
        %398 = vrot.lane.b32.xlu0 %v361, 112
        %v399 = vpop.permute.xlu0 %398
        %400 = vrot.lane.b32.xlu0 %v366, 112
        %v401 = vpop.permute.xlu0 %400
        %402 = vrot.lane.b32.xlu0 %v369, 112
        %v403 = vpop.permute.xlu0 %402
        %412 = vst.msk [vmem:[#allocation3] sm:$0xff] %vm294, %v389
        %413 = vst.msk [vmem:[#allocation3 + $0x8] sm:$0xff] %vm294, %v391
        %414 = vst.msk [vmem:[#allocation3 + $0x10] sm:$0xff] %vm294, %v393
        %415 = vst.msk [vmem:[#allocation3 + $0x18] sm:$0xff] %vm294, %v395
        %416 = vst.msk [vmem:[#allocation3 + $0x20] sm:$0xff] %vm294, %v397
        %417 = vst.msk [vmem:[#allocation3 + $0x28] sm:$0xff] %vm294, %v399
        %418 = vst.msk [vmem:[#allocation3 + $0x30] sm:$0xff] %vm294, %v401
        %419 = vst.msk [vmem:[#allocation3 + $0x38] sm:$0xff] %vm294, %v403
        %420 = vrot.lane.b32.xlu0 %v342, 96
        %v421 = vpop.permute.xlu0 %420
        %422 = vrot.lane.b32.xlu0 %v345, 96
        %v423 = vpop.permute.xlu0 %422
        %424 = vrot.lane.b32.xlu0 %v350, 96
        %v425 = vpop.permute.xlu0 %424
        %426 = vrot.lane.b32.xlu0 %v353, 96
        %v427 = vpop.permute.xlu0 %426
        %428 = vrot.lane.b32.xlu0 %v358, 96
        %v429 = vpop.permute.xlu0 %428
        %430 = vrot.lane.b32.xlu0 %v361, 96
        %v431 = vpop.permute.xlu0 %430
        %432 = vrot.lane.b32.xlu0 %v366, 96
        %v433 = vpop.permute.xlu0 %432
        %434 = vrot.lane.b32.xlu0 %v369, 96
        %v435 = vpop.permute.xlu0 %434
        %444 = vst.msk [vmem:[#allocation4] sm:$0xff] %vm294, %v421
        %445 = vst.msk [vmem:[#allocation4 + $0x8] sm:$0xff] %vm294, %v423
        %446 = vst.msk [vmem:[#allocation4 + $0x10] sm:$0xff] %vm294, %v425
        %447 = vst.msk [vmem:[#allocation4 + $0x18] sm:$0xff] %vm294, %v427
        %448 = vst.msk [vmem:[#allocation4 + $0x20] sm:$0xff] %vm294, %v429
        %449 = vst.msk [vmem:[#allocation4 + $0x28] sm:$0xff] %vm294, %v431
        %450 = vst.msk [vmem:[#allocation4 + $0x30] sm:$0xff] %vm294, %v433
        %451 = vst.msk [vmem:[#allocation4 + $0x38] sm:$0xff] %vm294, %v435
        %452 = vrot.lane.b32.xlu0 %v342, 80
        %v453 = vpop.permute.xlu0 %452
        %454 = vrot.lane.b32.xlu0 %v345, 80
        %v455 = vpop.permute.xlu0 %454
        %456 = vrot.lane.b32.xlu0 %v350, 80
        %v457 = vpop.permute.xlu0 %456
        %458 = vrot.lane.b32.xlu0 %v353, 80
        %v459 = vpop.permute.xlu0 %458
        %460 = vrot.lane.b32.xlu0 %v358, 80
        %v461 = vpop.permute.xlu0 %460
        %462 = vrot.lane.b32.xlu0 %v361, 80
        %v463 = vpop.permute.xlu0 %462
        %464 = vrot.lane.b32.xlu0 %v366, 80
        %v465 = vpop.permute.xlu0 %464
        %466 = vrot.lane.b32.xlu0 %v369, 80
        %v467 = vpop.permute.xlu0 %466
        %476 = vst.msk [vmem:[#allocation5] sm:$0xff] %vm294, %v453
        %477 = vst.msk [vmem:[#allocation5 + $0x8] sm:$0xff] %vm294, %v455
        %478 = vst.msk [vmem:[#allocation5 + $0x10] sm:$0xff] %vm294, %v457
        %479 = vst.msk [vmem:[#allocation5 + $0x18] sm:$0xff] %vm294, %v459
        %480 = vst.msk [vmem:[#allocation5 + $0x20] sm:$0xff] %vm294, %v461
        %481 = vst.msk [vmem:[#allocation5 + $0x28] sm:$0xff] %vm294, %v463
        %482 = vst.msk [vmem:[#allocation5 + $0x30] sm:$0xff] %vm294, %v465
        %483 = vst.msk [vmem:[#allocation5 + $0x38] sm:$0xff] %vm294, %v467
        %484 = vst.msk [vmem:[#allocation6] sm:$0xff] %vm294, 0.0
        %485 = vst.msk [vmem:[#allocation7] sm:$0xff] %vm294, 0.0
        %v486 = vld [vmem:[%s209] sm:$0xf]
        %v487 = vld [vmem:[%s209 + $0x4] sm:$0xf]
        %s488 = scalar_lea.vmem %s209, 8 [#allocation8]
        %v489 = vld [vmem:[%s488] sm:$0xf]
        %v490 = vld [vmem:[%s488 + $0x4] sm:$0xf]
        %s491 = scalar_lea.vmem %s209, 16 [#allocation8]
        %v492 = vld [vmem:[%s491] sm:$0xf]
        %v493 = vld [vmem:[%s491 + $0x4] sm:$0xf]
        %s494 = scalar_lea.vmem %s209, 24 [#allocation8]
        %v495 = vld [vmem:[%s494] sm:$0xf]
        %v496 = vld [vmem:[%s494 + $0x4] sm:$0xf]
        %p497 = scmp.eq.s32.totalorder %s21, 0
        %s498 = scalar_select %p497, 0, 7
        %s499 = scalar_select %p497, 1, 4294967295
        %v500 = vld [vmem:[#allocation6] sm:$0xff]
        %v501 = vpack.c.bf16 %v500, %v500
        %s502 = smul.u32 %s498, 8
        %s503 = scalar_lea.vmem [#allocation2], %s502
        %v504 = vld [vmem:[%s503] sm:$0xff]
        %v507 = vunpack.c.l.b16 %v486
        %v508 = vunpack.c.l.b16 %v487
        %v509 = vpack.c.b16 %v508, %v507
        %v512 = vsel %vm294, %v501, 0
        %514 = vmatprep.subr.bf16.mxu0 0
        %515 = vmatpush1.bf16.msra.mxu0 %v509
        %516 = vmatprep.subr.bf16.mxu0 0
        %517 = vmatpush1.bf16.msra.mxu0 0
        %518 = vmatprep.subr.bf16.mxu0 0
        %519 = vmatpush1.bf16.msra.mxu0 0
        %520 = vmatprep.subr.bf16.mxu0 0
        %521 = vmatpush1.bf16.msra.mxu0 0
        %522 = vmatprep.subr.bf16.mxu0 0
        %523 = vmatpush1.bf16.msra.mxu0 0
        %524 = vmatprep.subr.bf16.mxu0 0
        %525 = vmatpush1.bf16.msra.mxu0 0
        %526 = vmatprep.subr.bf16.mxu0 0
        %527 = vmatpush1.bf16.msra.mxu0 0
        %528 = vmatprep.subr.bf16.mxu0 0
        %529 = vmatpush1.bf16.msra.mxu0 0
        %530 = vmatprep.subr.bf16.mxu0 0
        %531 = vmatpush1.bf16.msra.mxu0 0
        %532 = vmatprep.subr.bf16.mxu0 0
        %533 = vmatpush1.bf16.msra.mxu0 0
        %534 = vmatprep.subr.bf16.mxu0 0
        %535 = vmatpush1.bf16.msra.mxu0 0
        %536 = vmatprep.subr.bf16.mxu0 0
        %537 = vmatpush1.bf16.msra.mxu0 0
        %538 = vmatprep.subr.bf16.mxu0 0
        %539 = vmatpush1.bf16.msra.mxu0 0
        %540 = vmatprep.subr.bf16.mxu0 0
        %541 = vmatpush1.bf16.msra.mxu0 0
        %542 = vmatprep.subr.bf16.mxu0 0
        %543 = vmatpush1.bf16.msra.mxu0 0
        %544 = vmatprep.subr.bf16.mxu0 0
        %545 = vmatpush1.bf16.msra.mxu0 0
        %546 = vmatprep.mubr.bf16.mxu0 0
        %547 = vmatmul.mubr.bf16.gmra.mrb[0].mxu0 %v512
        %v548 = vpop.f32.mrb[0].mxu0
        %v549 = vadd.f32 0.0, %v548
        %v550 = vpop.f32.mrb[0].mxu0
        %v551 = vpop.f32.mrb[0].mxu0
        %v552 = vpop.f32.mrb[0].mxu0
        %553 = vdwg.mxu0
        %v554 = vadd.f32 %v504, %v549
        %v555 = vxor.u32 %v554, 2147483648
        %v556 = vmul.f32 %v555, 1.442695
        %v557 = vpow.pop %v556
        %v558 = vadd.f32 %v557, 1.0
        %v559 = vrcp.pop %v558
        %v560 = vmul.f32 1.0, %v559
        %s561 = scalar_lea.vmem [#allocation3], %s502
        %v562 = vld [vmem:[%s561] sm:$0xff]
        %v565 = vunpack.c.l.b16 %v489
        %v566 = vunpack.c.l.b16 %v490
        %v567 = vpack.c.b16 %v566, %v565
        %569 = vmatprep.subr.bf16.mxu0 0
        %570 = vmatpush1.bf16.msra.mxu0 %v567
        %571 = vmatprep.subr.bf16.mxu0 0
        %572 = vmatpush1.bf16.msra.mxu0 0
        %573 = vmatprep.subr.bf16.mxu0 0
        %574 = vmatpush1.bf16.msra.mxu0 0
        %575 = vmatprep.subr.bf16.mxu0 0
        %576 = vmatpush1.bf16.msra.mxu0 0
        %577 = vmatprep.subr.bf16.mxu0 0
        %578 = vmatpush1.bf16.msra.mxu0 0
        %579 = vmatprep.subr.bf16.mxu0 0
        %580 = vmatpush1.bf16.msra.mxu0 0
        %581 = vmatprep.subr.bf16.mxu0 0
        %582 = vmatpush1.bf16.msra.mxu0 0
        %583 = vmatprep.subr.bf16.mxu0 0
        %584 = vmatpush1.bf16.msra.mxu0 0
        %585 = vmatprep.subr.bf16.mxu0 0
        %586 = vmatpush1.bf16.msra.mxu0 0
        %587 = vmatprep.subr.bf16.mxu0 0
        %588 = vmatpush1.bf16.msra.mxu0 0
        %589 = vmatprep.subr.bf16.mxu0 0
        %590 = vmatpush1.bf16.msra.mxu0 0
        %591 = vmatprep.subr.bf16.mxu0 0
        %592 = vmatpush1.bf16.msra.mxu0 0
        %593 = vmatprep.subr.bf16.mxu0 0
        %594 = vmatpush1.bf16.msra.mxu0 0
        %595 = vmatprep.subr.bf16.mxu0 0
        %596 = vmatpush1.bf16.msra.mxu0 0
        %597 = vmatprep.subr.bf16.mxu0 0
        %598 = vmatpush1.bf16.msra.mxu0 0
        %599 = vmatprep.subr.bf16.mxu0 0
        %600 = vmatpush1.bf16.msra.mxu0 0
        %601 = vmatprep.mubr.bf16.mxu0 0
        %602 = vmatmul.mubr.bf16.gmra.mrb[0].mxu0 %v512
        %v603 = vpop.f32.mrb[0].mxu0
        %v604 = vadd.f32 0.0, %v603
        %v605 = vpop.f32.mrb[0].mxu0
        %v606 = vpop.f32.mrb[0].mxu0
        %v607 = vpop.f32.mrb[0].mxu0
        %608 = vdwg.mxu0
        %v609 = vadd.f32 %v562, %v604
        %v610 = vxor.u32 %v609, 2147483648
        %v611 = vmul.f32 %v610, 1.442695
        %v612 = vpow.pop %v611
        %v613 = vadd.f32 %v612, 1.0
        %v614 = vrcp.pop %v613
        %v615 = vmul.f32 1.0, %v614
        %s616 = scalar_lea.vmem [#allocation4], %s502
        %v617 = vld [vmem:[%s616] sm:$0xff]
        %v620 = vunpack.c.l.b16 %v492
        %v621 = vunpack.c.l.b16 %v493
        %v622 = vpack.c.b16 %v621, %v620
        %624 = vmatprep.subr.bf16.mxu0 0
        %625 = vmatpush1.bf16.msra.mxu0 %v622
        %626 = vmatprep.subr.bf16.mxu0 0
        %627 = vmatpush1.bf16.msra.mxu0 0
        %628 = vmatprep.subr.bf16.mxu0 0
        %629 = vmatpush1.bf16.msra.mxu0 0
        %630 = vmatprep.subr.bf16.mxu0 0
        %631 = vmatpush1.bf16.msra.mxu0 0
        %632 = vmatprep.subr.bf16.mxu0 0
        %633 = vmatpush1.bf16.msra.mxu0 0
        %634 = vmatprep.subr.bf16.mxu0 0
        %635 = vmatpush1.bf16.msra.mxu0 0
        %636 = vmatprep.subr.bf16.mxu0 0
        %637 = vmatpush1.bf16.msra.mxu0 0
        %638 = vmatprep.subr.bf16.mxu0 0
        %639 = vmatpush1.bf16.msra.mxu0 0
        %640 = vmatprep.subr.bf16.mxu0 0
        %641 = vmatpush1.bf16.msra.mxu0 0
        %642 = vmatprep.subr.bf16.mxu0 0
        %643 = vmatpush1.bf16.msra.mxu0 0
        %644 = vmatprep.subr.bf16.mxu0 0
        %645 = vmatpush1.bf16.msra.mxu0 0
        %646 = vmatprep.subr.bf16.mxu0 0
        %647 = vmatpush1.bf16.msra.mxu0 0
        %648 = vmatprep.subr.bf16.mxu0 0
        %649 = vmatpush1.bf16.msra.mxu0 0
        %650 = vmatprep.subr.bf16.mxu0 0
        %651 = vmatpush1.bf16.msra.mxu0 0
        %652 = vmatprep.subr.bf16.mxu0 0
        %653 = vmatpush1.bf16.msra.mxu0 0
        %654 = vmatprep.subr.bf16.mxu0 0
        %655 = vmatpush1.bf16.msra.mxu0 0
        %656 = vmatprep.mubr.bf16.mxu0 0
        %657 = vmatmul.mubr.bf16.gmra.mrb[0].mxu0 %v512
        %v658 = vpop.f32.mrb[0].mxu0
        %v659 = vadd.f32 0.0, %v658
        %v660 = vpop.f32.mrb[0].mxu0
        %v661 = vpop.f32.mrb[0].mxu0
        %v662 = vpop.f32.mrb[0].mxu0
        %663 = vdwg.mxu0
        %v664 = vadd.f32 %v617, %v659
        %v665 = vtanh.pop %v664
        %s666 = scalar_lea.vmem [#allocation5], %s502
        %v667 = vld [vmem:[%s666] sm:$0xff]
        %v670 = vunpack.c.l.b16 %v495
        %v671 = vunpack.c.l.b16 %v496
        %v672 = vpack.c.b16 %v671, %v670
        %674 = vmatprep.subr.bf16.mxu0 0
        %675 = vmatpush1.bf16.msra.mxu0 %v672
        %676 = vmatprep.subr.bf16.mxu0 0
        %677 = vmatpush1.bf16.msra.mxu0 0
        %678 = vmatprep.subr.bf16.mxu0 0
        %679 = vmatpush1.bf16.msra.mxu0 0
        %680 = vmatprep.subr.bf16.mxu0 0
        %681 = vmatpush1.bf16.msra.mxu0 0
        %682 = vmatprep.subr.bf16.mxu0 0
        %683 = vmatpush1.bf16.msra.mxu0 0
        %684 = vmatprep.subr.bf16.mxu0 0
        %685 = vmatpush1.bf16.msra.mxu0 0
        %686 = vmatprep.subr.bf16.mxu0 0
        %687 = vmatpush1.bf16.msra.mxu0 0
        %688 = vmatprep.subr.bf16.mxu0 0
        %689 = vmatpush1.bf16.msra.mxu0 0
        %690 = vmatprep.subr.bf16.mxu0 0
        %691 = vmatpush1.bf16.msra.mxu0 0
        %692 = vmatprep.subr.bf16.mxu0 0
        %693 = vmatpush1.bf16.msra.mxu0 0
        %694 = vmatprep.subr.bf16.mxu0 0
        %695 = vmatpush1.bf16.msra.mxu0 0
        %696 = vmatprep.subr.bf16.mxu0 0
        %697 = vmatpush1.bf16.msra.mxu0 0
        %698 = vmatprep.subr.bf16.mxu0 0
        %699 = vmatpush1.bf16.msra.mxu0 0
        %700 = vmatprep.subr.bf16.mxu0 0
        %701 = vmatpush1.bf16.msra.mxu0 0
        %702 = vmatprep.subr.bf16.mxu0 0
        %703 = vmatpush1.bf16.msra.mxu0 0
        %704 = vmatprep.subr.bf16.mxu0 0
        %705 = vmatpush1.bf16.msra.mxu0 0
        %706 = vmatprep.mubr.bf16.mxu0 0
        %707 = vmatmul.mubr.bf16.gmra.mrb[0].mxu0 %v512
        %v708 = vpop.f32.mrb[0].mxu0
        %v709 = vadd.f32 0.0, %v708
        %v710 = vpop.f32.mrb[0].mxu0
        %v711 = vpop.f32.mrb[0].mxu0
        %v712 = vpop.f32.mrb[0].mxu0
        %713 = vdwg.mxu0
        %v714 = vadd.f32 %v667, %v709
        %v715 = vxor.u32 %v714, 2147483648
        %v716 = vmul.f32 %v715, 1.442695
        %v717 = vpow.pop %v716
        %v718 = vadd.f32 %v717, 1.0
        %v719 = vrcp.pop %v718
        %v720 = vmul.f32 1.0, %v719
        %v721 = vld [vmem:[#allocation7] sm:$0xff]
        %v722 = vmul.f32 %v615, %v721
        %v723 = vmul.f32 %v560, %v665
        %v724 = vadd.f32 %v722, %v723
        %v725 = vtanh.pop %v724
        %v726 = vmul.f32 %v720, %v725
        %727 = vst.msk [vmem:[#allocation7] sm:$0xff] %vm294, %v724
        %728 = vst.msk [vmem:[#allocation6] sm:$0xff] %vm294, %v726
        %v729 = vpack.c.bf16 %v726, %v726
        %s730 = smul.addr %s498, 4
        %s731 = scalar_lea.vmem %s241, %s730 [#allocation11]
        %vm732 = vcmask 125952
        %733 = vst.msk [vmem:[%s731] sm:$0xf] %vm732, %v729
        %s734 = sadd.s32 %s498, %s499
        %v735 = vld [vmem:[#allocation6] sm:$0xff]
        %v736 = vpack.c.bf16 %v735, %v735
        %s737 = smul.u32 %s734, 8
        %s738 = scalar_lea.vmem [#allocation2], %s737
        %v739 = vld [vmem:[%s738] sm:$0xff]
        %v741 = vsel %vm294, %v736, 0
        %743 = vmatprep.subr.bf16.mxu0 0
        %744 = vmatpush1.bf16.msra.mxu0 %v509
        %745 = vmatprep.subr.bf16.mxu0 0
        %746 = vmatpush1.bf16.msra.mxu0 0
        %747 = vmatprep.subr.bf16.mxu0 0
        %748 = vmatpush1.bf16.msra.mxu0 0
        %749 = vmatprep.subr.bf16.mxu0 0
        %750 = vmatpush1.bf16.msra.mxu0 0
        %751 = vmatprep.subr.bf16.mxu0 0
        %752 = vmatpush1.bf16.msra.mxu0 0
        %753 = vmatprep.subr.bf16.mxu0 0
        %754 = vmatpush1.bf16.msra.mxu0 0
        %755 = vmatprep.subr.bf16.mxu0 0
        %756 = vmatpush1.bf16.msra.mxu0 0
        %757 = vmatprep.subr.bf16.mxu0 0
        %758 = vmatpush1.bf16.msra.mxu0 0
        %759 = vmatprep.subr.bf16.mxu0 0
        %760 = vmatpush1.bf16.msra.mxu0 0
        %761 = vmatprep.subr.bf16.mxu0 0
        %762 = vmatpush1.bf16.msra.mxu0 0
        %763 = vmatprep.subr.bf16.mxu0 0
        %764 = vmatpush1.bf16.msra.mxu0 0
        %765 = vmatprep.subr.bf16.mxu0 0
        %766 = vmatpush1.bf16.msra.mxu0 0
        %767 = vmatprep.subr.bf16.mxu0 0
        %768 = vmatpush1.bf16.msra.mxu0 0
        %769 = vmatprep.subr.bf16.mxu0 0
        %770 = vmatpush1.bf16.msra.mxu0 0
        %771 = vmatprep.subr.bf16.mxu0 0
        %772 = vmatpush1.bf16.msra.mxu0 0
        %773 = vmatprep.subr.bf16.mxu0 0
        %774 = vmatpush1.bf16.msra.mxu0 0
        %775 = vmatprep.mubr.bf16.mxu0 0
        %776 = vmatmul.mubr.bf16.gmra.mrb[0].mxu0 %v741
        %v777 = vpop.f32.mrb[0].mxu0
        %v778 = vadd.f32 0.0, %v777
        %v779 = vpop.f32.mrb[0].mxu0
        %v780 = vpop.f32.mrb[0].mxu0
        %v781 = vpop.f32.mrb[0].mxu0
        %782 = vdwg.mxu0
        %v783 = vadd.f32 %v739, %v778
        %v784 = vxor.u32 %v783, 2147483648
        %v785 = vmul.f32 %v784, 1.442695
        %v786 = vpow.pop %v785
        %v787 = vadd.f32 %v786, 1.0
        %v788 = vrcp.pop %v787
        %v789 = vmul.f32 1.0, %v788
        %s790 = scalar_lea.vmem [#allocation3], %s737
        %v791 = vld [vmem:[%s790] sm:$0xff]
        %792 = vmatprep.subr.bf16.mxu0 0
        %793 = vmatpush1.bf16.msra.mxu0 %v567
        %794 = vmatprep.subr.bf16.mxu0 0
        %795 = vmatpush1.bf16.msra.mxu0 0
        %796 = vmatprep.subr.bf16.mxu0 0
        %797 = vmatpush1.bf16.msra.mxu0 0
        %798 = vmatprep.subr.bf16.mxu0 0
        %799 = vmatpush1.bf16.msra.mxu0 0
        %800 = vmatprep.subr.bf16.mxu0 0
        %801 = vmatpush1.bf16.msra.mxu0 0
        %802 = vmatprep.subr.bf16.mxu0 0
        %803 = vmatpush1.bf16.msra.mxu0 0
        %804 = vmatprep.subr.bf16.mxu0 0
        %805 = vmatpush1.bf16.msra.mxu0 0
        %806 = vmatprep.subr.bf16.mxu0 0
        %807 = vmatpush1.bf16.msra.mxu0 0
        %808 = vmatprep.subr.bf16.mxu0 0
        %809 = vmatpush1.bf16.msra.mxu0 0
        %810 = vmatprep.subr.bf16.mxu0 0
        %811 = vmatpush1.bf16.msra.mxu0 0
        %812 = vmatprep.subr.bf16.mxu0 0
        %813 = vmatpush1.bf16.msra.mxu0 0
        %814 = vmatprep.subr.bf16.mxu0 0
        %815 = vmatpush1.bf16.msra.mxu0 0
        %816 = vmatprep.subr.bf16.mxu0 0
        %817 = vmatpush1.bf16.msra.mxu0 0
        %818 = vmatprep.subr.bf16.mxu0 0
        %819 = vmatpush1.bf16.msra.mxu0 0
        %820 = vmatprep.subr.bf16.mxu0 0
        %821 = vmatpush1.bf16.msra.mxu0 0
        %822 = vmatprep.subr.bf16.mxu0 0
        %823 = vmatpush1.bf16.msra.mxu0 0
        %824 = vmatprep.mubr.bf16.mxu0 0
        %825 = vmatmul.mubr.bf16.gmra.mrb[0].mxu0 %v741
        %v826 = vpop.f32.mrb[0].mxu0
        %v827 = vadd.f32 0.0, %v826
        %v828 = vpop.f32.mrb[0].mxu0
        %v829 = vpop.f32.mrb[0].mxu0
        %v830 = vpop.f32.mrb[0].mxu0
        %831 = vdwg.mxu0
        %v832 = vadd.f32 %v791, %v827
        %v833 = vxor.u32 %v832, 2147483648
        %v834 = vmul.f32 %v833, 1.442695
        %v835 = vpow.pop %v834
        %v836 = vadd.f32 %v835, 1.0
        %v837 = vrcp.pop %v836
        %v838 = vmul.f32 1.0, %v837
        %s839 = scalar_lea.vmem [#allocation4], %s737
        %v840 = vld [vmem:[%s839] sm:$0xff]
        %841 = vmatprep.subr.bf16.mxu0 0
        %842 = vmatpush1.bf16.msra.mxu0 %v622
        %843 = vmatprep.subr.bf16.mxu0 0
        %844 = vmatpush1.bf16.msra.mxu0 0
        %845 = vmatprep.subr.bf16.mxu0 0
        %846 = vmatpush1.bf16.msra.mxu0 0
        %847 = vmatprep.subr.bf16.mxu0 0
        %848 = vmatpush1.bf16.msra.mxu0 0
        %849 = vmatprep.subr.bf16.mxu0 0
        %850 = vmatpush1.bf16.msra.mxu0 0
        %851 = vmatprep.subr.bf16.mxu0 0
        %852 = vmatpush1.bf16.msra.mxu0 0
        %853 = vmatprep.subr.bf16.mxu0 0
        %854 = vmatpush1.bf16.msra.mxu0 0
        %855 = vmatprep.subr.bf16.mxu0 0
        %856 = vmatpush1.bf16.msra.mxu0 0
        %857 = vmatprep.subr.bf16.mxu0 0
        %858 = vmatpush1.bf16.msra.mxu0 0
        %859 = vmatprep.subr.bf16.mxu0 0
        %860 = vmatpush1.bf16.msra.mxu0 0
        %861 = vmatprep.subr.bf16.mxu0 0
        %862 = vmatpush1.bf16.msra.mxu0 0
        %863 = vmatprep.subr.bf16.mxu0 0
        %864 = vmatpush1.bf16.msra.mxu0 0
        %865 = vmatprep.subr.bf16.mxu0 0
        %866 = vmatpush1.bf16.msra.mxu0 0
        %867 = vmatprep.subr.bf16.mxu0 0
        %868 = vmatpush1.bf16.msra.mxu0 0
        %869 = vmatprep.subr.bf16.mxu0 0
        %870 = vmatpush1.bf16.msra.mxu0 0
        %871 = vmatprep.subr.bf16.mxu0 0
        %872 = vmatpush1.bf16.msra.mxu0 0
        %873 = vmatprep.mubr.bf16.mxu0 0
        %874 = vmatmul.mubr.bf16.gmra.mrb[0].mxu0 %v741
        %v875 = vpop.f32.mrb[0].mxu0
        %v876 = vadd.f32 0.0, %v875
        %v877 = vpop.f32.mrb[0].mxu0
        %v878 = vpop.f32.mrb[0].mxu0
        %v879 = vpop.f32.mrb[0].mxu0
        %880 = vdwg.mxu0
        %v881 = vadd.f32 %v840, %v876
        %v882 = vtanh.pop %v881
        %s883 = scalar_lea.vmem [#allocation5], %s737
        %v884 = vld [vmem:[%s883] sm:$0xff]
        %885 = vmatprep.subr.bf16.mxu0 0
        %886 = vmatpush1.bf16.msra.mxu0 %v672
        %887 = vmatprep.subr.bf16.mxu0 0
        %888 = vmatpush1.bf16.msra.mxu0 0
        %889 = vmatprep.subr.bf16.mxu0 0
        %890 = vmatpush1.bf16.msra.mxu0 0
        %891 = vmatprep.subr.bf16.mxu0 0
        %892 = vmatpush1.bf16.msra.mxu0 0
        %893 = vmatprep.subr.bf16.mxu0 0
        %894 = vmatpush1.bf16.msra.mxu0 0
        %895 = vmatprep.subr.bf16.mxu0 0
        %896 = vmatpush1.bf16.msra.mxu0 0
        %897 = vmatprep.subr.bf16.mxu0 0
        %898 = vmatpush1.bf16.msra.mxu0 0
        %899 = vmatprep.subr.bf16.mxu0 0
        %900 = vmatpush1.bf16.msra.mxu0 0
        %901 = vmatprep.subr.bf16.mxu0 0
        %902 = vmatpush1.bf16.msra.mxu0 0
        %903 = vmatprep.subr.bf16.mxu0 0
        %904 = vmatpush1.bf16.msra.mxu0 0
        %905 = vmatprep.subr.bf16.mxu0 0
        %906 = vmatpush1.bf16.msra.mxu0 0
        %907 = vmatprep.subr.bf16.mxu0 0
        %908 = vmatpush1.bf16.msra.mxu0 0
        %909 = vmatprep.subr.bf16.mxu0 0
        %910 = vmatpush1.bf16.msra.mxu0 0
        %911 = vmatprep.subr.bf16.mxu0 0
        %912 = vmatpush1.bf16.msra.mxu0 0
        %913 = vmatprep.subr.bf16.mxu0 0
        %914 = vmatpush1.bf16.msra.mxu0 0
        %915 = vmatprep.subr.bf16.mxu0 0
        %916 = vmatpush1.bf16.msra.mxu0 0
        %917 = vmatprep.mubr.bf16.mxu0 0
        %918 = vmatmul.mubr.bf16.gmra.mrb[0].mxu0 %v741
        %v919 = vpop.f32.mrb[0].mxu0
        %v920 = vadd.f32 0.0, %v919
        %v921 = vpop.f32.mrb[0].mxu0
        %v922 = vpop.f32.mrb[0].mxu0
        %v923 = vpop.f32.mrb[0].mxu0
        %924 = vdwg.mxu0
        %v925 = vadd.f32 %v884, %v920
        %v926 = vxor.u32 %v925, 2147483648
        %v927 = vmul.f32 %v926, 1.442695
        %v928 = vpow.pop %v927
        %v929 = vadd.f32 %v928, 1.0
        %v930 = vrcp.pop %v929
        %v931 = vmul.f32 1.0, %v930
        %v932 = vld [vmem:[#allocation7] sm:$0xff]
        %v933 = vmul.f32 %v838, %v932
        %v934 = vmul.f32 %v789, %v882
        %v935 = vadd.f32 %v933, %v934
        %v936 = vtanh.pop %v935
        %v937 = vmul.f32 %v931, %v936
        %938 = vst.msk [vmem:[#allocation7] sm:$0xff] %vm294, %v935
        %939 = vst.msk [vmem:[#allocation6] sm:$0xff] %vm294, %v937
        %v940 = vpack.c.bf16 %v937, %v937
        %s941 = smul.addr %s734, 4
        %s942 = scalar_lea.vmem %s241, %s941 [#allocation11]
        %943 = vst.msk [vmem:[%s942] sm:$0xf] %vm732, %v940
        %s944 = smul.u32 %s499, 2
        %s945 = sadd.s32 %s498, %s944
        %v946 = vld [vmem:[#allocation6] sm:$0xff]
        %v947 = vpack.c.bf16 %v946, %v946
        %s948 = smul.u32 %s945, 8
        %s949 = scalar_lea.vmem [#allocation2], %s948
        %v950 = vld [vmem:[%s949] sm:$0xff]
        %v952 = vsel %vm294, %v947, 0
        %954 = vmatprep.subr.bf16.mxu0 0
        %955 = vmatpush1.bf16.msra.mxu0 %v509
        %956 = vmatprep.subr.bf16.mxu0 0
        %957 = vmatpush1.bf16.msra.mxu0 0
        %958 = vmatprep.subr.bf16.mxu0 0
        %959 = vmatpush1.bf16.msra.mxu0 0
        %960 = vmatprep.subr.bf16.mxu0 0
        %961 = vmatpush1.bf16.msra.mxu0 0
        %962 = vmatprep.subr.bf16.mxu0 0
        %963 = vmatpush1.bf16.msra.mxu0 0
        %964 = vmatprep.subr.bf16.mxu0 0
        %965 = vmatpush1.bf16.msra.mxu0 0
        %966 = vmatprep.subr.bf16.mxu0 0
        %967 = vmatpush1.bf16.msra.mxu0 0
        %968 = vmatprep.subr.bf16.mxu0 0
        %969 = vmatpush1.bf16.msra.mxu0 0
        %970 = vmatprep.subr.bf16.mxu0 0
        %971 = vmatpush1.bf16.msra.mxu0 0
        %972 = vmatprep.subr.bf16.mxu0 0
        %973 = vmatpush1.bf16.msra.mxu0 0
        %974 = vmatprep.subr.bf16.mxu0 0
        %975 = vmatpush1.bf16.msra.mxu0 0
        %976 = vmatprep.subr.bf16.mxu0 0
        %977 = vmatpush1.bf16.msra.mxu0 0
        %978 = vmatprep.subr.bf16.mxu0 0
        %979 = vmatpush1.bf16.msra.mxu0 0
        %980 = vmatprep.subr.bf16.mxu0 0
        %981 = vmatpush1.bf16.msra.mxu0 0
        %982 = vmatprep.subr.bf16.mxu0 0
        %983 = vmatpush1.bf16.msra.mxu0 0
        %984 = vmatprep.subr.bf16.mxu0 0
        %985 = vmatpush1.bf16.msra.mxu0 0
        %986 = vmatprep.mubr.bf16.mxu0 0
        %987 = vmatmul.mubr.bf16.gmra.mrb[0].mxu0 %v952
        %v988 = vpop.f32.mrb[0].mxu0
        %v989 = vadd.f32 0.0, %v988
        %v990 = vpop.f32.mrb[0].mxu0
        %v991 = vpop.f32.mrb[0].mxu0
        %v992 = vpop.f32.mrb[0].mxu0
        %993 = vdwg.mxu0
        %v994 = vadd.f32 %v950, %v989
        %v995 = vxor.u32 %v994, 2147483648
        %v996 = vmul.f32 %v995, 1.442695
        %v997 = vpow.pop %v996
        %v998 = vadd.f32 %v997, 1.0
        %v999 = vrcp.pop %v998
        %v1000 = vmul.f32 1.0, %v999
        %s1001 = scalar_lea.vmem [#allocation3], %s948
        %v1002 = vld [vmem:[%s1001] sm:$0xff]
        %1003 = vmatprep.subr.bf16.mxu0 0
        %1004 = vmatpush1.bf16.msra.mxu0 %v567
        %1005 = vmatprep.subr.bf16.mxu0 0
        %1006 = vmatpush1.bf16.msra.mxu0 0
        %1007 = vmatprep.subr.bf16.mxu0 0
        %1008 = vmatpush1.bf16.msra.mxu0 0
        %1009 = vmatprep.subr.bf16.mxu0 0
        %1010 = vmatpush1.bf16.msra.mxu0 0
        %1011 = vmatprep.subr.bf16.mxu0 0
        %1012 = vmatpush1.bf16.msra.mxu0 0
        %1013 = vmatprep.subr.bf16.mxu0 0
        %1014 = vmatpush1.bf16.msra.mxu0 0
        %1015 = vmatprep.subr.bf16.mxu0 0
        %1016 = vmatpush1.bf16.msra.mxu0 0
        %1017 = vmatprep.subr.bf16.mxu0 0
        %1018 = vmatpush1.bf16.msra.mxu0 0
        %1019 = vmatprep.subr.bf16.mxu0 0
        %1020 = vmatpush1.bf16.msra.mxu0 0
        %1021 = vmatprep.subr.bf16.mxu0 0
        %1022 = vmatpush1.bf16.msra.mxu0 0
        %1023 = vmatprep.subr.bf16.mxu0 0
        %1024 = vmatpush1.bf16.msra.mxu0 0
        %1025 = vmatprep.subr.bf16.mxu0 0
        %1026 = vmatpush1.bf16.msra.mxu0 0
        %1027 = vmatprep.subr.bf16.mxu0 0
        %1028 = vmatpush1.bf16.msra.mxu0 0
        %1029 = vmatprep.subr.bf16.mxu0 0
        %1030 = vmatpush1.bf16.msra.mxu0 0
        %1031 = vmatprep.subr.bf16.mxu0 0
        %1032 = vmatpush1.bf16.msra.mxu0 0
        %1033 = vmatprep.subr.bf16.mxu0 0
        %1034 = vmatpush1.bf16.msra.mxu0 0
        %1035 = vmatprep.mubr.bf16.mxu0 0
        %1036 = vmatmul.mubr.bf16.gmra.mrb[0].mxu0 %v952
        %v1037 = vpop.f32.mrb[0].mxu0
        %v1038 = vadd.f32 0.0, %v1037
        %v1039 = vpop.f32.mrb[0].mxu0
        %v1040 = vpop.f32.mrb[0].mxu0
        %v1041 = vpop.f32.mrb[0].mxu0
        %1042 = vdwg.mxu0
        %v1043 = vadd.f32 %v1002, %v1038
        %v1044 = vxor.u32 %v1043, 2147483648
        %v1045 = vmul.f32 %v1044, 1.442695
        %v1046 = vpow.pop %v1045
        %v1047 = vadd.f32 %v1046, 1.0
        %v1048 = vrcp.pop %v1047
        %v1049 = vmul.f32 1.0, %v1048
        %s1050 = scalar_lea.vmem [#allocation4], %s948
        %v1051 = vld [vmem:[%s1050] sm:$0xff]
        %1052 = vmatprep.subr.bf16.mxu0 0
        %1053 = vmatpush1.bf16.msra.mxu0 %v622
        %1054 = vmatprep.subr.bf16.mxu0 0
        %1055 = vmatpush1.bf16.msra.mxu0 0
        %1056 = vmatprep.subr.bf16.mxu0 0
        %1057 = vmatpush1.bf16.msra.mxu0 0
        %1058 = vmatprep.subr.bf16.mxu0 0
        %1059 = vmatpush1.bf16.msra.mxu0 0
        %1060 = vmatprep.subr.bf16.mxu0 0
        %1061 = vmatpush1.bf16.msra.mxu0 0
        %1062 = vmatprep.subr.bf16.mxu0 0
        %1063 = vmatpush1.bf16.msra.mxu0 0
        %1064 = vmatprep.subr.bf16.mxu0 0
        %1065 = vmatpush1.bf16.msra.mxu0 0
        %1066 = vmatprep.subr.bf16.mxu0 0
        %1067 = vmatpush1.bf16.msra.mxu0 0
        %1068 = vmatprep.subr.bf16.mxu0 0
        %1069 = vmatpush1.bf16.msra.mxu0 0
        %1070 = vmatprep.subr.bf16.mxu0 0
        %1071 = vmatpush1.bf16.msra.mxu0 0
        %1072 = vmatprep.subr.bf16.mxu0 0
        %1073 = vmatpush1.bf16.msra.mxu0 0
        %1074 = vmatprep.subr.bf16.mxu0 0
        %1075 = vmatpush1.bf16.msra.mxu0 0
        %1076 = vmatprep.subr.bf16.mxu0 0
        %1077 = vmatpush1.bf16.msra.mxu0 0
        %1078 = vmatprep.subr.bf16.mxu0 0
        %1079 = vmatpush1.bf16.msra.mxu0 0
        %1080 = vmatprep.subr.bf16.mxu0 0
        %1081 = vmatpush1.bf16.msra.mxu0 0
        %1082 = vmatprep.subr.bf16.mxu0 0
        %1083 = vmatpush1.bf16.msra.mxu0 0
        %1084 = vmatprep.mubr.bf16.mxu0 0
        %1085 = vmatmul.mubr.bf16.gmra.mrb[0].mxu0 %v952
        %v1086 = vpop.f32.mrb[0].mxu0
        %v1087 = vadd.f32 0.0, %v1086
        %v1088 = vpop.f32.mrb[0].mxu0
        %v1089 = vpop.f32.mrb[0].mxu0
        %v1090 = vpop.f32.mrb[0].mxu0
        %1091 = vdwg.mxu0
        %v1092 = vadd.f32 %v1051, %v1087
        %v1093 = vtanh.pop %v1092
        %s1094 = scalar_lea.vmem [#allocation5], %s948
        %v1095 = vld [vmem:[%s1094] sm:$0xff]
        %1096 = vmatprep.subr.bf16.mxu0 0
        %1097 = vmatpush1.bf16.msra.mxu0 %v672
        %1098 = vmatprep.subr.bf16.mxu0 0
        %1099 = vmatpush1.bf16.msra.mxu0 0
        %1100 = vmatprep.subr.bf16.mxu0 0
        %1101 = vmatpush1.bf16.msra.mxu0 0
        %1102 = vmatprep.subr.bf16.mxu0 0
        %1103 = vmatpush1.bf16.msra.mxu0 0
        %1104 = vmatprep.subr.bf16.mxu0 0
        %1105 = vmatpush1.bf16.msra.mxu0 0
        %1106 = vmatprep.subr.bf16.mxu0 0
        %1107 = vmatpush1.bf16.msra.mxu0 0
        %1108 = vmatprep.subr.bf16.mxu0 0
        %1109 = vmatpush1.bf16.msra.mxu0 0
        %1110 = vmatprep.subr.bf16.mxu0 0
        %1111 = vmatpush1.bf16.msra.mxu0 0
        %1112 = vmatprep.subr.bf16.mxu0 0
        %1113 = vmatpush1.bf16.msra.mxu0 0
        %1114 = vmatprep.subr.bf16.mxu0 0
        %1115 = vmatpush1.bf16.msra.mxu0 0
        %1116 = vmatprep.subr.bf16.mxu0 0
        %1117 = vmatpush1.bf16.msra.mxu0 0
        %1118 = vmatprep.subr.bf16.mxu0 0
        %1119 = vmatpush1.bf16.msra.mxu0 0
        %1120 = vmatprep.subr.bf16.mxu0 0
        %1121 = vmatpush1.bf16.msra.mxu0 0
        %1122 = vmatprep.subr.bf16.mxu0 0
        %1123 = vmatpush1.bf16.msra.mxu0 0
        %1124 = vmatprep.subr.bf16.mxu0 0
        %1125 = vmatpush1.bf16.msra.mxu0 0
        %1126 = vmatprep.subr.bf16.mxu0 0
        %1127 = vmatpush1.bf16.msra.mxu0 0
        %1128 = vmatprep.mubr.bf16.mxu0 0
        %1129 = vmatmul.mubr.bf16.gmra.mrb[0].mxu0 %v952
        %v1130 = vpop.f32.mrb[0].mxu0
        %v1131 = vadd.f32 0.0, %v1130
        %v1132 = vpop.f32.mrb[0].mxu0
        %v1133 = vpop.f32.mrb[0].mxu0
        %v1134 = vpop.f32.mrb[0].mxu0
        %1135 = vdwg.mxu0
        %v1136 = vadd.f32 %v1095, %v1131
        %v1137 = vxor.u32 %v1136, 2147483648
        %v1138 = vmul.f32 %v1137, 1.442695
        %v1139 = vpow.pop %v1138
        %v1140 = vadd.f32 %v1139, 1.0
        %v1141 = vrcp.pop %v1140
        %v1142 = vmul.f32 1.0, %v1141
        %v1143 = vld [vmem:[#allocation7] sm:$0xff]
        %v1144 = vmul.f32 %v1049, %v1143
        %v1145 = vmul.f32 %v1000, %v1093
        %v1146 = vadd.f32 %v1144, %v1145
        %v1147 = vtanh.pop %v1146
        %v1148 = vmul.f32 %v1142, %v1147
        %1149 = vst.msk [vmem:[#allocation7] sm:$0xff] %vm294, %v1146
        %1150 = vst.msk [vmem:[#allocation6] sm:$0xff] %vm294, %v1148
        %v1151 = vpack.c.bf16 %v1148, %v1148
        %s1152 = smul.addr %s945, 4
        %s1153 = scalar_lea.vmem %s241, %s1152 [#allocation11]
        %1154 = vst.msk [vmem:[%s1153] sm:$0xf] %vm732, %v1151
        %s1155 = smul.u32 %s499, 3
        %s1156 = sadd.s32 %s498, %s1155
        %v1157 = vld [vmem:[#allocation6] sm:$0xff]
        %v1158 = vpack.c.bf16 %v1157, %v1157
        %s1159 = smul.u32 %s1156, 8
        %s1160 = scalar_lea.vmem [#allocation2], %s1159
        %v1161 = vld [vmem:[%s1160] sm:$0xff]
        %v1163 = vsel %vm294, %v1158, 0
        %1165 = vmatprep.subr.bf16.mxu0 0
        %1166 = vmatpush1.bf16.msra.mxu0 %v509
        %1167 = vmatprep.subr.bf16.mxu0 0
        %1168 = vmatpush1.bf16.msra.mxu0 0
        %1169 = vmatprep.subr.bf16.mxu0 0
        %1170 = vmatpush1.bf16.msra.mxu0 0
        %1171 = vmatprep.subr.bf16.mxu0 0
        %1172 = vmatpush1.bf16.msra.mxu0 0
        %1173 = vmatprep.subr.bf16.mxu0 0
        %1174 = vmatpush1.bf16.msra.mxu0 0
        %1175 = vmatprep.subr.bf16.mxu0 0
        %1176 = vmatpush1.bf16.msra.mxu0 0
        %1177 = vmatprep.subr.bf16.mxu0 0
        %1178 = vmatpush1.bf16.msra.mxu0 0
        %1179 = vmatprep.subr.bf16.mxu0 0
        %1180 = vmatpush1.bf16.msra.mxu0 0
        %1181 = vmatprep.subr.bf16.mxu0 0
        %1182 = vmatpush1.bf16.msra.mxu0 0
        %1183 = vmatprep.subr.bf16.mxu0 0
        %1184 = vmatpush1.bf16.msra.mxu0 0
        %1185 = vmatprep.subr.bf16.mxu0 0
        %1186 = vmatpush1.bf16.msra.mxu0 0
        %1187 = vmatprep.subr.bf16.mxu0 0
        %1188 = vmatpush1.bf16.msra.mxu0 0
        %1189 = vmatprep.subr.bf16.mxu0 0
        %1190 = vmatpush1.bf16.msra.mxu0 0
        %1191 = vmatprep.subr.bf16.mxu0 0
        %1192 = vmatpush1.bf16.msra.mxu0 0
        %1193 = vmatprep.subr.bf16.mxu0 0
        %1194 = vmatpush1.bf16.msra.mxu0 0
        %1195 = vmatprep.subr.bf16.mxu0 0
        %1196 = vmatpush1.bf16.msra.mxu0 0
        %1197 = vmatprep.mubr.bf16.mxu0 0
        %1198 = vmatmul.mubr.bf16.gmra.mrb[0].mxu0 %v1163
        %v1199 = vpop.f32.mrb[0].mxu0
        %v1200 = vadd.f32 0.0, %v1199
        %v1201 = vpop.f32.mrb[0].mxu0
        %v1202 = vpop.f32.mrb[0].mxu0
        %v1203 = vpop.f32.mrb[0].mxu0
        %1204 = vdwg.mxu0
        %v1205 = vadd.f32 %v1161, %v1200
        %v1206 = vxor.u32 %v1205, 2147483648
        %v1207 = vmul.f32 %v1206, 1.442695
        %v1208 = vpow.pop %v1207
        %v1209 = vadd.f32 %v1208, 1.0
        %v1210 = vrcp.pop %v1209
        %v1211 = vmul.f32 1.0, %v1210
        %s1212 = scalar_lea.vmem [#allocation3], %s1159
        %v1213 = vld [vmem:[%s1212] sm:$0xff]
        %1214 = vmatprep.subr.bf16.mxu0 0
        %1215 = vmatpush1.bf16.msra.mxu0 %v567
        %1216 = vmatprep.subr.bf16.mxu0 0
        %1217 = vmatpush1.bf16.msra.mxu0 0
        %1218 = vmatprep.subr.bf16.mxu0 0
        %1219 = vmatpush1.bf16.msra.mxu0 0
        %1220 = vmatprep.subr.bf16.mxu0 0
        %1221 = vmatpush1.bf16.msra.mxu0 0
        %1222 = vmatprep.subr.bf16.mxu0 0
        %1223 = vmatpush1.bf16.msra.mxu0 0
        %1224 = vmatprep.subr.bf16.mxu0 0
        %1225 = vmatpush1.bf16.msra.mxu0 0
        %1226 = vmatprep.subr.bf16.mxu0 0
        %1227 = vmatpush1.bf16.msra.mxu0 0
        %1228 = vmatprep.subr.bf16.mxu0 0
        %1229 = vmatpush1.bf16.msra.mxu0 0
        %1230 = vmatprep.subr.bf16.mxu0 0
        %1231 = vmatpush1.bf16.msra.mxu0 0
        %1232 = vmatprep.subr.bf16.mxu0 0
        %1233 = vmatpush1.bf16.msra.mxu0 0
        %1234 = vmatprep.subr.bf16.mxu0 0
        %1235 = vmatpush1.bf16.msra.mxu0 0
        %1236 = vmatprep.subr.bf16.mxu0 0
        %1237 = vmatpush1.bf16.msra.mxu0 0
        %1238 = vmatprep.subr.bf16.mxu0 0
        %1239 = vmatpush1.bf16.msra.mxu0 0
        %1240 = vmatprep.subr.bf16.mxu0 0
        %1241 = vmatpush1.bf16.msra.mxu0 0
        %1242 = vmatprep.subr.bf16.mxu0 0
        %1243 = vmatpush1.bf16.msra.mxu0 0
        %1244 = vmatprep.subr.bf16.mxu0 0
        %1245 = vmatpush1.bf16.msra.mxu0 0
        %1246 = vmatprep.mubr.bf16.mxu0 0
        %1247 = vmatmul.mubr.bf16.gmra.mrb[0].mxu0 %v1163
        %v1248 = vpop.f32.mrb[0].mxu0
        %v1249 = vadd.f32 0.0, %v1248
        %v1250 = vpop.f32.mrb[0].mxu0
        %v1251 = vpop.f32.mrb[0].mxu0
        %v1252 = vpop.f32.mrb[0].mxu0
        %1253 = vdwg.mxu0
        %v1254 = vadd.f32 %v1213, %v1249
        %v1255 = vxor.u32 %v1254, 2147483648
        %v1256 = vmul.f32 %v1255, 1.442695
        %v1257 = vpow.pop %v1256
        %v1258 = vadd.f32 %v1257, 1.0
        %v1259 = vrcp.pop %v1258
        %v1260 = vmul.f32 1.0, %v1259
        %s1261 = scalar_lea.vmem [#allocation4], %s1159
        %v1262 = vld [vmem:[%s1261] sm:$0xff]
        %1263 = vmatprep.subr.bf16.mxu0 0
        %1264 = vmatpush1.bf16.msra.mxu0 %v622
        %1265 = vmatprep.subr.bf16.mxu0 0
        %1266 = vmatpush1.bf16.msra.mxu0 0
        %1267 = vmatprep.subr.bf16.mxu0 0
        %1268 = vmatpush1.bf16.msra.mxu0 0
        %1269 = vmatprep.subr.bf16.mxu0 0
        %1270 = vmatpush1.bf16.msra.mxu0 0
        %1271 = vmatprep.subr.bf16.mxu0 0
        %1272 = vmatpush1.bf16.msra.mxu0 0
        %1273 = vmatprep.subr.bf16.mxu0 0
        %1274 = vmatpush1.bf16.msra.mxu0 0
        %1275 = vmatprep.subr.bf16.mxu0 0
        %1276 = vmatpush1.bf16.msra.mxu0 0
        %1277 = vmatprep.subr.bf16.mxu0 0
        %1278 = vmatpush1.bf16.msra.mxu0 0
        %1279 = vmatprep.subr.bf16.mxu0 0
        %1280 = vmatpush1.bf16.msra.mxu0 0
        %1281 = vmatprep.subr.bf16.mxu0 0
        %1282 = vmatpush1.bf16.msra.mxu0 0
        %1283 = vmatprep.subr.bf16.mxu0 0
        %1284 = vmatpush1.bf16.msra.mxu0 0
        %1285 = vmatprep.subr.bf16.mxu0 0
        %1286 = vmatpush1.bf16.msra.mxu0 0
        %1287 = vmatprep.subr.bf16.mxu0 0
        %1288 = vmatpush1.bf16.msra.mxu0 0
        %1289 = vmatprep.subr.bf16.mxu0 0
        %1290 = vmatpush1.bf16.msra.mxu0 0
        %1291 = vmatprep.subr.bf16.mxu0 0
        %1292 = vmatpush1.bf16.msra.mxu0 0
        %1293 = vmatprep.subr.bf16.mxu0 0
        %1294 = vmatpush1.bf16.msra.mxu0 0
        %1295 = vmatprep.mubr.bf16.mxu0 0
        %1296 = vmatmul.mubr.bf16.gmra.mrb[0].mxu0 %v1163
        %v1297 = vpop.f32.mrb[0].mxu0
        %v1298 = vadd.f32 0.0, %v1297
        %v1299 = vpop.f32.mrb[0].mxu0
        %v1300 = vpop.f32.mrb[0].mxu0
        %v1301 = vpop.f32.mrb[0].mxu0
        %1302 = vdwg.mxu0
        %v1303 = vadd.f32 %v1262, %v1298
        %v1304 = vtanh.pop %v1303
        %s1305 = scalar_lea.vmem [#allocation5], %s1159
        %v1306 = vld [vmem:[%s1305] sm:$0xff]
        %1307 = vmatprep.subr.bf16.mxu0 0
        %1308 = vmatpush1.bf16.msra.mxu0 %v672
        %1309 = vmatprep.subr.bf16.mxu0 0
        %1310 = vmatpush1.bf16.msra.mxu0 0
        %1311 = vmatprep.subr.bf16.mxu0 0
        %1312 = vmatpush1.bf16.msra.mxu0 0
        %1313 = vmatprep.subr.bf16.mxu0 0
        %1314 = vmatpush1.bf16.msra.mxu0 0
        %1315 = vmatprep.subr.bf16.mxu0 0
        %1316 = vmatpush1.bf16.msra.mxu0 0
        %1317 = vmatprep.subr.bf16.mxu0 0
        %1318 = vmatpush1.bf16.msra.mxu0 0
        %1319 = vmatprep.subr.bf16.mxu0 0
        %1320 = vmatpush1.bf16.msra.mxu0 0
        %1321 = vmatprep.subr.bf16.mxu0 0
        %1322 = vmatpush1.bf16.msra.mxu0 0
        %1323 = vmatprep.subr.bf16.mxu0 0
        %1324 = vmatpush1.bf16.msra.mxu0 0
        %1325 = vmatprep.subr.bf16.mxu0 0
        %1326 = vmatpush1.bf16.msra.mxu0 0
        %1327 = vmatprep.subr.bf16.mxu0 0
        %1328 = vmatpush1.bf16.msra.mxu0 0
        %1329 = vmatprep.subr.bf16.mxu0 0
        %1330 = vmatpush1.bf16.msra.mxu0 0
        %1331 = vmatprep.subr.bf16.mxu0 0
        %1332 = vmatpush1.bf16.msra.mxu0 0
        %1333 = vmatprep.subr.bf16.mxu0 0
        %1334 = vmatpush1.bf16.msra.mxu0 0
        %1335 = vmatprep.subr.bf16.mxu0 0
        %1336 = vmatpush1.bf16.msra.mxu0 0
        %1337 = vmatprep.subr.bf16.mxu0 0
        %1338 = vmatpush1.bf16.msra.mxu0 0
        %1339 = vmatprep.mubr.bf16.mxu0 0
        %1340 = vmatmul.mubr.bf16.gmra.mrb[0].mxu0 %v1163
        %v1341 = vpop.f32.mrb[0].mxu0
        %v1342 = vadd.f32 0.0, %v1341
        %v1343 = vpop.f32.mrb[0].mxu0
        %v1344 = vpop.f32.mrb[0].mxu0
        %v1345 = vpop.f32.mrb[0].mxu0
        %1346 = vdwg.mxu0
        %v1347 = vadd.f32 %v1306, %v1342
        %v1348 = vxor.u32 %v1347, 2147483648
        %v1349 = vmul.f32 %v1348, 1.442695
        %v1350 = vpow.pop %v1349
        %v1351 = vadd.f32 %v1350, 1.0
        %v1352 = vrcp.pop %v1351
        %v1353 = vmul.f32 1.0, %v1352
        %v1354 = vld [vmem:[#allocation7] sm:$0xff]
        %v1355 = vmul.f32 %v1260, %v1354
        %v1356 = vmul.f32 %v1211, %v1304
        %v1357 = vadd.f32 %v1355, %v1356
        %v1358 = vtanh.pop %v1357
        %v1359 = vmul.f32 %v1353, %v1358
        %1360 = vst.msk [vmem:[#allocation7] sm:$0xff] %vm294, %v1357
        %1361 = vst.msk [vmem:[#allocation6] sm:$0xff] %vm294, %v1359
        %v1362 = vpack.c.bf16 %v1359, %v1359
        %s1363 = smul.addr %s1156, 4
        %s1364 = scalar_lea.vmem %s241, %s1363 [#allocation11]
        %1365 = vst.msk [vmem:[%s1364] sm:$0xf] %vm732, %v1362
        %s1366 = smul.u32 %s499, 4
        %s1367 = sadd.s32 %s498, %s1366
        %v1368 = vld [vmem:[#allocation6] sm:$0xff]
        %v1369 = vpack.c.bf16 %v1368, %v1368
        %s1370 = smul.u32 %s1367, 8
        %s1371 = scalar_lea.vmem [#allocation2], %s1370
        %v1372 = vld [vmem:[%s1371] sm:$0xff]
        %v1374 = vsel %vm294, %v1369, 0
        %1376 = vmatprep.subr.bf16.mxu0 0
        %1377 = vmatpush1.bf16.msra.mxu0 %v509
        %1378 = vmatprep.subr.bf16.mxu0 0
        %1379 = vmatpush1.bf16.msra.mxu0 0
        %1380 = vmatprep.subr.bf16.mxu0 0
        %1381 = vmatpush1.bf16.msra.mxu0 0
        %1382 = vmatprep.subr.bf16.mxu0 0
        %1383 = vmatpush1.bf16.msra.mxu0 0
        %1384 = vmatprep.subr.bf16.mxu0 0
        %1385 = vmatpush1.bf16.msra.mxu0 0
        %1386 = vmatprep.subr.bf16.mxu0 0
        %1387 = vmatpush1.bf16.msra.mxu0 0
        %1388 = vmatprep.subr.bf16.mxu0 0
        %1389 = vmatpush1.bf16.msra.mxu0 0
        %1390 = vmatprep.subr.bf16.mxu0 0
        %1391 = vmatpush1.bf16.msra.mxu0 0
        %1392 = vmatprep.subr.bf16.mxu0 0
        %1393 = vmatpush1.bf16.msra.mxu0 0
        %1394 = vmatprep.subr.bf16.mxu0 0
        %1395 = vmatpush1.bf16.msra.mxu0 0
        %1396 = vmatprep.subr.bf16.mxu0 0
        %1397 = vmatpush1.bf16.msra.mxu0 0
        %1398 = vmatprep.subr.bf16.mxu0 0
        %1399 = vmatpush1.bf16.msra.mxu0 0
        %1400 = vmatprep.subr.bf16.mxu0 0
        %1401 = vmatpush1.bf16.msra.mxu0 0
        %1402 = vmatprep.subr.bf16.mxu0 0
        %1403 = vmatpush1.bf16.msra.mxu0 0
        %1404 = vmatprep.subr.bf16.mxu0 0
        %1405 = vmatpush1.bf16.msra.mxu0 0
        %1406 = vmatprep.subr.bf16.mxu0 0
        %1407 = vmatpush1.bf16.msra.mxu0 0
        %1408 = vmatprep.mubr.bf16.mxu0 0
        %1409 = vmatmul.mubr.bf16.gmra.mrb[0].mxu0 %v1374
        %v1410 = vpop.f32.mrb[0].mxu0
        %v1411 = vadd.f32 0.0, %v1410
        %v1412 = vpop.f32.mrb[0].mxu0
        %v1413 = vpop.f32.mrb[0].mxu0
        %v1414 = vpop.f32.mrb[0].mxu0
        %1415 = vdwg.mxu0
        %v1416 = vadd.f32 %v1372, %v1411
        %v1417 = vxor.u32 %v1416, 2147483648
        %v1418 = vmul.f32 %v1417, 1.442695
        %v1419 = vpow.pop %v1418
        %v1420 = vadd.f32 %v1419, 1.0
        %v1421 = vrcp.pop %v1420
        %v1422 = vmul.f32 1.0, %v1421
        %s1423 = scalar_lea.vmem [#allocation3], %s1370
        %v1424 = vld [vmem:[%s1423] sm:$0xff]
        %1425 = vmatprep.subr.bf16.mxu0 0
        %1426 = vmatpush1.bf16.msra.mxu0 %v567
        %1427 = vmatprep.subr.bf16.mxu0 0
        %1428 = vmatpush1.bf16.msra.mxu0 0
        %1429 = vmatprep.subr.bf16.mxu0 0
        %1430 = vmatpush1.bf16.msra.mxu0 0
        %1431 = vmatprep.subr.bf16.mxu0 0
        %1432 = vmatpush1.bf16.msra.mxu0 0
        %1433 = vmatprep.subr.bf16.mxu0 0
        %1434 = vmatpush1.bf16.msra.mxu0 0
        %1435 = vmatprep.subr.bf16.mxu0 0
        %1436 = vmatpush1.bf16.msra.mxu0 0
        %1437 = vmatprep.subr.bf16.mxu0 0
        %1438 = vmatpush1.bf16.msra.mxu0 0
        %1439 = vmatprep.subr.bf16.mxu0 0
        %1440 = vmatpush1.bf16.msra.mxu0 0
        %1441 = vmatprep.subr.bf16.mxu0 0
        %1442 = vmatpush1.bf16.msra.mxu0 0
        %1443 = vmatprep.subr.bf16.mxu0 0
        %1444 = vmatpush1.bf16.msra.mxu0 0
        %1445 = vmatprep.subr.bf16.mxu0 0
        %1446 = vmatpush1.bf16.msra.mxu0 0
        %1447 = vmatprep.subr.bf16.mxu0 0
        %1448 = vmatpush1.bf16.msra.mxu0 0
        %1449 = vmatprep.subr.bf16.mxu0 0
        %1450 = vmatpush1.bf16.msra.mxu0 0
        %1451 = vmatprep.subr.bf16.mxu0 0
        %1452 = vmatpush1.bf16.msra.mxu0 0
        %1453 = vmatprep.subr.bf16.mxu0 0
        %1454 = vmatpush1.bf16.msra.mxu0 0
        %1455 = vmatprep.subr.bf16.mxu0 0
        %1456 = vmatpush1.bf16.msra.mxu0 0
        %1457 = vmatprep.mubr.bf16.mxu0 0
        %1458 = vmatmul.mubr.bf16.gmra.mrb[0].mxu0 %v1374
        %v1459 = vpop.f32.mrb[0].mxu0
        %v1460 = vadd.f32 0.0, %v1459
        %v1461 = vpop.f32.mrb[0].mxu0
        %v1462 = vpop.f32.mrb[0].mxu0
        %v1463 = vpop.f32.mrb[0].mxu0
        %1464 = vdwg.mxu0
        %v1465 = vadd.f32 %v1424, %v1460
        %v1466 = vxor.u32 %v1465, 2147483648
        %v1467 = vmul.f32 %v1466, 1.442695
        %v1468 = vpow.pop %v1467
        %v1469 = vadd.f32 %v1468, 1.0
        %v1470 = vrcp.pop %v1469
        %v1471 = vmul.f32 1.0, %v1470
        %s1472 = scalar_lea.vmem [#allocation4], %s1370
        %v1473 = vld [vmem:[%s1472] sm:$0xff]
        %1474 = vmatprep.subr.bf16.mxu0 0
        %1475 = vmatpush1.bf16.msra.mxu0 %v622
        %1476 = vmatprep.subr.bf16.mxu0 0
        %1477 = vmatpush1.bf16.msra.mxu0 0
        %1478 = vmatprep.subr.bf16.mxu0 0
        %1479 = vmatpush1.bf16.msra.mxu0 0
        %1480 = vmatprep.subr.bf16.mxu0 0
        %1481 = vmatpush1.bf16.msra.mxu0 0
        %1482 = vmatprep.subr.bf16.mxu0 0
        %1483 = vmatpush1.bf16.msra.mxu0 0
        %1484 = vmatprep.subr.bf16.mxu0 0
        %1485 = vmatpush1.bf16.msra.mxu0 0
        %1486 = vmatprep.subr.bf16.mxu0 0
        %1487 = vmatpush1.bf16.msra.mxu0 0
        %1488 = vmatprep.subr.bf16.mxu0 0
        %1489 = vmatpush1.bf16.msra.mxu0 0
        %1490 = vmatprep.subr.bf16.mxu0 0
        %1491 = vmatpush1.bf16.msra.mxu0 0
        %1492 = vmatprep.subr.bf16.mxu0 0
        %1493 = vmatpush1.bf16.msra.mxu0 0
        %1494 = vmatprep.subr.bf16.mxu0 0
        %1495 = vmatpush1.bf16.msra.mxu0 0
        %1496 = vmatprep.subr.bf16.mxu0 0
        %1497 = vmatpush1.bf16.msra.mxu0 0
        %1498 = vmatprep.subr.bf16.mxu0 0
        %1499 = vmatpush1.bf16.msra.mxu0 0
        %1500 = vmatprep.subr.bf16.mxu0 0
        %1501 = vmatpush1.bf16.msra.mxu0 0
        %1502 = vmatprep.subr.bf16.mxu0 0
        %1503 = vmatpush1.bf16.msra.mxu0 0
        %1504 = vmatprep.subr.bf16.mxu0 0
        %1505 = vmatpush1.bf16.msra.mxu0 0
        %1506 = vmatprep.mubr.bf16.mxu0 0
        %1507 = vmatmul.mubr.bf16.gmra.mrb[0].mxu0 %v1374
        %v1508 = vpop.f32.mrb[0].mxu0
        %v1509 = vadd.f32 0.0, %v1508
        %v1510 = vpop.f32.mrb[0].mxu0
        %v1511 = vpop.f32.mrb[0].mxu0
        %v1512 = vpop.f32.mrb[0].mxu0
        %1513 = vdwg.mxu0
        %v1514 = vadd.f32 %v1473, %v1509
        %v1515 = vtanh.pop %v1514
        %s1516 = scalar_lea.vmem [#allocation5], %s1370
        %v1517 = vld [vmem:[%s1516] sm:$0xff]
        %1518 = vmatprep.subr.bf16.mxu0 0
        %1519 = vmatpush1.bf16.msra.mxu0 %v672
        %1520 = vmatprep.subr.bf16.mxu0 0
        %1521 = vmatpush1.bf16.msra.mxu0 0
        %1522 = vmatprep.subr.bf16.mxu0 0
        %1523 = vmatpush1.bf16.msra.mxu0 0
        %1524 = vmatprep.subr.bf16.mxu0 0
        %1525 = vmatpush1.bf16.msra.mxu0 0
        %1526 = vmatprep.subr.bf16.mxu0 0
        %1527 = vmatpush1.bf16.msra.mxu0 0
        %1528 = vmatprep.subr.bf16.mxu0 0
        %1529 = vmatpush1.bf16.msra.mxu0 0
        %1530 = vmatprep.subr.bf16.mxu0 0
        %1531 = vmatpush1.bf16.msra.mxu0 0
        %1532 = vmatprep.subr.bf16.mxu0 0
        %1533 = vmatpush1.bf16.msra.mxu0 0
        %1534 = vmatprep.subr.bf16.mxu0 0
        %1535 = vmatpush1.bf16.msra.mxu0 0
        %1536 = vmatprep.subr.bf16.mxu0 0
        %1537 = vmatpush1.bf16.msra.mxu0 0
        %1538 = vmatprep.subr.bf16.mxu0 0
        %1539 = vmatpush1.bf16.msra.mxu0 0
        %1540 = vmatprep.subr.bf16.mxu0 0
        %1541 = vmatpush1.bf16.msra.mxu0 0
        %1542 = vmatprep.subr.bf16.mxu0 0
        %1543 = vmatpush1.bf16.msra.mxu0 0
        %1544 = vmatprep.subr.bf16.mxu0 0
        %1545 = vmatpush1.bf16.msra.mxu0 0
        %1546 = vmatprep.subr.bf16.mxu0 0
        %1547 = vmatpush1.bf16.msra.mxu0 0
        %1548 = vmatprep.subr.bf16.mxu0 0
        %1549 = vmatpush1.bf16.msra.mxu0 0
        %1550 = vmatprep.mubr.bf16.mxu0 0
        %1551 = vmatmul.mubr.bf16.gmra.mrb[0].mxu0 %v1374
        %v1552 = vpop.f32.mrb[0].mxu0
        %v1553 = vadd.f32 0.0, %v1552
        %v1554 = vpop.f32.mrb[0].mxu0
        %v1555 = vpop.f32.mrb[0].mxu0
        %v1556 = vpop.f32.mrb[0].mxu0
        %1557 = vdwg.mxu0
        %v1558 = vadd.f32 %v1517, %v1553
        %v1559 = vxor.u32 %v1558, 2147483648
        %v1560 = vmul.f32 %v1559, 1.442695
        %v1561 = vpow.pop %v1560
        %v1562 = vadd.f32 %v1561, 1.0
        %v1563 = vrcp.pop %v1562
        %v1564 = vmul.f32 1.0, %v1563
        %v1565 = vld [vmem:[#allocation7] sm:$0xff]
        %v1566 = vmul.f32 %v1471, %v1565
        %v1567 = vmul.f32 %v1422, %v1515
        %v1568 = vadd.f32 %v1566, %v1567
        %v1569 = vtanh.pop %v1568
        %v1570 = vmul.f32 %v1564, %v1569
        %1571 = vst.msk [vmem:[#allocation7] sm:$0xff] %vm294, %v1568
        %1572 = vst.msk [vmem:[#allocation6] sm:$0xff] %vm294, %v1570
        %v1573 = vpack.c.bf16 %v1570, %v1570
        %s1574 = smul.addr %s1367, 4
        %s1575 = scalar_lea.vmem %s241, %s1574 [#allocation11]
        %1576 = vst.msk [vmem:[%s1575] sm:$0xf] %vm732, %v1573
        %s1577 = smul.u32 %s499, 5
        %s1578 = sadd.s32 %s498, %s1577
        %v1579 = vld [vmem:[#allocation6] sm:$0xff]
        %v1580 = vpack.c.bf16 %v1579, %v1579
        %s1581 = smul.u32 %s1578, 8
        %s1582 = scalar_lea.vmem [#allocation2], %s1581
        %v1583 = vld [vmem:[%s1582] sm:$0xff]
        %v1585 = vsel %vm294, %v1580, 0
        %1587 = vmatprep.subr.bf16.mxu0 0
        %1588 = vmatpush1.bf16.msra.mxu0 %v509
        %1589 = vmatprep.subr.bf16.mxu0 0
        %1590 = vmatpush1.bf16.msra.mxu0 0
        %1591 = vmatprep.subr.bf16.mxu0 0
        %1592 = vmatpush1.bf16.msra.mxu0 0
        %1593 = vmatprep.subr.bf16.mxu0 0
        %1594 = vmatpush1.bf16.msra.mxu0 0
        %1595 = vmatprep.subr.bf16.mxu0 0
        %1596 = vmatpush1.bf16.msra.mxu0 0
        %1597 = vmatprep.subr.bf16.mxu0 0
        %1598 = vmatpush1.bf16.msra.mxu0 0
        %1599 = vmatprep.subr.bf16.mxu0 0
        %1600 = vmatpush1.bf16.msra.mxu0 0
        %1601 = vmatprep.subr.bf16.mxu0 0
        %1602 = vmatpush1.bf16.msra.mxu0 0
        %1603 = vmatprep.subr.bf16.mxu0 0
        %1604 = vmatpush1.bf16.msra.mxu0 0
        %1605 = vmatprep.subr.bf16.mxu0 0
        %1606 = vmatpush1.bf16.msra.mxu0 0
        %1607 = vmatprep.subr.bf16.mxu0 0
        %1608 = vmatpush1.bf16.msra.mxu0 0
        %1609 = vmatprep.subr.bf16.mxu0 0
        %1610 = vmatpush1.bf16.msra.mxu0 0
        %1611 = vmatprep.subr.bf16.mxu0 0
        %1612 = vmatpush1.bf16.msra.mxu0 0
        %1613 = vmatprep.subr.bf16.mxu0 0
        %1614 = vmatpush1.bf16.msra.mxu0 0
        %1615 = vmatprep.subr.bf16.mxu0 0
        %1616 = vmatpush1.bf16.msra.mxu0 0
        %1617 = vmatprep.subr.bf16.mxu0 0
        %1618 = vmatpush1.bf16.msra.mxu0 0
        %1619 = vmatprep.mubr.bf16.mxu0 0
        %1620 = vmatmul.mubr.bf16.gmra.mrb[0].mxu0 %v1585
        %v1621 = vpop.f32.mrb[0].mxu0
        %v1622 = vadd.f32 0.0, %v1621
        %v1623 = vpop.f32.mrb[0].mxu0
        %v1624 = vpop.f32.mrb[0].mxu0
        %v1625 = vpop.f32.mrb[0].mxu0
        %1626 = vdwg.mxu0
        %v1627 = vadd.f32 %v1583, %v1622
        %v1628 = vxor.u32 %v1627, 2147483648
        %v1629 = vmul.f32 %v1628, 1.442695
        %v1630 = vpow.pop %v1629
        %v1631 = vadd.f32 %v1630, 1.0
        %v1632 = vrcp.pop %v1631
        %v1633 = vmul.f32 1.0, %v1632
        %s1634 = scalar_lea.vmem [#allocation3], %s1581
        %v1635 = vld [vmem:[%s1634] sm:$0xff]
        %1636 = vmatprep.subr.bf16.mxu0 0
        %1637 = vmatpush1.bf16.msra.mxu0 %v567
        %1638 = vmatprep.subr.bf16.mxu0 0
        %1639 = vmatpush1.bf16.msra.mxu0 0
        %1640 = vmatprep.subr.bf16.mxu0 0
        %1641 = vmatpush1.bf16.msra.mxu0 0
        %1642 = vmatprep.subr.bf16.mxu0 0
        %1643 = vmatpush1.bf16.msra.mxu0 0
        %1644 = vmatprep.subr.bf16.mxu0 0
        %1645 = vmatpush1.bf16.msra.mxu0 0
        %1646 = vmatprep.subr.bf16.mxu0 0
        %1647 = vmatpush1.bf16.msra.mxu0 0
        %1648 = vmatprep.subr.bf16.mxu0 0
        %1649 = vmatpush1.bf16.msra.mxu0 0
        %1650 = vmatprep.subr.bf16.mxu0 0
        %1651 = vmatpush1.bf16.msra.mxu0 0
        %1652 = vmatprep.subr.bf16.mxu0 0
        %1653 = vmatpush1.bf16.msra.mxu0 0
        %1654 = vmatprep.subr.bf16.mxu0 0
        %1655 = vmatpush1.bf16.msra.mxu0 0
        %1656 = vmatprep.subr.bf16.mxu0 0
        %1657 = vmatpush1.bf16.msra.mxu0 0
        %1658 = vmatprep.subr.bf16.mxu0 0
        %1659 = vmatpush1.bf16.msra.mxu0 0
        %1660 = vmatprep.subr.bf16.mxu0 0
        %1661 = vmatpush1.bf16.msra.mxu0 0
        %1662 = vmatprep.subr.bf16.mxu0 0
        %1663 = vmatpush1.bf16.msra.mxu0 0
        %1664 = vmatprep.subr.bf16.mxu0 0
        %1665 = vmatpush1.bf16.msra.mxu0 0
        %1666 = vmatprep.subr.bf16.mxu0 0
        %1667 = vmatpush1.bf16.msra.mxu0 0
        %1668 = vmatprep.mubr.bf16.mxu0 0
        %1669 = vmatmul.mubr.bf16.gmra.mrb[0].mxu0 %v1585
        %v1670 = vpop.f32.mrb[0].mxu0
        %v1671 = vadd.f32 0.0, %v1670
        %v1672 = vpop.f32.mrb[0].mxu0
        %v1673 = vpop.f32.mrb[0].mxu0
        %v1674 = vpop.f32.mrb[0].mxu0
        %1675 = vdwg.mxu0
        %v1676 = vadd.f32 %v1635, %v1671
        %v1677 = vxor.u32 %v1676, 2147483648
        %v1678 = vmul.f32 %v1677, 1.442695
        %v1679 = vpow.pop %v1678
        %v1680 = vadd.f32 %v1679, 1.0
        %v1681 = vrcp.pop %v1680
        %v1682 = vmul.f32 1.0, %v1681
        %s1683 = scalar_lea.vmem [#allocation4], %s1581
        %v1684 = vld [vmem:[%s1683] sm:$0xff]
        %1685 = vmatprep.subr.bf16.mxu0 0
        %1686 = vmatpush1.bf16.msra.mxu0 %v622
        %1687 = vmatprep.subr.bf16.mxu0 0
        %1688 = vmatpush1.bf16.msra.mxu0 0
        %1689 = vmatprep.subr.bf16.mxu0 0
        %1690 = vmatpush1.bf16.msra.mxu0 0
        %1691 = vmatprep.subr.bf16.mxu0 0
        %1692 = vmatpush1.bf16.msra.mxu0 0
        %1693 = vmatprep.subr.bf16.mxu0 0
        %1694 = vmatpush1.bf16.msra.mxu0 0
        %1695 = vmatprep.subr.bf16.mxu0 0
        %1696 = vmatpush1.bf16.msra.mxu0 0
        %1697 = vmatprep.subr.bf16.mxu0 0
        %1698 = vmatpush1.bf16.msra.mxu0 0
        %1699 = vmatprep.subr.bf16.mxu0 0
        %1700 = vmatpush1.bf16.msra.mxu0 0
        %1701 = vmatprep.subr.bf16.mxu0 0
        %1702 = vmatpush1.bf16.msra.mxu0 0
        %1703 = vmatprep.subr.bf16.mxu0 0
        %1704 = vmatpush1.bf16.msra.mxu0 0
        %1705 = vmatprep.subr.bf16.mxu0 0
        %1706 = vmatpush1.bf16.msra.mxu0 0
        %1707 = vmatprep.subr.bf16.mxu0 0
        %1708 = vmatpush1.bf16.msra.mxu0 0
        %1709 = vmatprep.subr.bf16.mxu0 0
        %1710 = vmatpush1.bf16.msra.mxu0 0
        %1711 = vmatprep.subr.bf16.mxu0 0
        %1712 = vmatpush1.bf16.msra.mxu0 0
        %1713 = vmatprep.subr.bf16.mxu0 0
        %1714 = vmatpush1.bf16.msra.mxu0 0
        %1715 = vmatprep.subr.bf16.mxu0 0
        %1716 = vmatpush1.bf16.msra.mxu0 0
        %1717 = vmatprep.mubr.bf16.mxu0 0
        %1718 = vmatmul.mubr.bf16.gmra.mrb[0].mxu0 %v1585
        %v1719 = vpop.f32.mrb[0].mxu0
        %v1720 = vadd.f32 0.0, %v1719
        %v1721 = vpop.f32.mrb[0].mxu0
        %v1722 = vpop.f32.mrb[0].mxu0
        %v1723 = vpop.f32.mrb[0].mxu0
        %1724 = vdwg.mxu0
        %v1725 = vadd.f32 %v1684, %v1720
        %v1726 = vtanh.pop %v1725
        %s1727 = scalar_lea.vmem [#allocation5], %s1581
        %v1728 = vld [vmem:[%s1727] sm:$0xff]
        %1729 = vmatprep.subr.bf16.mxu0 0
        %1730 = vmatpush1.bf16.msra.mxu0 %v672
        %1731 = vmatprep.subr.bf16.mxu0 0
        %1732 = vmatpush1.bf16.msra.mxu0 0
        %1733 = vmatprep.subr.bf16.mxu0 0
        %1734 = vmatpush1.bf16.msra.mxu0 0
        %1735 = vmatprep.subr.bf16.mxu0 0
        %1736 = vmatpush1.bf16.msra.mxu0 0
        %1737 = vmatprep.subr.bf16.mxu0 0
        %1738 = vmatpush1.bf16.msra.mxu0 0
        %1739 = vmatprep.subr.bf16.mxu0 0
        %1740 = vmatpush1.bf16.msra.mxu0 0
        %1741 = vmatprep.subr.bf16.mxu0 0
        %1742 = vmatpush1.bf16.msra.mxu0 0
        %1743 = vmatprep.subr.bf16.mxu0 0
        %1744 = vmatpush1.bf16.msra.mxu0 0
        %1745 = vmatprep.subr.bf16.mxu0 0
        %1746 = vmatpush1.bf16.msra.mxu0 0
        %1747 = vmatprep.subr.bf16.mxu0 0
        %1748 = vmatpush1.bf16.msra.mxu0 0
        %1749 = vmatprep.subr.bf16.mxu0 0
        %1750 = vmatpush1.bf16.msra.mxu0 0
        %1751 = vmatprep.subr.bf16.mxu0 0
        %1752 = vmatpush1.bf16.msra.mxu0 0
        %1753 = vmatprep.subr.bf16.mxu0 0
        %1754 = vmatpush1.bf16.msra.mxu0 0
        %1755 = vmatprep.subr.bf16.mxu0 0
        %1756 = vmatpush1.bf16.msra.mxu0 0
        %1757 = vmatprep.subr.bf16.mxu0 0
        %1758 = vmatpush1.bf16.msra.mxu0 0
        %1759 = vmatprep.subr.bf16.mxu0 0
        %1760 = vmatpush1.bf16.msra.mxu0 0
        %1761 = vmatprep.mubr.bf16.mxu0 0
        %1762 = vmatmul.mubr.bf16.gmra.mrb[0].mxu0 %v1585
        %v1763 = vpop.f32.mrb[0].mxu0
        %v1764 = vadd.f32 0.0, %v1763
        %v1765 = vpop.f32.mrb[0].mxu0
        %v1766 = vpop.f32.mrb[0].mxu0
        %v1767 = vpop.f32.mrb[0].mxu0
        %1768 = vdwg.mxu0
        %v1769 = vadd.f32 %v1728, %v1764
        %v1770 = vxor.u32 %v1769, 2147483648
        %v1771 = vmul.f32 %v1770, 1.442695
        %v1772 = vpow.pop %v1771
        %v1773 = vadd.f32 %v1772, 1.0
        %v1774 = vrcp.pop %v1773
        %v1775 = vmul.f32 1.0, %v1774
        %v1776 = vld [vmem:[#allocation7] sm:$0xff]
        %v1777 = vmul.f32 %v1682, %v1776
        %v1778 = vmul.f32 %v1633, %v1726
        %v1779 = vadd.f32 %v1777, %v1778
        %v1780 = vtanh.pop %v1779
        %v1781 = vmul.f32 %v1775, %v1780
        %1782 = vst.msk [vmem:[#allocation7] sm:$0xff] %vm294, %v1779
        %1783 = vst.msk [vmem:[#allocation6] sm:$0xff] %vm294, %v1781
        %v1784 = vpack.c.bf16 %v1781, %v1781
        %s1785 = smul.addr %s1578, 4
        %s1786 = scalar_lea.vmem %s241, %s1785 [#allocation11]
        %1787 = vst.msk [vmem:[%s1786] sm:$0xf] %vm732, %v1784
        %s1788 = smul.u32 %s499, 6
        %s1789 = sadd.s32 %s498, %s1788
        %v1790 = vld [vmem:[#allocation6] sm:$0xff]
        %v1791 = vpack.c.bf16 %v1790, %v1790
        %s1792 = smul.u32 %s1789, 8
        %s1793 = scalar_lea.vmem [#allocation2], %s1792
        %v1794 = vld [vmem:[%s1793] sm:$0xff]
        %v1796 = vsel %vm294, %v1791, 0
        %1798 = vmatprep.subr.bf16.mxu0 0
        %1799 = vmatpush1.bf16.msra.mxu0 %v509
        %1800 = vmatprep.subr.bf16.mxu0 0
        %1801 = vmatpush1.bf16.msra.mxu0 0
        %1802 = vmatprep.subr.bf16.mxu0 0
        %1803 = vmatpush1.bf16.msra.mxu0 0
        %1804 = vmatprep.subr.bf16.mxu0 0
        %1805 = vmatpush1.bf16.msra.mxu0 0
        %1806 = vmatprep.subr.bf16.mxu0 0
        %1807 = vmatpush1.bf16.msra.mxu0 0
        %1808 = vmatprep.subr.bf16.mxu0 0
        %1809 = vmatpush1.bf16.msra.mxu0 0
        %1810 = vmatprep.subr.bf16.mxu0 0
        %1811 = vmatpush1.bf16.msra.mxu0 0
        %1812 = vmatprep.subr.bf16.mxu0 0
        %1813 = vmatpush1.bf16.msra.mxu0 0
        %1814 = vmatprep.subr.bf16.mxu0 0
        %1815 = vmatpush1.bf16.msra.mxu0 0
        %1816 = vmatprep.subr.bf16.mxu0 0
        %1817 = vmatpush1.bf16.msra.mxu0 0
        %1818 = vmatprep.subr.bf16.mxu0 0
        %1819 = vmatpush1.bf16.msra.mxu0 0
        %1820 = vmatprep.subr.bf16.mxu0 0
        %1821 = vmatpush1.bf16.msra.mxu0 0
        %1822 = vmatprep.subr.bf16.mxu0 0
        %1823 = vmatpush1.bf16.msra.mxu0 0
        %1824 = vmatprep.subr.bf16.mxu0 0
        %1825 = vmatpush1.bf16.msra.mxu0 0
        %1826 = vmatprep.subr.bf16.mxu0 0
        %1827 = vmatpush1.bf16.msra.mxu0 0
        %1828 = vmatprep.subr.bf16.mxu0 0
        %1829 = vmatpush1.bf16.msra.mxu0 0
        %1830 = vmatprep.mubr.bf16.mxu0 0
        %1831 = vmatmul.mubr.bf16.gmra.mrb[0].mxu0 %v1796
        %v1832 = vpop.f32.mrb[0].mxu0
        %v1833 = vadd.f32 0.0, %v1832
        %v1834 = vpop.f32.mrb[0].mxu0
        %v1835 = vpop.f32.mrb[0].mxu0
        %v1836 = vpop.f32.mrb[0].mxu0
        %1837 = vdwg.mxu0
        %v1838 = vadd.f32 %v1794, %v1833
        %v1839 = vxor.u32 %v1838, 2147483648
        %v1840 = vmul.f32 %v1839, 1.442695
        %v1841 = vpow.pop %v1840
        %v1842 = vadd.f32 %v1841, 1.0
        %v1843 = vrcp.pop %v1842
        %v1844 = vmul.f32 1.0, %v1843
        %s1845 = scalar_lea.vmem [#allocation3], %s1792
        %v1846 = vld [vmem:[%s1845] sm:$0xff]
        %1847 = vmatprep.subr.bf16.mxu0 0
        %1848 = vmatpush1.bf16.msra.mxu0 %v567
        %1849 = vmatprep.subr.bf16.mxu0 0
        %1850 = vmatpush1.bf16.msra.mxu0 0
        %1851 = vmatprep.subr.bf16.mxu0 0
        %1852 = vmatpush1.bf16.msra.mxu0 0
        %1853 = vmatprep.subr.bf16.mxu0 0
        %1854 = vmatpush1.bf16.msra.mxu0 0
        %1855 = vmatprep.subr.bf16.mxu0 0
        %1856 = vmatpush1.bf16.msra.mxu0 0
        %1857 = vmatprep.subr.bf16.mxu0 0
        %1858 = vmatpush1.bf16.msra.mxu0 0
        %1859 = vmatprep.subr.bf16.mxu0 0
        %1860 = vmatpush1.bf16.msra.mxu0 0
        %1861 = vmatprep.subr.bf16.mxu0 0
        %1862 = vmatpush1.bf16.msra.mxu0 0
        %1863 = vmatprep.subr.bf16.mxu0 0
        %1864 = vmatpush1.bf16.msra.mxu0 0
        %1865 = vmatprep.subr.bf16.mxu0 0
        %1866 = vmatpush1.bf16.msra.mxu0 0
        %1867 = vmatprep.subr.bf16.mxu0 0
        %1868 = vmatpush1.bf16.msra.mxu0 0
        %1869 = vmatprep.subr.bf16.mxu0 0
        %1870 = vmatpush1.bf16.msra.mxu0 0
        %1871 = vmatprep.subr.bf16.mxu0 0
        %1872 = vmatpush1.bf16.msra.mxu0 0
        %1873 = vmatprep.subr.bf16.mxu0 0
        %1874 = vmatpush1.bf16.msra.mxu0 0
        %1875 = vmatprep.subr.bf16.mxu0 0
        %1876 = vmatpush1.bf16.msra.mxu0 0
        %1877 = vmatprep.subr.bf16.mxu0 0
        %1878 = vmatpush1.bf16.msra.mxu0 0
        %1879 = vmatprep.mubr.bf16.mxu0 0
        %1880 = vmatmul.mubr.bf16.gmra.mrb[0].mxu0 %v1796
        %v1881 = vpop.f32.mrb[0].mxu0
        %v1882 = vadd.f32 0.0, %v1881
        %v1883 = vpop.f32.mrb[0].mxu0
        %v1884 = vpop.f32.mrb[0].mxu0
        %v1885 = vpop.f32.mrb[0].mxu0
        %1886 = vdwg.mxu0
        %v1887 = vadd.f32 %v1846, %v1882
        %v1888 = vxor.u32 %v1887, 2147483648
        %v1889 = vmul.f32 %v1888, 1.442695
        %v1890 = vpow.pop %v1889
        %v1891 = vadd.f32 %v1890, 1.0
        %v1892 = vrcp.pop %v1891
        %v1893 = vmul.f32 1.0, %v1892
        %s1894 = scalar_lea.vmem [#allocation4], %s1792
        %v1895 = vld [vmem:[%s1894] sm:$0xff]
        %1896 = vmatprep.subr.bf16.mxu0 0
        %1897 = vmatpush1.bf16.msra.mxu0 %v622
        %1898 = vmatprep.subr.bf16.mxu0 0
        %1899 = vmatpush1.bf16.msra.mxu0 0
        %1900 = vmatprep.subr.bf16.mxu0 0
        %1901 = vmatpush1.bf16.msra.mxu0 0
        %1902 = vmatprep.subr.bf16.mxu0 0
        %1903 = vmatpush1.bf16.msra.mxu0 0
        %1904 = vmatprep.subr.bf16.mxu0 0
        %1905 = vmatpush1.bf16.msra.mxu0 0
        %1906 = vmatprep.subr.bf16.mxu0 0
        %1907 = vmatpush1.bf16.msra.mxu0 0
        %1908 = vmatprep.subr.bf16.mxu0 0
        %1909 = vmatpush1.bf16.msra.mxu0 0
        %1910 = vmatprep.subr.bf16.mxu0 0
        %1911 = vmatpush1.bf16.msra.mxu0 0
        %1912 = vmatprep.subr.bf16.mxu0 0
        %1913 = vmatpush1.bf16.msra.mxu0 0
        %1914 = vmatprep.subr.bf16.mxu0 0
        %1915 = vmatpush1.bf16.msra.mxu0 0
        %1916 = vmatprep.subr.bf16.mxu0 0
        %1917 = vmatpush1.bf16.msra.mxu0 0
        %1918 = vmatprep.subr.bf16.mxu0 0
        %1919 = vmatpush1.bf16.msra.mxu0 0
        %1920 = vmatprep.subr.bf16.mxu0 0
        %1921 = vmatpush1.bf16.msra.mxu0 0
        %1922 = vmatprep.subr.bf16.mxu0 0
        %1923 = vmatpush1.bf16.msra.mxu0 0
        %1924 = vmatprep.subr.bf16.mxu0 0
        %1925 = vmatpush1.bf16.msra.mxu0 0
        %1926 = vmatprep.subr.bf16.mxu0 0
        %1927 = vmatpush1.bf16.msra.mxu0 0
        %1928 = vmatprep.mubr.bf16.mxu0 0
        %1929 = vmatmul.mubr.bf16.gmra.mrb[0].mxu0 %v1796
        %v1930 = vpop.f32.mrb[0].mxu0
        %v1931 = vadd.f32 0.0, %v1930
        %v1932 = vpop.f32.mrb[0].mxu0
        %v1933 = vpop.f32.mrb[0].mxu0
        %v1934 = vpop.f32.mrb[0].mxu0
        %1935 = vdwg.mxu0
        %v1936 = vadd.f32 %v1895, %v1931
        %v1937 = vtanh.pop %v1936
        %s1938 = scalar_lea.vmem [#allocation5], %s1792
        %v1939 = vld [vmem:[%s1938] sm:$0xff]
        %1940 = vmatprep.subr.bf16.mxu0 0
        %1941 = vmatpush1.bf16.msra.mxu0 %v672
        %1942 = vmatprep.subr.bf16.mxu0 0
        %1943 = vmatpush1.bf16.msra.mxu0 0
        %1944 = vmatprep.subr.bf16.mxu0 0
        %1945 = vmatpush1.bf16.msra.mxu0 0
        %1946 = vmatprep.subr.bf16.mxu0 0
        %1947 = vmatpush1.bf16.msra.mxu0 0
        %1948 = vmatprep.subr.bf16.mxu0 0
        %1949 = vmatpush1.bf16.msra.mxu0 0
        %1950 = vmatprep.subr.bf16.mxu0 0
        %1951 = vmatpush1.bf16.msra.mxu0 0
        %1952 = vmatprep.subr.bf16.mxu0 0
        %1953 = vmatpush1.bf16.msra.mxu0 0
        %1954 = vmatprep.subr.bf16.mxu0 0
        %1955 = vmatpush1.bf16.msra.mxu0 0
        %1956 = vmatprep.subr.bf16.mxu0 0
        %1957 = vmatpush1.bf16.msra.mxu0 0
        %1958 = vmatprep.subr.bf16.mxu0 0
        %1959 = vmatpush1.bf16.msra.mxu0 0
        %1960 = vmatprep.subr.bf16.mxu0 0
        %1961 = vmatpush1.bf16.msra.mxu0 0
        %1962 = vmatprep.subr.bf16.mxu0 0
        %1963 = vmatpush1.bf16.msra.mxu0 0
        %1964 = vmatprep.subr.bf16.mxu0 0
        %1965 = vmatpush1.bf16.msra.mxu0 0
        %1966 = vmatprep.subr.bf16.mxu0 0
        %1967 = vmatpush1.bf16.msra.mxu0 0
        %1968 = vmatprep.subr.bf16.mxu0 0
        %1969 = vmatpush1.bf16.msra.mxu0 0
        %1970 = vmatprep.subr.bf16.mxu0 0
        %1971 = vmatpush1.bf16.msra.mxu0 0
        %1972 = vmatprep.mubr.bf16.mxu0 0
        %1973 = vmatmul.mubr.bf16.gmra.mrb[0].mxu0 %v1796
        %v1974 = vpop.f32.mrb[0].mxu0
        %v1975 = vadd.f32 0.0, %v1974
        %v1976 = vpop.f32.mrb[0].mxu0
        %v1977 = vpop.f32.mrb[0].mxu0
        %v1978 = vpop.f32.mrb[0].mxu0
        %1979 = vdwg.mxu0
        %v1980 = vadd.f32 %v1939, %v1975
        %v1981 = vxor.u32 %v1980, 2147483648
        %v1982 = vmul.f32 %v1981, 1.442695
        %v1983 = vpow.pop %v1982
        %v1984 = vadd.f32 %v1983, 1.0
        %v1985 = vrcp.pop %v1984
        %v1986 = vmul.f32 1.0, %v1985
        %v1987 = vld [vmem:[#allocation7] sm:$0xff]
        %v1988 = vmul.f32 %v1893, %v1987
        %v1989 = vmul.f32 %v1844, %v1937
        %v1990 = vadd.f32 %v1988, %v1989
        %v1991 = vtanh.pop %v1990
        %v1992 = vmul.f32 %v1986, %v1991
        %1993 = vst.msk [vmem:[#allocation7] sm:$0xff] %vm294, %v1990
        %1994 = vst.msk [vmem:[#allocation6] sm:$0xff] %vm294, %v1992
        %v1995 = vpack.c.bf16 %v1992, %v1992
        %s1996 = smul.addr %s1789, 4
        %s1997 = scalar_lea.vmem %s241, %s1996 [#allocation11]
        %1998 = vst.msk [vmem:[%s1997] sm:$0xf] %vm732, %v1995
        %s1999 = smul.u32 %s499, 7
        %s2000 = sadd.s32 %s498, %s1999
        %v2001 = vld [vmem:[#allocation6] sm:$0xff]
        %v2002 = vpack.c.bf16 %v2001, %v2001
        %s2003 = smul.u32 %s2000, 8
        %s2004 = scalar_lea.vmem [#allocation2], %s2003
        %v2005 = vld [vmem:[%s2004] sm:$0xff]
        %v2007 = vsel %vm294, %v2002, 0
        %2009 = vmatprep.subr.bf16.mxu0 0
        %2010 = vmatpush1.bf16.msra.mxu0 %v509
        %2011 = vmatprep.subr.bf16.mxu0 0
        %2012 = vmatpush1.bf16.msra.mxu0 0
        %2013 = vmatprep.subr.bf16.mxu0 0
        %2014 = vmatpush1.bf16.msra.mxu0 0
        %2015 = vmatprep.subr.bf16.mxu0 0
        %2016 = vmatpush1.bf16.msra.mxu0 0
        %2017 = vmatprep.subr.bf16.mxu0 0
        %2018 = vmatpush1.bf16.msra.mxu0 0
        %2019 = vmatprep.subr.bf16.mxu0 0
        %2020 = vmatpush1.bf16.msra.mxu0 0
        %2021 = vmatprep.subr.bf16.mxu0 0
        %2022 = vmatpush1.bf16.msra.mxu0 0
        %2023 = vmatprep.subr.bf16.mxu0 0
        %2024 = vmatpush1.bf16.msra.mxu0 0
        %2025 = vmatprep.subr.bf16.mxu0 0
        %2026 = vmatpush1.bf16.msra.mxu0 0
        %2027 = vmatprep.subr.bf16.mxu0 0
        %2028 = vmatpush1.bf16.msra.mxu0 0
        %2029 = vmatprep.subr.bf16.mxu0 0
        %2030 = vmatpush1.bf16.msra.mxu0 0
        %2031 = vmatprep.subr.bf16.mxu0 0
        %2032 = vmatpush1.bf16.msra.mxu0 0
        %2033 = vmatprep.subr.bf16.mxu0 0
        %2034 = vmatpush1.bf16.msra.mxu0 0
        %2035 = vmatprep.subr.bf16.mxu0 0
        %2036 = vmatpush1.bf16.msra.mxu0 0
        %2037 = vmatprep.subr.bf16.mxu0 0
        %2038 = vmatpush1.bf16.msra.mxu0 0
        %2039 = vmatprep.subr.bf16.mxu0 0
        %2040 = vmatpush1.bf16.msra.mxu0 0
        %2041 = vmatprep.mubr.bf16.mxu0 0
        %2042 = vmatmul.mubr.bf16.gmra.mrb[0].mxu0 %v2007
        %v2043 = vpop.f32.mrb[0].mxu0
        %v2044 = vadd.f32 0.0, %v2043
        %v2045 = vpop.f32.mrb[0].mxu0
        %v2046 = vpop.f32.mrb[0].mxu0
        %v2047 = vpop.f32.mrb[0].mxu0
        %2048 = vdwg.mxu0
        %v2049 = vadd.f32 %v2005, %v2044
        %v2050 = vxor.u32 %v2049, 2147483648
        %v2051 = vmul.f32 %v2050, 1.442695
        %v2052 = vpow.pop %v2051
        %v2053 = vadd.f32 %v2052, 1.0
        %v2054 = vrcp.pop %v2053
        %v2055 = vmul.f32 1.0, %v2054
        %s2056 = scalar_lea.vmem [#allocation3], %s2003
        %v2057 = vld [vmem:[%s2056] sm:$0xff]
        %2058 = vmatprep.subr.bf16.mxu0 0
        %2059 = vmatpush1.bf16.msra.mxu0 %v567
        %2060 = vmatprep.subr.bf16.mxu0 0
        %2061 = vmatpush1.bf16.msra.mxu0 0
        %2062 = vmatprep.subr.bf16.mxu0 0
        %2063 = vmatpush1.bf16.msra.mxu0 0
        %2064 = vmatprep.subr.bf16.mxu0 0
        %2065 = vmatpush1.bf16.msra.mxu0 0
        %2066 = vmatprep.subr.bf16.mxu0 0
        %2067 = vmatpush1.bf16.msra.mxu0 0
        %2068 = vmatprep.subr.bf16.mxu0 0
        %2069 = vmatpush1.bf16.msra.mxu0 0
        %2070 = vmatprep.subr.bf16.mxu0 0
        %2071 = vmatpush1.bf16.msra.mxu0 0
        %2072 = vmatprep.subr.bf16.mxu0 0
        %2073 = vmatpush1.bf16.msra.mxu0 0
        %2074 = vmatprep.subr.bf16.mxu0 0
        %2075 = vmatpush1.bf16.msra.mxu0 0
        %2076 = vmatprep.subr.bf16.mxu0 0
        %2077 = vmatpush1.bf16.msra.mxu0 0
        %2078 = vmatprep.subr.bf16.mxu0 0
        %2079 = vmatpush1.bf16.msra.mxu0 0
        %2080 = vmatprep.subr.bf16.mxu0 0
        %2081 = vmatpush1.bf16.msra.mxu0 0
        %2082 = vmatprep.subr.bf16.mxu0 0
        %2083 = vmatpush1.bf16.msra.mxu0 0
        %2084 = vmatprep.subr.bf16.mxu0 0
        %2085 = vmatpush1.bf16.msra.mxu0 0
        %2086 = vmatprep.subr.bf16.mxu0 0
        %2087 = vmatpush1.bf16.msra.mxu0 0
        %2088 = vmatprep.subr.bf16.mxu0 0
        %2089 = vmatpush1.bf16.msra.mxu0 0
        %2090 = vmatprep.mubr.bf16.mxu0 0
        %2091 = vmatmul.mubr.bf16.gmra.mrb[0].mxu0 %v2007
        %v2092 = vpop.f32.mrb[0].mxu0
        %v2093 = vadd.f32 0.0, %v2092
        %v2094 = vpop.f32.mrb[0].mxu0
        %v2095 = vpop.f32.mrb[0].mxu0
        %v2096 = vpop.f32.mrb[0].mxu0
        %2097 = vdwg.mxu0
        %v2098 = vadd.f32 %v2057, %v2093
        %v2099 = vxor.u32 %v2098, 2147483648
        %v2100 = vmul.f32 %v2099, 1.442695
        %v2101 = vpow.pop %v2100
        %v2102 = vadd.f32 %v2101, 1.0
        %v2103 = vrcp.pop %v2102
        %v2104 = vmul.f32 1.0, %v2103
        %s2105 = scalar_lea.vmem [#allocation4], %s2003
        %v2106 = vld [vmem:[%s2105] sm:$0xff]
        %2107 = vmatprep.subr.bf16.mxu0 0
        %2108 = vmatpush1.bf16.msra.mxu0 %v622
        %2109 = vmatprep.subr.bf16.mxu0 0
        %2110 = vmatpush1.bf16.msra.mxu0 0
        %2111 = vmatprep.subr.bf16.mxu0 0
        %2112 = vmatpush1.bf16.msra.mxu0 0
        %2113 = vmatprep.subr.bf16.mxu0 0
        %2114 = vmatpush1.bf16.msra.mxu0 0
        %2115 = vmatprep.subr.bf16.mxu0 0
        %2116 = vmatpush1.bf16.msra.mxu0 0
        %2117 = vmatprep.subr.bf16.mxu0 0
        %2118 = vmatpush1.bf16.msra.mxu0 0
        %2119 = vmatprep.subr.bf16.mxu0 0
        %2120 = vmatpush1.bf16.msra.mxu0 0
        %2121 = vmatprep.subr.bf16.mxu0 0
        %2122 = vmatpush1.bf16.msra.mxu0 0
        %2123 = vmatprep.subr.bf16.mxu0 0
        %2124 = vmatpush1.bf16.msra.mxu0 0
        %2125 = vmatprep.subr.bf16.mxu0 0
        %2126 = vmatpush1.bf16.msra.mxu0 0
        %2127 = vmatprep.subr.bf16.mxu0 0
        %2128 = vmatpush1.bf16.msra.mxu0 0
        %2129 = vmatprep.subr.bf16.mxu0 0
        %2130 = vmatpush1.bf16.msra.mxu0 0
        %2131 = vmatprep.subr.bf16.mxu0 0
        %2132 = vmatpush1.bf16.msra.mxu0 0
        %2133 = vmatprep.subr.bf16.mxu0 0
        %2134 = vmatpush1.bf16.msra.mxu0 0
        %2135 = vmatprep.subr.bf16.mxu0 0
        %2136 = vmatpush1.bf16.msra.mxu0 0
        %2137 = vmatprep.subr.bf16.mxu0 0
        %2138 = vmatpush1.bf16.msra.mxu0 0
        %2139 = vmatprep.mubr.bf16.mxu0 0
        %2140 = vmatmul.mubr.bf16.gmra.mrb[0].mxu0 %v2007
        %v2141 = vpop.f32.mrb[0].mxu0
        %v2142 = vadd.f32 0.0, %v2141
        %v2143 = vpop.f32.mrb[0].mxu0
        %v2144 = vpop.f32.mrb[0].mxu0
        %v2145 = vpop.f32.mrb[0].mxu0
        %2146 = vdwg.mxu0
        %v2147 = vadd.f32 %v2106, %v2142
        %v2148 = vtanh.pop %v2147
        %s2149 = scalar_lea.vmem [#allocation5], %s2003
        %v2150 = vld [vmem:[%s2149] sm:$0xff]
        %2151 = vmatprep.subr.bf16.mxu0 0
        %2152 = vmatpush1.bf16.msra.mxu0 %v672
        %2153 = vmatprep.subr.bf16.mxu0 0
        %2154 = vmatpush1.bf16.msra.mxu0 0
        %2155 = vmatprep.subr.bf16.mxu0 0
        %2156 = vmatpush1.bf16.msra.mxu0 0
        %2157 = vmatprep.subr.bf16.mxu0 0
        %2158 = vmatpush1.bf16.msra.mxu0 0
        %2159 = vmatprep.subr.bf16.mxu0 0
        %2160 = vmatpush1.bf16.msra.mxu0 0
        %2161 = vmatprep.subr.bf16.mxu0 0
        %2162 = vmatpush1.bf16.msra.mxu0 0
        %2163 = vmatprep.subr.bf16.mxu0 0
        %2164 = vmatpush1.bf16.msra.mxu0 0
        %2165 = vmatprep.subr.bf16.mxu0 0
        %2166 = vmatpush1.bf16.msra.mxu0 0
        %2167 = vmatprep.subr.bf16.mxu0 0
        %2168 = vmatpush1.bf16.msra.mxu0 0
        %2169 = vmatprep.subr.bf16.mxu0 0
        %2170 = vmatpush1.bf16.msra.mxu0 0
        %2171 = vmatprep.subr.bf16.mxu0 0
        %2172 = vmatpush1.bf16.msra.mxu0 0
        %2173 = vmatprep.subr.bf16.mxu0 0
        %2174 = vmatpush1.bf16.msra.mxu0 0
        %2175 = vmatprep.subr.bf16.mxu0 0
        %2176 = vmatpush1.bf16.msra.mxu0 0
        %2177 = vmatprep.subr.bf16.mxu0 0
        %2178 = vmatpush1.bf16.msra.mxu0 0
        %2179 = vmatprep.subr.bf16.mxu0 0
        %2180 = vmatpush1.bf16.msra.mxu0 0
        %2181 = vmatprep.subr.bf16.mxu0 0
        %2182 = vmatpush1.bf16.msra.mxu0 0
        %2183 = vmatprep.mubr.bf16.mxu0 0
        %2184 = vmatmul.mubr.bf16.gmra.mrb[0].mxu0 %v2007
        %v2185 = vpop.f32.mrb[0].mxu0
        %v2186 = vadd.f32 0.0, %v2185
        %v2187 = vpop.f32.mrb[0].mxu0
        %v2188 = vpop.f32.mrb[0].mxu0
        %v2189 = vpop.f32.mrb[0].mxu0
        %2190 = vdwg.mxu0
        %v2191 = vadd.f32 %v2150, %v2186
        %v2192 = vxor.u32 %v2191, 2147483648
        %v2193 = vmul.f32 %v2192, 1.442695
        %v2194 = vpow.pop %v2193
        %v2195 = vadd.f32 %v2194, 1.0
        %v2196 = vrcp.pop %v2195
        %v2197 = vmul.f32 1.0, %v2196
        %v2198 = vld [vmem:[#allocation7] sm:$0xff]
        %v2199 = vmul.f32 %v2104, %v2198
        %v2200 = vmul.f32 %v2055, %v2148
        %v2201 = vadd.f32 %v2199, %v2200
        %v2202 = vtanh.pop %v2201
        %v2203 = vmul.f32 %v2197, %v2202
        %2204 = vst.msk [vmem:[#allocation7] sm:$0xff] %vm294, %v2201
        %2205 = vst.msk [vmem:[#allocation6] sm:$0xff] %vm294, %v2203
        %v2206 = vpack.c.bf16 %v2203, %v2203
        %s2207 = smul.addr %s2000, 4
        %s2208 = scalar_lea.vmem %s241, %s2207 [#allocation11]
        %2209 = vst.msk [vmem:[%s2208] sm:$0xf] %vm732, %v2206
        %s2210 = sand.u32 %s128, 1
        %s2211 = scalar_lea.sflag [#allocation10], %s2210
        %s2212 = sand.u32 %s128, 1
        %s2213 = smul.addr %s2212, 32
        %s2214 = scalar_lea.vmem [#allocation11], %s2213
        // Predicated region
        $region41: #{tpu_custom_call.1} parent=35 // pred_check
          %p2215 = pneg %p138
        $region42: #{tpu_custom_call.1} parent=35 // pred_check_branch
          %2217 = sbr.rel (%p2215) target = $region44
        $region43: #{tpu_custom_call.1} parent=35 // pred_region
          %s2219 = ssub.s32 512, 512
          %2220 = vsyncadd %s2211, %s2219
          %s2221 = smul.addr %s21, 8
          %s2222 = smul.addr %s2221, 64
          %s2223 = scalar_lea.hbm %s4, %s2222
          %s2224 = sshll.u32 %s2214, 4
          %s2225 = int_to_ptr.vmem [resolvable:$true] %s2224
          %2230 = dma.vmem_to_hbm [thread:$0]  %s2225, 512, %s2223, %s2211, 64, 64, 4
        $region44: #{tpu_custom_call.1} parent=35 // pred_fallthru
          _
      $region36: #{tpu_custom_call.1} parent=5 // pred_fallthru
        _
      %p2231 = scmp.le.s32.totalorder 2, %s16
      // Predicated region
      $region45: #{tpu_custom_call.1} parent=5 // pred_check
        %p2232 = pneg %p2231
      $region46: #{tpu_custom_call.1} parent=5 // pred_check_branch
        %2234 = sbr.rel (%p2232) target = $region48
      $region47: #{tpu_custom_call.1} parent=5 // pred_region
        %s2235 = ssub.s32 %s16, 2
        // Predicated region
        $region49: #{tpu_custom_call.1} parent=47 // pred_check
          %p2236 = pneg %p144
        $region50: #{tpu_custom_call.1} parent=47 // pred_check_branch
          %2238 = sbr.rel (%p2236) target = $region52
        $region51: #{tpu_custom_call.1} parent=47 // pred_region
          %s2239 = sand.u32 %s129, 1
          %s2240 = scalar_lea.sflag [#allocation10], %s2239
          %s2241 = sand.u32 %s129, 1
          %s2242 = smul.addr %s2241, 32
          %s2243 = scalar_lea.vmem [#allocation11], %s2242
          %2244 = dma.done %s2240, 512
        $region52: #{tpu_custom_call.1} parent=47 // pred_fallthru
          _
      $region48: #{tpu_custom_call.1} parent=5 // pred_fallthru
        _
    $region6: #{tpu_custom_call.1} parent=1 // loop_footer
      %s20 = sadd.s32 1, %s16
    $region7: #{tpu_custom_call.1} parent=1 // loop_footer_branch
      %15 = sbr.rel target = $region3
    $region8: #{tpu_custom_call.1} parent=1 // loop_exit
      _
    %2245 = vsyncpa [#allocation9], 1
    %s2246 = scalar_lea.sflag [#allocation9], 1
    %2247 = vsyncpa %s2246, 1
    %2248 = vsyncpa [#allocation10], 1
    %s2249 = scalar_lea.sflag [#allocation10], 1
    %2250 = vsyncpa %s2249, 1

</llo_original>
